<compile_context>
chip_gen: v7x
topology: tpu7x:2x2x1
jax: 0.10.0
libtpu: 0.0.40
codegen_flags: <defaults>
</compile_context>

<pallas_src>
import jax
import jax.numpy as jnp
from jax.experimental import pallas as pl
from jax.experimental.pallas import tpu as pltpu


def _make_w_band(w, W):
    """Fold the kw tap + its zero padding along W into the contraction.

    w: (3, 3, 3, Cin, Cout)  ->  band: (9, W*Cin, W*Cout) with
      band[kd*3+kh, wi*Cin+ci, wo*Cout+co] = w[kd, kh, wi-wo+1, ci, co]
    (zero when |wi - wo| > 1).  A 1-D conv along W then becomes one
    lane-dense matmul  (.., W*Cin) @ (W*Cin, W*Cout).
    """
    kD, kH, kW, Cin, Cout = w.shape
    Wp = W + kW - 1
    w_flat = w.reshape(kD * kH, kW, Cin, Cout)
    band_p = jnp.zeros((kD * kH, Wp * Cin, W * Cout), w.dtype)
    for kw in range(kW):
        for wo in range(W):
            wi_p = wo + kw                      # index into the W-padded input
            band_p = band_p.at[:,
                               wi_p * Cin:(wi_p + 1) * Cin,
                               wo * Cout:(wo + 1) * Cout].set(w_flat[:, kw])
    # drop rows that would multiply the (zero) W padding
    return band_p[:, Cin:Cin + W * Cin, :]


def _recurrent_block_kernel(x_ref, w1_ref, b1_ref, w2_ref, b2_ref,
                            out_ref, xpad_ref, pad1_ref, xslab_ref, pslab_ref):
    # x_ref:     (1, D, H, W*Cin)      un-padded input block (this batch elem)
    # w1_ref:    (9, W*Cin,  W*Cout)   banded conv1 weights (kd*3+kh major)
    # b1_ref:    (1, W*Cout)           conv1 bias tiled along W
    # w2_ref:    (9, W*Cout, W*Cout)   banded conv2 weights
    # b2_ref:    (1, W*Cout)
    # out_ref:   (1, D*H, W*Cout)      lane-dense output block
    # xpad_ref:  (D+2, H+2, W*Cin)     VMEM scratch: D/H-padded input slab
    # pad1_ref:  (D+2, H+2, W*Cout)    VMEM scratch: D/H-padded conv1 act.
    # xslab_ref: (3, (D+2)*H, W*Cin)   VMEM scratch: kh-shifted input slabs
    # pslab_ref: (3, (D+2)*H, W*Cout)  VMEM scratch: kh-shifted conv1 slabs
    _, D, H, WCin = x_ref.shape
    WCout = out_ref.shape[2]
    DH = D * H
    Dp, Hp = D + 2, H + 2

    # ---- zero only the thin D/H halo strips (cheap; re-done every step so it
    #      stays correct if the "parallel" batch axis splits across cores) ----
    def zero_halo(ref):
        dp, hp, c = ref.shape
        ref[0:1, :, :] = jnp.zeros((1, hp, c), jnp.float32)
        ref[dp - 1:dp, :, :] = jnp.zeros((1, hp, c), jnp.float32)
        ref[:, 0:1, :] = jnp.zeros((dp, 1, c), jnp.float32)
        ref[:, hp - 1:hp, :] = jnp.zeros((dp, 1, c), jnp.float32)

    zero_halo(xpad_ref)
    zero_halo(pad1_ref)

    # ---- in-kernel padding: copy input block into the slab interior ----
    xpad_ref[1:1 + D, 1:1 + H, :] = x_ref[0]

    def conv(pad_ref, slab_ref, w_ref, b_ref, wc_in):
        # 3 kh-shifted, row-flattened slabs (the only relayout copies per conv)
        for kh in range(3):
            slab_ref[kh] = pad_ref[:, kh:kh + H, :].reshape(Dp * H, wc_in)
        # register-resident fp32 accumulator seeded with the bias
        acc = jnp.broadcast_to(b_ref[...].astype(jnp.float32), (DH, WCout))
        for kd in range(3):
            lo = kd * H                 # multiple of 8 -> aligned VMEM view
            for kh in range(3):
                patch = slab_ref[kh, lo:lo + DH, :]          # (DH, wc_in) view
                acc = acc + jnp.dot(patch, w_ref[kd * 3 + kh],
                                    preferred_element_type=jnp.float32)
        return jnp.maximum(acc, 0.0)                          # (DH, WCout)

    # ---------------- conv1 + bias + relu ----------------
    y1 = conv(xpad_ref, xslab_ref, w1_ref, b1_ref, WCin)
    pad1_ref[1:1 + D, 1:1 + H, :] = y1.reshape(D, H, WCout)

    # ---------------- conv2 + bias + relu ----------------
    y2 = conv(pad1_ref, pslab_ref, w2_ref, b2_ref, WCout)
    out_ref[0] = y2.astype(out_ref.dtype)      # lane-dense, no reshape


def recurrent_block(x_ndhwc, w1, b1, w2, b2):
    """x_ndhwc: (N, D, H, W, Cin) float32. Returns (N, D, H, W, Cout)."""
    N, D, H, W, Cin = x_ndhwc.shape
    Cout = w1.shape[-1]
    WCin, WCout = W * Cin, W * Cout
    Dp, Hp = D + 2, H + 2
    DH = D * H

    # lane-fused layouts + banded weights (wrapper-side packing, no jnp.pad)
    x2 = x_ndhwc.reshape(N, D, H, WCin)
    w1b = _make_w_band(w1, W)                       # (9, W*Cin,  W*Cout)
    w2b = _make_w_band(w2, W)                       # (9, W*Cout, W*Cout)
    b1t = jnp.tile(b1, W).reshape(1, WCout)
    b2t = jnp.tile(b2, W).reshape(1, WCout)

    out = pl.pallas_call(
        _recurrent_block_kernel,
        out_shape=jax.ShapeDtypeStruct((N, DH, WCout), x_ndhwc.dtype),
        grid_spec=pltpu.PrefetchScalarGridSpec(
            num_scalar_prefetch=0,
            grid=(N,),
            in_specs=[
                pl.BlockSpec((1, D, H, WCin), lambda n: (n, 0, 0, 0)),
                pl.BlockSpec((9, WCin, WCout), lambda n: (0, 0, 0)),
                pl.BlockSpec((1, WCout), lambda n: (0, 0)),
                pl.BlockSpec((9, WCout, WCout), lambda n: (0, 0, 0)),
                pl.BlockSpec((1, WCout), lambda n: (0, 0)),
            ],
            out_specs=pl.BlockSpec((1, DH, WCout), lambda n: (n, 0, 0)),
            scratch_shapes=[
                pltpu.VMEM((Dp, Hp, WCin), jnp.float32),
                pltpu.VMEM((Dp, Hp, WCout), jnp.float32),
                pltpu.VMEM((3, Dp * H, WCin), jnp.float32),
                pltpu.VMEM((3, Dp * H, WCout), jnp.float32),
            ],
        ),
        compiler_params=pltpu.CompilerParams(
            dimension_semantics=("parallel",),
            vmem_limit_bytes=32 * 1024 * 1024,
        ),
    )(x2, w1b, b1t, w2b, b2t)
    return out.reshape(N, D, H, W, Cout)


def _reference(x_ndhwc, w1, b1, w2, b2):
    dn = ("NDHWC", "DHWIO", "NDHWC")
    y = jax.lax.conv_general_dilated(x_ndhwc, w1, (1, 1, 1), "SAME",
                                     dimension_numbers=dn)
    y = jax.nn.relu(y + b1)
    y = jax.lax.conv_general_dilated(y, w2, (1, 1, 1), "SAME",
                                     dimension_numbers=dn)
    return jax.nn.relu(y + b2)


if __name__ == "__main__":
    # Cout=16 so W*Cout = 128 -> lane-dense output path in the kernel.
    N, Cin, Cout = 2, 4, 16
    D = H = W = 8

    key = jax.random.PRNGKey(0)
    kx, kw1, kb1, kw2, kb2 = jax.random.split(key, 5)

    # PyTorch-layout input (NCDHW), transposed to kernel layout (NDHWC)
    x_ncdhw = jax.random.normal(kx, (N, Cin, D, H, W), jnp.float32)
    x = jnp.transpose(x_ncdhw, (0, 2, 3, 4, 1))

    # deterministic parameter init (kaiming-uniform-like scaling)
    bound1 = 1.0 / jnp.sqrt(Cin * 27.0)
    w1 = jax.random.uniform(kw1, (3, 3, 3, Cin, Cout), jnp.float32,
                            -bound1, bound1)
    b1 = jax.random.uniform(kb1, (Cout,), jnp.float32, -bound1, bound1)
    bound2 = 1.0 / jnp.sqrt(Cout * 27.0)
    w2 = jax.random.uniform(kw2, (3, 3, 3, Cout, Cout), jnp.float32,
                            -bound2, bound2)
    b2 = jax.random.uniform(kb2, (Cout,), jnp.float32, -bound2, bound2)

    out = jax.block_until_ready(recurrent_block(x, w1, b1, w2, b2))
    assert out.shape == (N, D, H, W, Cout), out.shape

    ref = _reference(x, w1, b1, w2, b2)
    max_err = float(jnp.max(jnp.abs(out - ref)))
    assert max_err < 1e-3, f"max abs error {max_err}"

    print("KERNEL_OK")
</pallas_src>

<mosaic_0001>
module attributes {stable_mosaic.version = 11 : i64} {
  func.func @_recurrent_block_kernel(%arg0: i32, %arg1: memref<1x8x8x32xf32, #tpu.memory_space<vmem>>, %arg2: memref<9x32x128xf32, #tpu.memory_space<vmem>>, %arg3: memref<1x128xf32, #tpu.memory_space<vmem>>, %arg4: memref<9x128x128xf32, #tpu.memory_space<vmem>>, %arg5: memref<1x128xf32, #tpu.memory_space<vmem>>, %arg6: memref<1x64x128xf32, #tpu.memory_space<vmem>>, %arg7: memref<10x10x32xf32, #tpu.memory_space<vmem>>, %arg8: memref<10x10x128xf32, #tpu.memory_space<vmem>>, %arg9: memref<3x80x32xf32, #tpu.memory_space<vmem>>, %arg10: memref<3x80x128xf32, #tpu.memory_space<vmem>>) attributes {dimension_semantics = [#tpu.dimension_semantics<parallel>], iteration_bounds = array<i64: 2>, scalar_prefetch = 0 : i64, scratch_operands = 4 : i64, tpu.core_type = #tpu.core_type<tc>, window_params = [{transform_indices = @transform_0, window_bounds = array<i64: 1, 8, 8, 32>}, {pipeline_mode = #tpu.pipeline_mode<synchronous>, transform_indices = @transform_1, window_bounds = array<i64: 9, 32, 128>}, {pipeline_mode = #tpu.pipeline_mode<synchronous>, transform_indices = @transform_2, window_bounds = array<i64: 1, 128>}, {pipeline_mode = #tpu.pipeline_mode<synchronous>, transform_indices = @transform_3, window_bounds = array<i64: 9, 128, 128>}, {pipeline_mode = #tpu.pipeline_mode<synchronous>, transform_indices = @transform_4, window_bounds = array<i64: 1, 128>}, {transform_indices = @transform_5, window_bounds = array<i64: 1, 64, 128>}]} {
    %cst = arith.constant 0.000000e+00 : f32
    %0 = vector.broadcast %cst : f32 to vector<1x10x32xf32>
    %c0 = arith.constant 0 : index
    %c0_0 = arith.constant 0 : index
    %c0_1 = arith.constant 0 : index
    %1 = vector.load %arg7[%c0, %c0_0, %c0_1] : memref<10x10x32xf32, #tpu.memory_space<vmem>>, vector<1x10x32xf32>
    tpu.vector_store %arg7[%c0, %c0_0, %c0_1], %0 {strides = array<i32>} : memref<10x10x32xf32, #tpu.memory_space<vmem>>, vector<1x10x32xf32>,
    %cst_2 = arith.constant 0.000000e+00 : f32
    %2 = vector.broadcast %cst_2 : f32 to vector<1x10x32xf32>
    %c9 = arith.constant 9 : index
    %c0_3 = arith.constant 0 : index
    %c0_4 = arith.constant 0 : index
    %3 = vector.load %arg7[%c9, %c0_3, %c0_4] : memref<10x10x32xf32, #tpu.memory_space<vmem>>, vector<1x10x32xf32>
    tpu.vector_store %arg7[%c9, %c0_3, %c0_4], %2 {strides = array<i32>} : memref<10x10x32xf32, #tpu.memory_space<vmem>>, vector<1x10x32xf32>,
    %cst_5 = arith.constant 0.000000e+00 : f32
    %4 = vector.broadcast %cst_5 : f32 to vector<10x1x32xf32>
    %c0_6 = arith.constant 0 : index
    %c0_7 = arith.constant 0 : index
    %c0_8 = arith.constant 0 : index
    %5 = vector.load %arg7[%c0_6, %c0_7, %c0_8] : memref<10x10x32xf32, #tpu.memory_space<vmem>>, vector<10x1x32xf32>
    tpu.vector_store %arg7[%c0_6, %c0_7, %c0_8], %4 {strides = array<i32>} : memref<10x10x32xf32, #tpu.memory_space<vmem>>, vector<10x1x32xf32>,
    %cst_9 = arith.constant 0.000000e+00 : f32
    %6 = vector.broadcast %cst_9 : f32 to vector<10x1x32xf32>
    %c0_10 = arith.constant 0 : index
    %c9_11 = arith.constant 9 : index
    %c0_12 = arith.constant 0 : index
    %7 = vector.load %arg7[%c0_10, %c9_11, %c0_12] : memref<10x10x32xf32, #tpu.memory_space<vmem>>, vector<10x1x32xf32>
    tpu.vector_store %arg7[%c0_10, %c9_11, %c0_12], %6 {strides = array<i32>} : memref<10x10x32xf32, #tpu.memory_space<vmem>>, vector<10x1x32xf32>,
    %cst_13 = arith.constant 0.000000e+00 : f32
    %8 = vector.broadcast %cst_13 : f32 to vector<1x10x128xf32>
    %c0_14 = arith.constant 0 : index
    %c0_15 = arith.constant 0 : index
    %c0_16 = arith.constant 0 : index
    %9 = vector.load %arg8[%c0_14, %c0_15, %c0_16] : memref<10x10x128xf32, #tpu.memory_space<vmem>>, vector<1x10x128xf32>
    tpu.vector_store %arg8[%c0_14, %c0_15, %c0_16], %8 {strides = array<i32>} : memref<10x10x128xf32, #tpu.memory_space<vmem>>, vector<1x10x128xf32>,
    %cst_17 = arith.constant 0.000000e+00 : f32
    %10 = vector.broadcast %cst_17 : f32 to vector<1x10x128xf32>
    %c9_18 = arith.constant 9 : index
    %c0_19 = arith.constant 0 : index
    %c0_20 = arith.constant 0 : index
    %11 = vector.load %arg8[%c9_18, %c0_19, %c0_20] : memref<10x10x128xf32, #tpu.memory_space<vmem>>, vector<1x10x128xf32>
    tpu.vector_store %arg8[%c9_18, %c0_19, %c0_20], %10 {strides = array<i32>} : memref<10x10x128xf32, #tpu.memory_space<vmem>>, vector<1x10x128xf32>,
    %cst_21 = arith.constant 0.000000e+00 : f32
    %12 = vector.broadcast %cst_21 : f32 to vector<10x1x128xf32>
    %c0_22 = arith.constant 0 : index
    %c0_23 = arith.constant 0 : index
    %c0_24 = arith.constant 0 : index
    %13 = vector.load %arg8[%c0_22, %c0_23, %c0_24] : memref<10x10x128xf32, #tpu.memory_space<vmem>>, vector<10x1x128xf32>
    tpu.vector_store %arg8[%c0_22, %c0_23, %c0_24], %12 {strides = array<i32>} : memref<10x10x128xf32, #tpu.memory_space<vmem>>, vector<10x1x128xf32>,
    %cst_25 = arith.constant 0.000000e+00 : f32
    %14 = vector.broadcast %cst_25 : f32 to vector<10x1x128xf32>
    %c0_26 = arith.constant 0 : index
    %c9_27 = arith.constant 9 : index
    %c0_28 = arith.constant 0 : index
    %15 = vector.load %arg8[%c0_26, %c9_27, %c0_28] : memref<10x10x128xf32, #tpu.memory_space<vmem>>, vector<10x1x128xf32>
    tpu.vector_store %arg8[%c0_26, %c9_27, %c0_28], %14 {strides = array<i32>} : memref<10x10x128xf32, #tpu.memory_space<vmem>>, vector<10x1x128xf32>,
    %c0_29 = arith.constant 0 : index
    %c0_30 = arith.constant 0 : index
    %c0_31 = arith.constant 0 : index
    %c0_32 = arith.constant 0 : index
    %16 = vector.load %arg1[%c0_29, %c0_30, %c0_31, %c0_32] : memref<1x8x8x32xf32, #tpu.memory_space<vmem>>, vector<1x8x8x32xf32>
    %17 = vector.shape_cast %16 : vector<1x8x8x32xf32> to vector<8x8x32xf32>
    %c1 = arith.constant 1 : index
    %c1_33 = arith.constant 1 : index
    %c0_34 = arith.constant 0 : index
    %18 = vector.load %arg7[%c1, %c1_33, %c0_34] : memref<10x10x32xf32, #tpu.memory_space<vmem>>, vector<8x8x32xf32>
    tpu.vector_store %arg7[%c1, %c1_33, %c0_34], %17 {strides = array<i32>} : memref<10x10x32xf32, #tpu.memory_space<vmem>>, vector<8x8x32xf32>,
    %c0_35 = arith.constant 0 : index
    %c0_36 = arith.constant 0 : index
    %c0_37 = arith.constant 0 : index
    %19 = vector.load %arg7[%c0_35, %c0_36, %c0_37] : memref<10x10x32xf32, #tpu.memory_space<vmem>>, vector<10x8x32xf32>
    %20 = vector.shape_cast %19 : vector<10x8x32xf32> to vector<80x32xf32>
    %c0_38 = arith.constant 0 : index
    %c0_39 = arith.constant 0 : index
    %c0_40 = arith.constant 0 : index
    %21 = vector.load %arg9[%c0_38, %c0_39, %c0_40] : memref<3x80x32xf32, #tpu.memory_space<vmem>>, vector<1x80x32xf32>
    %22 = vector.shape_cast %21 : vector<1x80x32xf32> to vector<80x32xf32>
    %23 = vector.shape_cast %20 : vector<80x32xf32> to vector<1x80x32xf32>
    tpu.vector_store %arg9[%c0_38, %c0_39, %c0_40], %23 {strides = array<i32>} : memref<3x80x32xf32, #tpu.memory_space<vmem>>, vector<1x80x32xf32>,
    %c0_41 = arith.constant 0 : index
    %c1_42 = arith.constant 1 : index
    %c0_43 = arith.constant 0 : index
    %24 = vector.load %arg7[%c0_41, %c1_42, %c0_43] : memref<10x10x32xf32, #tpu.memory_space<vmem>>, vector<10x8x32xf32>
    %25 = vector.shape_cast %24 : vector<10x8x32xf32> to vector<80x32xf32>
    %c1_44 = arith.constant 1 : index
    %c0_45 = arith.constant 0 : index
    %c0_46 = arith.constant 0 : index
    %26 = vector.load %arg9[%c1_44, %c0_45, %c0_46] : memref<3x80x32xf32, #tpu.memory_space<vmem>>, vector<1x80x32xf32>
    %27 = vector.shape_cast %26 : vector<1x80x32xf32> to vector<80x32xf32>
    %28 = vector.shape_cast %25 : vector<80x32xf32> to vector<1x80x32xf32>
    tpu.vector_store %arg9[%c1_44, %c0_45, %c0_46], %28 {strides = array<i32>} : memref<3x80x32xf32, #tpu.memory_space<vmem>>, vector<1x80x32xf32>,
    %c0_47 = arith.constant 0 : index
    %c2 = arith.constant 2 : index
    %c0_48 = arith.constant 0 : index
    %29 = vector.load %arg7[%c0_47, %c2, %c0_48] : memref<10x10x32xf32, #tpu.memory_space<vmem>>, vector<10x8x32xf32>
    %30 = vector.shape_cast %29 : vector<10x8x32xf32> to vector<80x32xf32>
    %c2_49 = arith.constant 2 : index
    %c0_50 = arith.constant 0 : index
    %c0_51 = arith.constant 0 : index
    %31 = vector.load %arg9[%c2_49, %c0_50, %c0_51] : memref<3x80x32xf32, #tpu.memory_space<vmem>>, vector<1x80x32xf32>
    %32 = vector.shape_cast %31 : vector<1x80x32xf32> to vector<80x32xf32>
    %33 = vector.shape_cast %30 : vector<80x32xf32> to vector<1x80x32xf32>
    tpu.vector_store %arg9[%c2_49, %c0_50, %c0_51], %33 {strides = array<i32>} : memref<3x80x32xf32, #tpu.memory_space<vmem>>, vector<1x80x32xf32>,
    %c0_52 = arith.constant 0 : index
    %c0_53 = arith.constant 0 : index
    %34 = vector.load %arg3[%c0_52, %c0_53] : memref<1x128xf32, #tpu.memory_space<vmem>>, vector<1x128xf32>
    %35 = vector.shape_cast %34 : vector<1x128xf32> to vector<1x128xf32>
    %36 = vector.broadcast %35 : vector<1x128xf32> to vector<64x128xf32>
    %c0_54 = arith.constant 0 : index
    %c0_55 = arith.constant 0 : index
    %c0_56 = arith.constant 0 : index
    %37 = vector.load %arg9[%c0_54, %c0_55, %c0_56] : memref<3x80x32xf32, #tpu.memory_space<vmem>>, vector<1x64x32xf32>
    %38 = vector.shape_cast %37 : vector<1x64x32xf32> to vector<64x32xf32>
    %c0_57 = arith.constant 0 : index
    %c0_58 = arith.constant 0 : index
    %c0_59 = arith.constant 0 : index
    %39 = vector.load %arg2[%c0_57, %c0_58, %c0_59] : memref<9x32x128xf32, #tpu.memory_space<vmem>>, vector<1x32x128xf32>
    %40 = vector.shape_cast %39 : vector<1x32x128xf32> to vector<32x128xf32>
    %cst_60 = arith.constant dense<0.000000e+00> : vector<64x128xf32>
    %41 = tpu.matmul %38, %40, %cst_60 {dimension_numbers = #tpu.dot_dimension_numbers<[1], [0], [0], [1], [0, 0, 1, 1], [], []>} : vector<64x32xf32>, vector<32x128xf32>, vector<64x128xf32> -> vector<64x128xf32>
    %42 = arith.addf %36, %41 : vector<64x128xf32>
    %c1_61 = arith.constant 1 : index
    %c0_62 = arith.constant 0 : index
    %c0_63 = arith.constant 0 : index
    %43 = vector.load %arg9[%c1_61, %c0_62, %c0_63] : memref<3x80x32xf32, #tpu.memory_space<vmem>>, vector<1x64x32xf32>
    %44 = vector.shape_cast %43 : vector<1x64x32xf32> to vector<64x32xf32>
    %c1_64 = arith.constant 1 : index
    %c0_65 = arith.constant 0 : index
    %c0_66 = arith.constant 0 : index
    %45 = vector.load %arg2[%c1_64, %c0_65, %c0_66] : memref<9x32x128xf32, #tpu.memory_space<vmem>>, vector<1x32x128xf32>
    %46 = vector.shape_cast %45 : vector<1x32x128xf32> to vector<32x128xf32>
    %cst_67 = arith.constant dense<0.000000e+00> : vector<64x128xf32>
    %47 = tpu.matmul %44, %46, %cst_67 {dimension_numbers = #tpu.dot_dimension_numbers<[1], [0], [0], [1], [0, 0, 1, 1], [], []>} : vector<64x32xf32>, vector<32x128xf32>, vector<64x128xf32> -> vector<64x128xf32>
    %48 = arith.addf %42, %47 : vector<64x128xf32>
    %c2_68 = arith.constant 2 : index
    %c0_69 = arith.constant 0 : index
    %c0_70 = arith.constant 0 : index
    %49 = vector.load %arg9[%c2_68, %c0_69, %c0_70] : memref<3x80x32xf32, #tpu.memory_space<vmem>>, vector<1x64x32xf32>
    %50 = vector.shape_cast %49 : vector<1x64x32xf32> to vector<64x32xf32>
    %c2_71 = arith.constant 2 : index
    %c0_72 = arith.constant 0 : index
    %c0_73 = arith.constant 0 : index
    %51 = vector.load %arg2[%c2_71, %c0_72, %c0_73] : memref<9x32x128xf32, #tpu.memory_space<vmem>>, vector<1x32x128xf32>
    %52 = vector.shape_cast %51 : vector<1x32x128xf32> to vector<32x128xf32>
    %cst_74 = arith.constant dense<0.000000e+00> : vector<64x128xf32>
    %53 = tpu.matmul %50, %52, %cst_74 {dimension_numbers = #tpu.dot_dimension_numbers<[1], [0], [0], [1], [0, 0, 1, 1], [], []>} : vector<64x32xf32>, vector<32x128xf32>, vector<64x128xf32> -> vector<64x128xf32>
    %54 = arith.addf %48, %53 : vector<64x128xf32>
    %c0_75 = arith.constant 0 : index
    %c8 = arith.constant 8 : index
    %c0_76 = arith.constant 0 : index
    %55 = vector.load %arg9[%c0_75, %c8, %c0_76] : memref<3x80x32xf32, #tpu.memory_space<vmem>>, vector<1x64x32xf32>
    %56 = vector.shape_cast %55 : vector<1x64x32xf32> to vector<64x32xf32>
    %c3 = arith.constant 3 : index
    %c0_77 = arith.constant 0 : index
    %c0_78 = arith.constant 0 : index
    %57 = vector.load %arg2[%c3, %c0_77, %c0_78] : memref<9x32x128xf32, #tpu.memory_space<vmem>>, vector<1x32x128xf32>
    %58 = vector.shape_cast %57 : vector<1x32x128xf32> to vector<32x128xf32>
    %cst_79 = arith.constant dense<0.000000e+00> : vector<64x128xf32>
    %59 = tpu.matmul %56, %58, %cst_79 {dimension_numbers = #tpu.dot_dimension_numbers<[1], [0], [0], [1], [0, 0, 1, 1], [], []>} : vector<64x32xf32>, vector<32x128xf32>, vector<64x128xf32> -> vector<64x128xf32>
    %60 = arith.addf %54, %59 : vector<64x128xf32>
    %c1_80 = arith.constant 1 : index
    %c8_81 = arith.constant 8 : index
    %c0_82 = arith.constant 0 : index
    %61 = vector.load %arg9[%c1_80, %c8_81, %c0_82] : memref<3x80x32xf32, #tpu.memory_space<vmem>>, vector<1x64x32xf32>
    %62 = vector.shape_cast %61 : vector<1x64x32xf32> to vector<64x32xf32>
    %c4 = arith.constant 4 : index
    %c0_83 = arith.constant 0 : index
    %c0_84 = arith.constant 0 : index
    %63 = vector.load %arg2[%c4, %c0_83, %c0_84] : memref<9x32x128xf32, #tpu.memory_space<vmem>>, vector<1x32x128xf32>
    %64 = vector.shape_cast %63 : vector<1x32x128xf32> to vector<32x128xf32>
    %cst_85 = arith.constant dense<0.000000e+00> : vector<64x128xf32>
    %65 = tpu.matmul %62, %64, %cst_85 {dimension_numbers = #tpu.dot_dimension_numbers<[1], [0], [0], [1], [0, 0, 1, 1], [], []>} : vector<64x32xf32>, vector<32x128xf32>, vector<64x128xf32> -> vector<64x128xf32>
    %66 = arith.addf %60, %65 : vector<64x128xf32>
    %c2_86 = arith.constant 2 : index
    %c8_87 = arith.constant 8 : index
    %c0_88 = arith.constant 0 : index
    %67 = vector.load %arg9[%c2_86, %c8_87, %c0_88] : memref<3x80x32xf32, #tpu.memory_space<vmem>>, vector<1x64x32xf32>
    %68 = vector.shape_cast %67 : vector<1x64x32xf32> to vector<64x32xf32>
    %c5 = arith.constant 5 : index
    %c0_89 = arith.constant 0 : index
    %c0_90 = arith.constant 0 : index
    %69 = vector.load %arg2[%c5, %c0_89, %c0_90] : memref<9x32x128xf32, #tpu.memory_space<vmem>>, vector<1x32x128xf32>
    %70 = vector.shape_cast %69 : vector<1x32x128xf32> to vector<32x128xf32>
    %cst_91 = arith.constant dense<0.000000e+00> : vector<64x128xf32>
    %71 = tpu.matmul %68, %70, %cst_91 {dimension_numbers = #tpu.dot_dimension_numbers<[1], [0], [0], [1], [0, 0, 1, 1], [], []>} : vector<64x32xf32>, vector<32x128xf32>, vector<64x128xf32> -> vector<64x128xf32>
    %72 = arith.addf %66, %71 : vector<64x128xf32>
    %c0_92 = arith.constant 0 : index
    %c16 = arith.constant 16 : index
    %c0_93 = arith.constant 0 : index
    %73 = vector.load %arg9[%c0_92, %c16, %c0_93] : memref<3x80x32xf32, #tpu.memory_space<vmem>>, vector<1x64x32xf32>
    %74 = vector.shape_cast %73 : vector<1x64x32xf32> to vector<64x32xf32>
    %c6 = arith.constant 6 : index
    %c0_94 = arith.constant 0 : index
    %c0_95 = arith.constant 0 : index
    %75 = vector.load %arg2[%c6, %c0_94, %c0_95] : memref<9x32x128xf32, #tpu.memory_space<vmem>>, vector<1x32x128xf32>
    %76 = vector.shape_cast %75 : vector<1x32x128xf32> to vector<32x128xf32>
    %cst_96 = arith.constant dense<0.000000e+00> : vector<64x128xf32>
    %77 = tpu.matmul %74, %76, %cst_96 {dimension_numbers = #tpu.dot_dimension_numbers<[1], [0], [0], [1], [0, 0, 1, 1], [], []>} : vector<64x32xf32>, vector<32x128xf32>, vector<64x128xf32> -> vector<64x128xf32>
    %78 = arith.addf %72, %77 : vector<64x128xf32>
    %c1_97 = arith.constant 1 : index
    %c16_98 = arith.constant 16 : index
    %c0_99 = arith.constant 0 : index
    %79 = vector.load %arg9[%c1_97, %c16_98, %c0_99] : memref<3x80x32xf32, #tpu.memory_space<vmem>>, vector<1x64x32xf32>
    %80 = vector.shape_cast %79 : vector<1x64x32xf32> to vector<64x32xf32>
    %c7 = arith.constant 7 : index
    %c0_100 = arith.constant 0 : index
    %c0_101 = arith.constant 0 : index
    %81 = vector.load %arg2[%c7, %c0_100, %c0_101] : memref<9x32x128xf32, #tpu.memory_space<vmem>>, vector<1x32x128xf32>
    %82 = vector.shape_cast %81 : vector<1x32x128xf32> to vector<32x128xf32>
    %cst_102 = arith.constant dense<0.000000e+00> : vector<64x128xf32>
    %83 = tpu.matmul %80, %82, %cst_102 {dimension_numbers = #tpu.dot_dimension_numbers<[1], [0], [0], [1], [0, 0, 1, 1], [], []>} : vector<64x32xf32>, vector<32x128xf32>, vector<64x128xf32> -> vector<64x128xf32>
    %84 = arith.addf %78, %83 : vector<64x128xf32>
    %c2_103 = arith.constant 2 : index
    %c16_104 = arith.constant 16 : index
    %c0_105 = arith.constant 0 : index
    %85 = vector.load %arg9[%c2_103, %c16_104, %c0_105] : memref<3x80x32xf32, #tpu.memory_space<vmem>>, vector<1x64x32xf32>
    %86 = vector.shape_cast %85 : vector<1x64x32xf32> to vector<64x32xf32>
    %c8_106 = arith.constant 8 : index
    %c0_107 = arith.constant 0 : index
    %c0_108 = arith.constant 0 : index
    %87 = vector.load %arg2[%c8_106, %c0_107, %c0_108] : memref<9x32x128xf32, #tpu.memory_space<vmem>>, vector<1x32x128xf32>
    %88 = vector.shape_cast %87 : vector<1x32x128xf32> to vector<32x128xf32>
    %cst_109 = arith.constant dense<0.000000e+00> : vector<64x128xf32>
    %89 = tpu.matmul %86, %88, %cst_109 {dimension_numbers = #tpu.dot_dimension_numbers<[1], [0], [0], [1], [0, 0, 1, 1], [], []>} : vector<64x32xf32>, vector<32x128xf32>, vector<64x128xf32> -> vector<64x128xf32>
    %90 = arith.addf %84, %89 : vector<64x128xf32>
    %cst_110 = arith.constant 0.000000e+00 : f32
    %91 = vector.broadcast %cst_110 : f32 to vector<64x128xf32>
    %92 = arith.maximumf %90, %91 : vector<64x128xf32>
    %93 = vector.shape_cast %92 : vector<64x128xf32> to vector<8x8x128xf32>
    %c1_111 = arith.constant 1 : index
    %c1_112 = arith.constant 1 : index
    %c0_113 = arith.constant 0 : index
    %94 = vector.load %arg8[%c1_111, %c1_112, %c0_113] : memref<10x10x128xf32, #tpu.memory_space<vmem>>, vector<8x8x128xf32>
    tpu.vector_store %arg8[%c1_111, %c1_112, %c0_113], %93 {strides = array<i32>} : memref<10x10x128xf32, #tpu.memory_space<vmem>>, vector<8x8x128xf32>,
    %c0_114 = arith.constant 0 : index
    %c0_115 = arith.constant 0 : index
    %c0_116 = arith.constant 0 : index
    %95 = vector.load %arg8[%c0_114, %c0_115, %c0_116] : memref<10x10x128xf32, #tpu.memory_space<vmem>>, vector<10x8x128xf32>
    %96 = vector.shape_cast %95 : vector<10x8x128xf32> to vector<80x128xf32>
    %c0_117 = arith.constant 0 : index
    %c0_118 = arith.constant 0 : index
    %c0_119 = arith.constant 0 : index
    %97 = vector.load %arg10[%c0_117, %c0_118, %c0_119] : memref<3x80x128xf32, #tpu.memory_space<vmem>>, vector<1x80x128xf32>
    %98 = vector.shape_cast %97 : vector<1x80x128xf32> to vector<80x128xf32>
    %99 = vector.shape_cast %96 : vector<80x128xf32> to vector<1x80x128xf32>
    tpu.vector_store %arg10[%c0_117, %c0_118, %c0_119], %99 {strides = array<i32>} : memref<3x80x128xf32, #tpu.memory_space<vmem>>, vector<1x80x128xf32>,
    %c0_120 = arith.constant 0 : index
    %c1_121 = arith.constant 1 : index
    %c0_122 = arith.constant 0 : index
    %100 = vector.load %arg8[%c0_120, %c1_121, %c0_122] : memref<10x10x128xf32, #tpu.memory_space<vmem>>, vector<10x8x128xf32>
    %101 = vector.shape_cast %100 : vector<10x8x128xf32> to vector<80x128xf32>
    %c1_123 = arith.constant 1 : index
    %c0_124 = arith.constant 0 : index
    %c0_125 = arith.constant 0 : index
    %102 = vector.load %arg10[%c1_123, %c0_124, %c0_125] : memref<3x80x128xf32, #tpu.memory_space<vmem>>, vector<1x80x128xf32>
    %103 = vector.shape_cast %102 : vector<1x80x128xf32> to vector<80x128xf32>
    %104 = vector.shape_cast %101 : vector<80x128xf32> to vector<1x80x128xf32>
    tpu.vector_store %arg10[%c1_123, %c0_124, %c0_125], %104 {strides = array<i32>} : memref<3x80x128xf32, #tpu.memory_space<vmem>>, vector<1x80x128xf32>,
    %c0_126 = arith.constant 0 : index
    %c2_127 = arith.constant 2 : index
    %c0_128 = arith.constant 0 : index
    %105 = vector.load %arg8[%c0_126, %c2_127, %c0_128] : memref<10x10x128xf32, #tpu.memory_space<vmem>>, vector<10x8x128xf32>
    %106 = vector.shape_cast %105 : vector<10x8x128xf32> to vector<80x128xf32>
    %c2_129 = arith.constant 2 : index
    %c0_130 = arith.constant 0 : index
    %c0_131 = arith.constant 0 : index
    %107 = vector.load %arg10[%c2_129, %c0_130, %c0_131] : memref<3x80x128xf32, #tpu.memory_space<vmem>>, vector<1x80x128xf32>
    %108 = vector.shape_cast %107 : vector<1x80x128xf32> to vector<80x128xf32>
    %109 = vector.shape_cast %106 : vector<80x128xf32> to vector<1x80x128xf32>
    tpu.vector_store %arg10[%c2_129, %c0_130, %c0_131], %109 {strides = array<i32>} : memref<3x80x128xf32, #tpu.memory_space<vmem>>, vector<1x80x128xf32>,
    %c0_132 = arith.constant 0 : index
    %c0_133 = arith.constant 0 : index
    %110 = vector.load %arg5[%c0_132, %c0_133] : memref<1x128xf32, #tpu.memory_space<vmem>>, vector<1x128xf32>
    %111 = vector.shape_cast %110 : vector<1x128xf32> to vector<1x128xf32>
    %112 = vector.broadcast %111 : vector<1x128xf32> to vector<64x128xf32>
    %c0_134 = arith.constant 0 : index
    %c0_135 = arith.constant 0 : index
    %c0_136 = arith.constant 0 : index
    %113 = vector.load %arg10[%c0_134, %c0_135, %c0_136] : memref<3x80x128xf32, #tpu.memory_space<vmem>>, vector<1x64x128xf32>
    %114 = vector.shape_cast %113 : vector<1x64x128xf32> to vector<64x128xf32>
    %c0_137 = arith.constant 0 : index
    %c0_138 = arith.constant 0 : index
    %c0_139 = arith.constant 0 : index
    %115 = vector.load %arg4[%c0_137, %c0_138, %c0_139] : memref<9x128x128xf32, #tpu.memory_space<vmem>>, vector<1x128x128xf32>
    %116 = vector.shape_cast %115 : vector<1x128x128xf32> to vector<128x128xf32>
    %cst_140 = arith.constant dense<0.000000e+00> : vector<64x128xf32>
    %117 = tpu.matmul %114, %116, %cst_140 {dimension_numbers = #tpu.dot_dimension_numbers<[1], [0], [0], [1], [0, 0, 1, 1], [], []>} : vector<64x128xf32>, vector<128x128xf32>, vector<64x128xf32> -> vector<64x128xf32>
    %118 = arith.addf %112, %117 : vector<64x128xf32>
    %c1_141 = arith.constant 1 : index
    %c0_142 = arith.constant 0 : index
    %c0_143 = arith.constant 0 : index
    %119 = vector.load %arg10[%c1_141, %c0_142, %c0_143] : memref<3x80x128xf32, #tpu.memory_space<vmem>>, vector<1x64x128xf32>
    %120 = vector.shape_cast %119 : vector<1x64x128xf32> to vector<64x128xf32>
    %c1_144 = arith.constant 1 : index
    %c0_145 = arith.constant 0 : index
    %c0_146 = arith.constant 0 : index
    %121 = vector.load %arg4[%c1_144, %c0_145, %c0_146] : memref<9x128x128xf32, #tpu.memory_space<vmem>>, vector<1x128x128xf32>
    %122 = vector.shape_cast %121 : vector<1x128x128xf32> to vector<128x128xf32>
    %cst_147 = arith.constant dense<0.000000e+00> : vector<64x128xf32>
    %123 = tpu.matmul %120, %122, %cst_147 {dimension_numbers = #tpu.dot_dimension_numbers<[1], [0], [0], [1], [0, 0, 1, 1], [], []>} : vector<64x128xf32>, vector<128x128xf32>, vector<64x128xf32> -> vector<64x128xf32>
    %124 = arith.addf %118, %123 : vector<64x128xf32>
    %c2_148 = arith.constant 2 : index
    %c0_149 = arith.constant 0 : index
    %c0_150 = arith.constant 0 : index
    %125 = vector.load %arg10[%c2_148, %c0_149, %c0_150] : memref<3x80x128xf32, #tpu.memory_space<vmem>>, vector<1x64x128xf32>
    %126 = vector.shape_cast %125 : vector<1x64x128xf32> to vector<64x128xf32>
    %c2_151 = arith.constant 2 : index
    %c0_152 = arith.constant 0 : index
    %c0_153 = arith.constant 0 : index
    %127 = vector.load %arg4[%c2_151, %c0_152, %c0_153] : memref<9x128x128xf32, #tpu.memory_space<vmem>>, vector<1x128x128xf32>
    %128 = vector.shape_cast %127 : vector<1x128x128xf32> to vector<128x128xf32>
    %cst_154 = arith.constant dense<0.000000e+00> : vector<64x128xf32>
    %129 = tpu.matmul %126, %128, %cst_154 {dimension_numbers = #tpu.dot_dimension_numbers<[1], [0], [0], [1], [0, 0, 1, 1], [], []>} : vector<64x128xf32>, vector<128x128xf32>, vector<64x128xf32> -> vector<64x128xf32>
    %130 = arith.addf %124, %129 : vector<64x128xf32>
    %c0_155 = arith.constant 0 : index
    %c8_156 = arith.constant 8 : index
    %c0_157 = arith.constant 0 : index
    %131 = vector.load %arg10[%c0_155, %c8_156, %c0_157] : memref<3x80x128xf32, #tpu.memory_space<vmem>>, vector<1x64x128xf32>
    %132 = vector.shape_cast %131 : vector<1x64x128xf32> to vector<64x128xf32>
    %c3_158 = arith.constant 3 : index
    %c0_159 = arith.constant 0 : index
    %c0_160 = arith.constant 0 : index
    %133 = vector.load %arg4[%c3_158, %c0_159, %c0_160] : memref<9x128x128xf32, #tpu.memory_space<vmem>>, vector<1x128x128xf32>
    %134 = vector.shape_cast %133 : vector<1x128x128xf32> to vector<128x128xf32>
    %cst_161 = arith.constant dense<0.000000e+00> : vector<64x128xf32>
    %135 = tpu.matmul %132, %134, %cst_161 {dimension_numbers = #tpu.dot_dimension_numbers<[1], [0], [0], [1], [0, 0, 1, 1], [], []>} : vector<64x128xf32>, vector<128x128xf32>, vector<64x128xf32> -> vector<64x128xf32>
    %136 = arith.addf %130, %135 : vector<64x128xf32>
    %c1_162 = arith.constant 1 : index
    %c8_163 = arith.constant 8 : index
    %c0_164 = arith.constant 0 : index
    %137 = vector.load %arg10[%c1_162, %c8_163, %c0_164] : memref<3x80x128xf32, #tpu.memory_space<vmem>>, vector<1x64x128xf32>
    %138 = vector.shape_cast %137 : vector<1x64x128xf32> to vector<64x128xf32>
    %c4_165 = arith.constant 4 : index
    %c0_166 = arith.constant 0 : index
    %c0_167 = arith.constant 0 : index
    %139 = vector.load %arg4[%c4_165, %c0_166, %c0_167] : memref<9x128x128xf32, #tpu.memory_space<vmem>>, vector<1x128x128xf32>
    %140 = vector.shape_cast %139 : vector<1x128x128xf32> to vector<128x128xf32>
    %cst_168 = arith.constant dense<0.000000e+00> : vector<64x128xf32>
    %141 = tpu.matmul %138, %140, %cst_168 {dimension_numbers = #tpu.dot_dimension_numbers<[1], [0], [0], [1], [0, 0, 1, 1], [], []>} : vector<64x128xf32>, vector<128x128xf32>, vector<64x128xf32> -> vector<64x128xf32>
    %142 = arith.addf %136, %141 : vector<64x128xf32>
    %c2_169 = arith.constant 2 : index
    %c8_170 = arith.constant 8 : index
    %c0_171 = arith.constant 0 : index
    %143 = vector.load %arg10[%c2_169, %c8_170, %c0_171] : memref<3x80x128xf32, #tpu.memory_space<vmem>>, vector<1x64x128xf32>
    %144 = vector.shape_cast %143 : vector<1x64x128xf32> to vector<64x128xf32>
    %c5_172 = arith.constant 5 : index
    %c0_173 = arith.constant 0 : index
    %c0_174 = arith.constant 0 : index
    %145 = vector.load %arg4[%c5_172, %c0_173, %c0_174] : memref<9x128x128xf32, #tpu.memory_space<vmem>>, vector<1x128x128xf32>
    %146 = vector.shape_cast %145 : vector<1x128x128xf32> to vector<128x128xf32>
    %cst_175 = arith.constant dense<0.000000e+00> : vector<64x128xf32>
    %147 = tpu.matmul %144, %146, %cst_175 {dimension_numbers = #tpu.dot_dimension_numbers<[1], [0], [0], [1], [0, 0, 1, 1], [], []>} : vector<64x128xf32>, vector<128x128xf32>, vector<64x128xf32> -> vector<64x128xf32>
    %148 = arith.addf %142, %147 : vector<64x128xf32>
    %c0_176 = arith.constant 0 : index
    %c16_177 = arith.constant 16 : index
    %c0_178 = arith.constant 0 : index
    %149 = vector.load %arg10[%c0_176, %c16_177, %c0_178] : memref<3x80x128xf32, #tpu.memory_space<vmem>>, vector<1x64x128xf32>
    %150 = vector.shape_cast %149 : vector<1x64x128xf32> to vector<64x128xf32>
    %c6_179 = arith.constant 6 : index
    %c0_180 = arith.constant 0 : index
    %c0_181 = arith.constant 0 : index
    %151 = vector.load %arg4[%c6_179, %c0_180, %c0_181] : memref<9x128x128xf32, #tpu.memory_space<vmem>>, vector<1x128x128xf32>
    %152 = vector.shape_cast %151 : vector<1x128x128xf32> to vector<128x128xf32>
    %cst_182 = arith.constant dense<0.000000e+00> : vector<64x128xf32>
    %153 = tpu.matmul %150, %152, %cst_182 {dimension_numbers = #tpu.dot_dimension_numbers<[1], [0], [0], [1], [0, 0, 1, 1], [], []>} : vector<64x128xf32>, vector<128x128xf32>, vector<64x128xf32> -> vector<64x128xf32>
    %154 = arith.addf %148, %153 : vector<64x128xf32>
    %c1_183 = arith.constant 1 : index
    %c16_184 = arith.constant 16 : index
    %c0_185 = arith.constant 0 : index
    %155 = vector.load %arg10[%c1_183, %c16_184, %c0_185] : memref<3x80x128xf32, #tpu.memory_space<vmem>>, vector<1x64x128xf32>
    %156 = vector.shape_cast %155 : vector<1x64x128xf32> to vector<64x128xf32>
    %c7_186 = arith.constant 7 : index
    %c0_187 = arith.constant 0 : index
    %c0_188 = arith.constant 0 : index
    %157 = vector.load %arg4[%c7_186, %c0_187, %c0_188] : memref<9x128x128xf32, #tpu.memory_space<vmem>>, vector<1x128x128xf32>
    %158 = vector.shape_cast %157 : vector<1x128x128xf32> to vector<128x128xf32>
    %cst_189 = arith.constant dense<0.000000e+00> : vector<64x128xf32>
    %159 = tpu.matmul %156, %158, %cst_189 {dimension_numbers = #tpu.dot_dimension_numbers<[1], [0], [0], [1], [0, 0, 1, 1], [], []>} : vector<64x128xf32>, vector<128x128xf32>, vector<64x128xf32> -> vector<64x128xf32>
    %160 = arith.addf %154, %159 : vector<64x128xf32>
    %c2_190 = arith.constant 2 : index
    %c16_191 = arith.constant 16 : index
    %c0_192 = arith.constant 0 : index
    %161 = vector.load %arg10[%c2_190, %c16_191, %c0_192] : memref<3x80x128xf32, #tpu.memory_space<vmem>>, vector<1x64x128xf32>
    %162 = vector.shape_cast %161 : vector<1x64x128xf32> to vector<64x128xf32>
    %c8_193 = arith.constant 8 : index
    %c0_194 = arith.constant 0 : index
    %c0_195 = arith.constant 0 : index
    %163 = vector.load %arg4[%c8_193, %c0_194, %c0_195] : memref<9x128x128xf32, #tpu.memory_space<vmem>>, vector<1x128x128xf32>
    %164 = vector.shape_cast %163 : vector<1x128x128xf32> to vector<128x128xf32>
    %cst_196 = arith.constant dense<0.000000e+00> : vector<64x128xf32>
    %165 = tpu.matmul %162, %164, %cst_196 {dimension_numbers = #tpu.dot_dimension_numbers<[1], [0], [0], [1], [0, 0, 1, 1], [], []>} : vector<64x128xf32>, vector<128x128xf32>, vector<64x128xf32> -> vector<64x128xf32>
    %166 = arith.addf %160, %165 : vector<64x128xf32>
    %cst_197 = arith.constant 0.000000e+00 : f32
    %167 = vector.broadcast %cst_197 : f32 to vector<64x128xf32>
    %168 = arith.maximumf %166, %167 : vector<64x128xf32>
    %c0_198 = arith.constant 0 : index
    %c0_199 = arith.constant 0 : index
    %c0_200 = arith.constant 0 : index
    %169 = vector.load %arg6[%c0_198, %c0_199, %c0_200] : memref<1x64x128xf32, #tpu.memory_space<vmem>>, vector<1x64x128xf32>
    %170 = vector.shape_cast %169 : vector<1x64x128xf32> to vector<64x128xf32>
    %171 = vector.shape_cast %168 : vector<64x128xf32> to vector<1x64x128xf32>
    tpu.vector_store %arg6[%c0_198, %c0_199, %c0_200], %171 {strides = array<i32>} : memref<1x64x128xf32, #tpu.memory_space<vmem>>, vector<1x64x128xf32>,
    return
  }
  func.func @transform_0(%arg0: i32) -> (i32, i32, i32, i32) {
    %c0_i32 = arith.constant 0 : i32
    %c0_i32_0 = arith.constant 0 : i32
    %c0_i32_1 = arith.constant 0 : i32
    %c0_i32_2 = arith.constant 0 : i32
    return %arg0, %c0_i32, %c0_i32_0, %c0_i32_1 : i32, i32, i32, i32
  }
  func.func @transform_1(%arg0: i32) -> (i32, i32, i32) {
    %c0_i32 = arith.constant 0 : i32
    %c0_i32_0 = arith.constant 0 : i32
    %c0_i32_1 = arith.constant 0 : i32
    %c0_i32_2 = arith.constant 0 : i32
    return %c0_i32, %c0_i32_0, %c0_i32_1 : i32, i32, i32
  }
  func.func @transform_2(%arg0: i32) -> (i32, i32) {
    %c0_i32 = arith.constant 0 : i32
    %c0_i32_0 = arith.constant 0 : i32
    %c0_i32_1 = arith.constant 0 : i32
    return %c0_i32, %c0_i32_0 : i32, i32
  }
  func.func @transform_3(%arg0: i32) -> (i32, i32, i32) {
    %c0_i32 = arith.constant 0 : i32
    %c0_i32_0 = arith.constant 0 : i32
    %c0_i32_1 = arith.constant 0 : i32
    %c0_i32_2 = arith.constant 0 : i32
    return %c0_i32, %c0_i32_0, %c0_i32_1 : i32, i32, i32
  }
  func.func @transform_4(%arg0: i32) -> (i32, i32) {
    %c0_i32 = arith.constant 0 : i32
    %c0_i32_0 = arith.constant 0 : i32
    %c0_i32_1 = arith.constant 0 : i32
    return %c0_i32, %c0_i32_0 : i32, i32
  }
  func.func @transform_5(%arg0: i32) -> (i32, i32, i32) {
    %c0_i32 = arith.constant 0 : i32
    %c0_i32_0 = arith.constant 0 : i32
    %c0_i32_1 = arith.constant 0 : i32
    return %arg0, %c0_i32, %c0_i32_0 : i32, i32, i32
  }
}

</mosaic_0001>

<llo_original>
// kernel: tpu_custom_call.1
$region0: #{tpu_custom_call.1}
  #allocation0 [shape = 'u32[]', space=smem, size = 0x4, offset = 0x4, fixed_abs, tag = 'smem constant byte address 0x4 - core index']
  #allocation1 [shape = 'u32[144,128]{1,0:T(1,128)}', space=vmem, size = 0x12000, scoped, tag = 'internal scratch']
  #allocation2 [shape = 'f32[10,10,32]{2,1,0:T(8,128)}', space=vmem, size = 0x14000, scoped, tag = 'scratch operand']
  #allocation3 [shape = 'f32[10,10,128]{2,1,0:T(8,128)}', space=vmem, size = 0x14000, scoped, tag = 'scratch operand']
  #allocation4 [shape = 'f32[3,80,32]{2,1,0:T(8,128)}', space=vmem, size = 0x1e000, scoped, tag = 'scratch operand']
  #allocation5 [shape = 'f32[3,80,128]{2,1,0:T(8,128)}', space=vmem, size = 0x1e000, scoped, tag = 'scratch operand']
  %s0 = inlined_call_operand.hbm [shape: f32[2,8,8,32], index: 0, kind: input, shape index: {}]
  %s1 = inlined_call_operand.hbm [shape: f32[9,32,128], index: 1, kind: input, shape index: {}]
  %s2 = inlined_call_operand.vmem [shape: f32[1,128], index: 2, kind: input, shape index: {}]
  %s3 = inlined_call_operand.hbm [shape: f32[9,128,128], index: 3, kind: input, shape index: {}]
  %s4 = inlined_call_operand.vmem [shape: f32[1,128], index: 4, kind: input, shape index: {}]
  %s5 = inlined_call_operand.hbm [shape: f32[2,64,128], index: 5, kind: output, shape index: {}]
  %s6 = sld [smem:[#allocation0]]
  $region65: #{tpu_custom_call.1} parent=0
    _
  %s8 = ssub.s32 1, %s6
  %s9 = scalar_select 0, %s8, %s6
  $region1: #{tpu_custom_call.1} parent=0
    #allocation6 [shape = 'u8[65536]{0}', space=vmem, size = 0x10000, scoped, tag = 'input window, operand 0']
    #allocation7 [shape = 's32[2]{0}', space=sflag, size = 0x8, scoped, tag = 'scoped memory for tpu_custom_call.1']
    #allocation8 [shape = 's32[2]{0}', space=sflag, size = 0x8, scoped, tag = 'scoped memory for tpu_custom_call.1']
    #allocation9 [shape = 'u8[147456]{0}', space=vmem, size = 0x24000, scoped, tag = 'input window, operand 1, single buffered']
    #allocation10 [shape = 's32[1]{0}', space=sflag, size = 0x4, scoped, tag = 'scoped memory for tpu_custom_call.1']
    #allocation11 [shape = 'u8[589824]{0}', space=vmem, size = 0x90000, scoped, tag = 'input window, operand 3, single buffered']
    #allocation12 [shape = 'u8[65536]{0}', space=vmem, size = 0x10000, scoped, tag = 'output window, operand 0']
    %10 = vsyncpa [#allocation7], 0
    %s11 = scalar_lea.sflag [#allocation7], 1
    %12 = vsyncpa %s11, 0
    %13 = vsyncpa [#allocation10], 0
    %14 = vsyncpa [#allocation8], 0
    %s15 = scalar_lea.sflag [#allocation8], 1
    %16 = vsyncpa %s15, 0
    loop: start=0, step=1, limit=4
    $region2: #{tpu_custom_call.1} parent=1 // loop_pre_header
      _
    $region3: #{tpu_custom_call.1} parent=1 // loop_header
      %s18 = sphi 0, %s22
      %p19 = scmp.ge.s32.totalorder %s18, 4
      %s28 = sphi 0, %s30
      %s31 = sphi 0, %s28
      %s32 = sphi 0, %s31
      %s48 = sphi 0, %s32
      %s52 = sphi 0, %s52
      %s54 = sphi 0, %s52
      %s55 = sphi 0, %s54
      %s69 = sphi 0, %s55
      %s73 = sphi 0, %s73
      %s75 = sphi 0, %s73
      %s76 = sphi 0, %s75
      %s90 = sphi 0, %s76
      %s94 = sphi 0, %s94
      %s96 = sphi 0, %s94
      %s97 = sphi 0, %s96
      %s111 = sphi 0, %s97
      %s115 = sphi 0, %s115
      %s117 = sphi 0, %s115
      %s118 = sphi 0, %s117
      %s132 = sphi 0, %s118
      %s138 = sphi 0, %s140
      %s141 = sphi 0, %s138
      %s142 = sphi 0, %s141
      %s158 = sphi 0, %s142
    $region4: #{tpu_custom_call.1} parent=1 // loop_header_branch
      %21 = sbr.rel (%p19) target = $region8
    $region5: #{tpu_custom_call.1} parent=1 // loop_body
      %s23 = ssub.s32 %s18, 1
      %s24 = ssub.s32 %s18, 2
      %s25 = sadd.s32 %s18, 1
      %s26 = ssub.s32 %s18, %s25
      %p27 = scmp.eq.s32.totalorder %s26, 0
      %s29 = sadd.s32 %s28, 1
      %s30 = scalar_select %p27, %s28, %s29
      %p33 = pneg %p27
      %p34 = scmp.eq.s32.totalorder %s18, 1
      %p35 = por %p33, %p34
      %p36 = scmp.ne.s32.totalorder %s28, %s31
      %p37 = scmp.eq.s32.totalorder %s18, 0
      %p38 = por %p36, %p37
      %p39 = scmp.ne.s32.totalorder %s28, %s31
      %p40 = scmp.eq.s32.totalorder %s23, 1
      %p41 = por %p39, %p40
      %p42 = scmp.ne.s32.totalorder %s31, %s32
      %p43 = scmp.eq.s32.totalorder %s23, 0
      %p44 = por %p42, %p43
      %p45 = scmp.ne.s32.totalorder %s31, %s32
      %p46 = scmp.eq.s32.totalorder %s24, 1
      %p47 = por %p45, %p46
      %p49 = scmp.ne.s32.totalorder %s32, %s48
      %p50 = scmp.eq.s32.totalorder %s24, 0
      %p51 = por %p49, %p50
      %s53 = sadd.s32 %s52, 1
      %p56 = scmp.eq.s32.totalorder %s18, 1
      %p57 = scmp.ne.s32.totalorder %s52, %s54
      %p58 = scmp.eq.s32.totalorder %s18, 0
      %p59 = por %p57, %p58
      %p60 = scmp.ne.s32.totalorder %s52, %s54
      %p61 = scmp.eq.s32.totalorder %s23, 1
      %p62 = por %p60, %p61
      %p63 = scmp.ne.s32.totalorder %s54, %s55
      %p64 = scmp.eq.s32.totalorder %s23, 0
      %p65 = por %p63, %p64
      %p66 = scmp.ne.s32.totalorder %s54, %s55
      %p67 = scmp.eq.s32.totalorder %s24, 1
      %p68 = por %p66, %p67
      %p70 = scmp.ne.s32.totalorder %s55, %s69
      %p71 = scmp.eq.s32.totalorder %s24, 0
      %p72 = por %p70, %p71
      %s74 = sadd.s32 %s73, 1
      %p77 = scmp.eq.s32.totalorder %s18, 1
      %p78 = scmp.ne.s32.totalorder %s73, %s75
      %p79 = scmp.eq.s32.totalorder %s18, 0
      %p80 = por %p78, %p79
      %p81 = scmp.ne.s32.totalorder %s73, %s75
      %p82 = scmp.eq.s32.totalorder %s23, 1
      %p83 = por %p81, %p82
      %p84 = scmp.ne.s32.totalorder %s75, %s76
      %p85 = scmp.eq.s32.totalorder %s23, 0
      %p86 = por %p84, %p85
      %p87 = scmp.ne.s32.totalorder %s75, %s76
      %p88 = scmp.eq.s32.totalorder %s24, 1
      %p89 = por %p87, %p88
      %p91 = scmp.ne.s32.totalorder %s76, %s90
      %p92 = scmp.eq.s32.totalorder %s24, 0
      %p93 = por %p91, %p92
      %s95 = sadd.s32 %s94, 1
      %p98 = scmp.eq.s32.totalorder %s18, 1
      %p99 = scmp.ne.s32.totalorder %s94, %s96
      %p100 = scmp.eq.s32.totalorder %s18, 0
      %p101 = por %p99, %p100
      %p102 = scmp.ne.s32.totalorder %s94, %s96
      %p103 = scmp.eq.s32.totalorder %s23, 1
      %p104 = por %p102, %p103
      %p105 = scmp.ne.s32.totalorder %s96, %s97
      %p106 = scmp.eq.s32.totalorder %s23, 0
      %p107 = por %p105, %p106
      %p108 = scmp.ne.s32.totalorder %s96, %s97
      %p109 = scmp.eq.s32.totalorder %s24, 1
      %p110 = por %p108, %p109
      %p112 = scmp.ne.s32.totalorder %s97, %s111
      %p113 = scmp.eq.s32.totalorder %s24, 0
      %p114 = por %p112, %p113
      %s116 = sadd.s32 %s115, 1
      %p119 = scmp.eq.s32.totalorder %s18, 1
      %p120 = scmp.ne.s32.totalorder %s115, %s117
      %p121 = scmp.eq.s32.totalorder %s18, 0
      %p122 = por %p120, %p121
      %p123 = scmp.ne.s32.totalorder %s115, %s117
      %p124 = scmp.eq.s32.totalorder %s23, 1
      %p125 = por %p123, %p124
      %p126 = scmp.ne.s32.totalorder %s117, %s118
      %p127 = scmp.eq.s32.totalorder %s23, 0
      %p128 = por %p126, %p127
      %p129 = scmp.ne.s32.totalorder %s117, %s118
      %p130 = scmp.eq.s32.totalorder %s24, 1
      %p131 = por %p129, %p130
      %p133 = scmp.ne.s32.totalorder %s118, %s132
      %p134 = scmp.eq.s32.totalorder %s24, 0
      %p135 = por %p133, %p134
      %s136 = ssub.s32 %s18, %s25
      %p137 = scmp.eq.s32.totalorder %s136, 0
      %s139 = sadd.s32 %s138, 1
      %s140 = scalar_select %p137, %s138, %s139
      %p143 = pneg %p137
      %p144 = scmp.eq.s32.totalorder %s18, 1
      %p145 = por %p143, %p144
      %p146 = scmp.ne.s32.totalorder %s138, %s141
      %p147 = scmp.eq.s32.totalorder %s18, 0
      %p148 = por %p146, %p147
      %p149 = scmp.ne.s32.totalorder %s138, %s141
      %p150 = scmp.eq.s32.totalorder %s23, 1
      %p151 = por %p149, %p150
      %p152 = scmp.ne.s32.totalorder %s141, %s142
      %p153 = scmp.eq.s32.totalorder %s23, 0
      %p154 = por %p152, %p153
      %p155 = scmp.ne.s32.totalorder %s141, %s142
      %p156 = scmp.eq.s32.totalorder %s24, 1
      %p157 = por %p155, %p156
      %p159 = scmp.ne.s32.totalorder %s142, %s158
      %p160 = scmp.eq.s32.totalorder %s24, 0
      %p161 = por %p159, %p160
      %p162 = scmp.le.s32.totalorder 1, %s18
      %p163 = scmp.lt.s32.totalorder %s18, 3
      %p164 = pnand %p162, %p163
      %p165 = pneg %p164
      // Predicated region
      $region9: #{tpu_custom_call.1} parent=5 // pred_check
        _
      $region10: #{tpu_custom_call.1} parent=5 // pred_check_branch
        %167 = sbr.rel (%p164) target = $region12
      $region11: #{tpu_custom_call.1} parent=5 // pred_region
        %s168 = ssub.s32 %s18, 1
        // Predicated region
        $region13: #{tpu_custom_call.1} parent=11 // pred_check
          %p169 = pneg %p65
        $region14: #{tpu_custom_call.1} parent=11 // pred_check_branch
          %171 = sbr.rel (%p169) target = $region16
        $region15: #{tpu_custom_call.1} parent=11 // pred_region
          %s173 = ssub.s32 4608, 4608
          %174 = vsyncadd [#allocation10], %s173
          %s175 = sshll.u32 [#allocation9], 4
          %s176 = int_to_ptr.vmem [resolvable:$true] %s175
          %181 = dma.hbm_to_vmem [thread:$0]  %s1, 4608, %s176, [#allocation10], 128, 128, 8
        $region16: #{tpu_custom_call.1} parent=11 // pred_fallthru
          _
        // Predicated region
        $region17: #{tpu_custom_call.1} parent=11 // pred_check
          %p182 = pneg %p86
        $region18: #{tpu_custom_call.1} parent=11 // pred_check_branch
          %184 = sbr.rel (%p182) target = $region20
        $region19: #{tpu_custom_call.1} parent=11 // pred_region
          _
        $region20: #{tpu_custom_call.1} parent=11 // pred_fallthru
          _
        // Predicated region
        $region21: #{tpu_custom_call.1} parent=11 // pred_check
          %p185 = pneg %p107
        $region22: #{tpu_custom_call.1} parent=11 // pred_check_branch
          %187 = sbr.rel (%p185) target = $region24
        $region23: #{tpu_custom_call.1} parent=11 // pred_region
          %s189 = ssub.s32 18432, 18432
          %190 = vsyncadd [#allocation10], %s189
          %s191 = sshll.u32 [#allocation11], 4
          %s192 = int_to_ptr.vmem [resolvable:$true] %s191
          %197 = dma.hbm_to_vmem [thread:$0]  %s3, 18432, %s192, [#allocation10], 128, 128, 8
        $region24: #{tpu_custom_call.1} parent=11 // pred_fallthru
          _
        // Predicated region
        $region25: #{tpu_custom_call.1} parent=11 // pred_check
          %p198 = pneg %p128
        $region26: #{tpu_custom_call.1} parent=11 // pred_check_branch
          %200 = sbr.rel (%p198) target = $region28
        $region27: #{tpu_custom_call.1} parent=11 // pred_region
          _
        $region28: #{tpu_custom_call.1} parent=11 // pred_fallthru
          _
      $region12: #{tpu_custom_call.1} parent=5 // pred_fallthru
        _
      %p201 = scmp.lt.s32.totalorder %s18, 2
      // Predicated region
      $region29: #{tpu_custom_call.1} parent=5 // pred_check
        %p202 = pneg %p201
      $region30: #{tpu_custom_call.1} parent=5 // pred_check_branch
        %204 = sbr.rel (%p202) target = $region32
      $region31: #{tpu_custom_call.1} parent=5 // pred_region
        // Predicated region
        $region33: #{tpu_custom_call.1} parent=31 // pred_check
          %p205 = pneg %p38
        $region34: #{tpu_custom_call.1} parent=31 // pred_check_branch
          %207 = sbr.rel (%p205) target = $region36
        $region35: #{tpu_custom_call.1} parent=31 // pred_region
          %s208 = sand.u32 %s28, 1
          %s209 = scalar_lea.sflag [#allocation7], %s208
          %s210 = sand.u32 %s28, 1
          %s211 = smul.addr %s210, 64
          %s212 = scalar_lea.vmem [#allocation6], %s211
          %s214 = ssub.s32 1024, 1024
          %215 = vsyncadd %s209, %s214
          %s216 = smul.addr %s18, 8
          %s217 = smul.addr %s216, 128
          %s218 = scalar_lea.hbm %s0, %s217
          %s219 = sshll.u32 %s212, 4
          %s220 = int_to_ptr.vmem [resolvable:$true] %s219
          %225 = dma.hbm_to_vmem [thread:$0]  %s218, 1024, %s220, %s209, 128, 128, 8
        $region36: #{tpu_custom_call.1} parent=31 // pred_fallthru
          _
      $region32: #{tpu_custom_call.1} parent=5 // pred_fallthru
        _
      %p226 = scmp.le.s32.totalorder 1, %s18
      %p227 = scmp.lt.s32.totalorder %s18, 3
      %p228 = pnand %p226, %p227
      %p229 = pneg %p228
      // Predicated region
      $region37: #{tpu_custom_call.1} parent=5 // pred_check
        _
      $region38: #{tpu_custom_call.1} parent=5 // pred_check_branch
        %231 = sbr.rel (%p228) target = $region40
      $region39: #{tpu_custom_call.1} parent=5 // pred_region
        %s232 = ssub.s32 %s18, 1
        %s233 = sand.u32 %s31, 1
        %s234 = scalar_lea.sflag [#allocation7], %s233
        %s235 = sand.u32 %s31, 1
        %s236 = smul.addr %s235, 64
        %s237 = scalar_lea.vmem [#allocation6], %s236
        // Predicated region
        $region41: #{tpu_custom_call.1} parent=39 // pred_check
          %p238 = pneg %p44
        $region42: #{tpu_custom_call.1} parent=39 // pred_check_branch
          %240 = sbr.rel (%p238) target = $region44
        $region43: #{tpu_custom_call.1} parent=39 // pred_region
          %241 = dma.done %s234, 1024
        $region44: #{tpu_custom_call.1} parent=39 // pred_fallthru
          _
        // Predicated region
        $region45: #{tpu_custom_call.1} parent=39 // pred_check
          %p242 = pneg %p65
        $region46: #{tpu_custom_call.1} parent=39 // pred_check_branch
          %244 = sbr.rel (%p242) target = $region48
        $region47: #{tpu_custom_call.1} parent=39 // pred_region
          %245 = dma.done [#allocation10], 4608
        $region48: #{tpu_custom_call.1} parent=39 // pred_fallthru
          _
        // Predicated region
        $region49: #{tpu_custom_call.1} parent=39 // pred_check
          %p246 = pneg %p107
        $region50: #{tpu_custom_call.1} parent=39 // pred_check_branch
          %248 = sbr.rel (%p246) target = $region52
        $region51: #{tpu_custom_call.1} parent=39 // pred_region
          %249 = dma.done [#allocation10], 18432
        $region52: #{tpu_custom_call.1} parent=39 // pred_fallthru
          _
        %s250 = sand.u32 %s31, 1
        %s251 = scalar_lea.sflag [#allocation7], %s250
        %s252 = sand.u32 %s31, 1
        %s253 = smul.addr %s252, 64
        %s254 = scalar_lea.vmem [#allocation6], %s253
        %p255 = pneg %p44
        %p256 = pneg %p41
        %p257 = pneg %p65
        %p258 = pneg %p62
        %p259 = pneg %p86
        %p260 = pneg %p83
        %p261 = pneg %p107
        %p262 = pneg %p104
        %p263 = pneg %p128
        %p264 = pneg %p125
        %p265 = pneg %p154
        %p266 = pneg %p151
        %s267 = sand.u32 %s141, 1
        %s268 = scalar_lea.sflag [#allocation8], %s267
        %s269 = sand.u32 %s141, 1
        %s270 = smul.addr %s269, 64
        %s271 = scalar_lea.vmem [#allocation12], %s270
        %vm272 = vcmask 261120
        %273 = vst.msk [vmem:[#allocation2] sm:$0xff] %vm272, 0.0
        %vm274 = vcmask 254976
        %275 = vst.msk [vmem:[#allocation2 + $0x8] sm:$0x3] %vm274, 0.0
        %s276 = scalar_lea.vmem [#allocation2], 144
        %277 = vst.msk [vmem:[%s276] sm:$0xff] %vm272, 0.0
        %278 = vst.msk [vmem:[%s276 + $0x8] sm:$0x3] %vm274, 0.0
        %vm279 = vcmask 253952
        %280 = vst.msk [vmem:[#allocation2] sm:$0x1] %vm279, 0.0
        %281 = vst.msk [vmem:[#allocation2 + $0x10] sm:$0x1] %vm279, 0.0
        %282 = vst.msk [vmem:[#allocation2 + $0x20] sm:$0x1] %vm279, 0.0
        %283 = vst.msk [vmem:[#allocation2 + $0x30] sm:$0x1] %vm279, 0.0
        %284 = vst.msk [vmem:[#allocation2 + $0x40] sm:$0x1] %vm279, 0.0
        %285 = vst.msk [vmem:[#allocation2 + $0x50] sm:$0x1] %vm279, 0.0
        %286 = vst.msk [vmem:[#allocation2 + $0x60] sm:$0x1] %vm279, 0.0
        %287 = vst.msk [vmem:[#allocation2 + $0x70] sm:$0x1] %vm279, 0.0
        %288 = vst.msk [vmem:[#allocation2 + $0x80] sm:$0x1] %vm279, 0.0
        %289 = vst.msk [vmem:[#allocation2 + $0x90] sm:$0x1] %vm279, 0.0
        %290 = vst.msk [vmem:[#allocation2 + $0x9] sm:$0x1] %vm279, 0.0
        %291 = vst.msk [vmem:[#allocation2 + $0x19] sm:$0x1] %vm279, 0.0
        %292 = vst.msk [vmem:[#allocation2 + $0x29] sm:$0x1] %vm279, 0.0
        %293 = vst.msk [vmem:[#allocation2 + $0x39] sm:$0x1] %vm279, 0.0
        %294 = vst.msk [vmem:[#allocation2 + $0x49] sm:$0x1] %vm279, 0.0
        %295 = vst.msk [vmem:[#allocation2 + $0x59] sm:$0x1] %vm279, 0.0
        %296 = vst.msk [vmem:[#allocation2 + $0x69] sm:$0x1] %vm279, 0.0
        %297 = vst.msk [vmem:[#allocation2 + $0x79] sm:$0x1] %vm279, 0.0
        %298 = vst.msk [vmem:[#allocation2 + $0x89] sm:$0x1] %vm279, 0.0
        %299 = vst.msk [vmem:[#allocation2 + $0x99] sm:$0x1] %vm279, 0.0
        %300 = vst [vmem:[#allocation3] sm:$0xff] 0.0
        %301 = vst [vmem:[#allocation3 + $0x8] sm:$0x3] 0.0
        %s302 = scalar_lea.vmem [#allocation3], 144
        %303 = vst [vmem:[%s302] sm:$0xff] 0.0
        %304 = vst [vmem:[%s302 + $0x8] sm:$0x3] 0.0
        %305 = vst [vmem:[#allocation3] sm:$0x1] 0.0
        %306 = vst [vmem:[#allocation3 + $0x10] sm:$0x1] 0.0
        %307 = vst [vmem:[#allocation3 + $0x20] sm:$0x1] 0.0
        %308 = vst [vmem:[#allocation3 + $0x30] sm:$0x1] 0.0
        %309 = vst [vmem:[#allocation3 + $0x40] sm:$0x1] 0.0
        %310 = vst [vmem:[#allocation3 + $0x50] sm:$0x1] 0.0
        %311 = vst [vmem:[#allocation3 + $0x60] sm:$0x1] 0.0
        %312 = vst [vmem:[#allocation3 + $0x70] sm:$0x1] 0.0
        %313 = vst [vmem:[#allocation3 + $0x80] sm:$0x1] 0.0
        %314 = vst [vmem:[#allocation3 + $0x90] sm:$0x1] 0.0
        %315 = vst [vmem:[#allocation3 + $0x9] sm:$0x1] 0.0
        %316 = vst [vmem:[#allocation3 + $0x19] sm:$0x1] 0.0
        %317 = vst [vmem:[#allocation3 + $0x29] sm:$0x1] 0.0
        %318 = vst [vmem:[#allocation3 + $0x39] sm:$0x1] 0.0
        %319 = vst [vmem:[#allocation3 + $0x49] sm:$0x1] 0.0
        %320 = vst [vmem:[#allocation3 + $0x59] sm:$0x1] 0.0
        %321 = vst [vmem:[#allocation3 + $0x69] sm:$0x1] 0.0
        %322 = vst [vmem:[#allocation3 + $0x79] sm:$0x1] 0.0
        %323 = vst [vmem:[#allocation3 + $0x89] sm:$0x1] 0.0
        %324 = vst [vmem:[#allocation3 + $0x99] sm:$0x1] 0.0
        %v325 = vld [vmem:[%s237] sm:$0xff]
        %v326 = vld [vmem:[%s237 + $0x8] sm:$0xff]
        %v327 = vld [vmem:[%s237 + $0x10] sm:$0xff]
        %v328 = vld [vmem:[%s237 + $0x18] sm:$0xff]
        %v329 = vld [vmem:[%s237 + $0x20] sm:$0xff]
        %v330 = vld [vmem:[%s237 + $0x28] sm:$0xff]
        %v331 = vld [vmem:[%s237 + $0x30] sm:$0xff]
        %v332 = vld [vmem:[%s237 + $0x38] sm:$0xff]
        %s333 = scalar_lea.vmem [#allocation2], 16
        %334 = vst.msk [vmem:[%s333 + $0x1] sm:$0xff] %vm272, %v325
        %335 = vst.msk [vmem:[%s333 + $0x11] sm:$0xff] %vm272, %v326
        %336 = vst.msk [vmem:[%s333 + $0x21] sm:$0xff] %vm272, %v327
        %337 = vst.msk [vmem:[%s333 + $0x31] sm:$0xff] %vm272, %v328
        %338 = vst.msk [vmem:[%s333 + $0x41] sm:$0xff] %vm272, %v329
        %339 = vst.msk [vmem:[%s333 + $0x51] sm:$0xff] %vm272, %v330
        %340 = vst.msk [vmem:[%s333 + $0x61] sm:$0xff] %vm272, %v331
        %341 = vst.msk [vmem:[%s333 + $0x71] sm:$0xff] %vm272, %v332
        %v342 = vld [vmem:[#allocation2] sm:$0xff]
        %v343 = vld [vmem:[#allocation2 + $0x10] sm:$0xff]
        %v344 = vld [vmem:[#allocation2 + $0x20] sm:$0xff]
        %v345 = vld [vmem:[#allocation2 + $0x30] sm:$0xff]
        %v346 = vld [vmem:[#allocation2 + $0x40] sm:$0xff]
        %v347 = vld [vmem:[#allocation2 + $0x50] sm:$0xff]
        %v348 = vld [vmem:[#allocation2 + $0x60] sm:$0xff]
        %v349 = vld [vmem:[#allocation2 + $0x70] sm:$0xff]
        %v350 = vld [vmem:[#allocation2 + $0x80] sm:$0xff]
        %v351 = vld [vmem:[#allocation2 + $0x90] sm:$0xff]
        %352 = vst.msk [vmem:[#allocation4] sm:$0xff] %vm272, %v342
        %353 = vst.msk [vmem:[#allocation4 + $0x8] sm:$0xff] %vm272, %v343
        %354 = vst.msk [vmem:[#allocation4 + $0x10] sm:$0xff] %vm272, %v344
        %355 = vst.msk [vmem:[#allocation4 + $0x18] sm:$0xff] %vm272, %v345
        %356 = vst.msk [vmem:[#allocation4 + $0x20] sm:$0xff] %vm272, %v346
        %357 = vst.msk [vmem:[#allocation4 + $0x28] sm:$0xff] %vm272, %v347
        %358 = vst.msk [vmem:[#allocation4 + $0x30] sm:$0xff] %vm272, %v348
        %359 = vst.msk [vmem:[#allocation4 + $0x38] sm:$0xff] %vm272, %v349
        %360 = vst.msk [vmem:[#allocation4 + $0x40] sm:$0xff] %vm272, %v350
        %361 = vst.msk [vmem:[#allocation4 + $0x48] sm:$0xff] %vm272, %v351
        %v362 = vld [vmem:[#allocation2 + $0x1] sm:$0xff]
        %v363 = vld [vmem:[#allocation2 + $0x11] sm:$0xff]
        %v364 = vld [vmem:[#allocation2 + $0x21] sm:$0xff]
        %v365 = vld [vmem:[#allocation2 + $0x31] sm:$0xff]
        %v366 = vld [vmem:[#allocation2 + $0x41] sm:$0xff]
        %v367 = vld [vmem:[#allocation2 + $0x51] sm:$0xff]
        %v368 = vld [vmem:[#allocation2 + $0x61] sm:$0xff]
        %v369 = vld [vmem:[#allocation2 + $0x71] sm:$0xff]
        %v370 = vld [vmem:[#allocation2 + $0x81] sm:$0xff]
        %v371 = vld [vmem:[#allocation2 + $0x91] sm:$0xff]
        %s372 = scalar_lea.vmem [#allocation4], 80
        %373 = vst.msk [vmem:[%s372] sm:$0xff] %vm272, %v362
        %374 = vst.msk [vmem:[%s372 + $0x8] sm:$0xff] %vm272, %v363
        %375 = vst.msk [vmem:[%s372 + $0x10] sm:$0xff] %vm272, %v364
        %376 = vst.msk [vmem:[%s372 + $0x18] sm:$0xff] %vm272, %v365
        %377 = vst.msk [vmem:[%s372 + $0x20] sm:$0xff] %vm272, %v366
        %378 = vst.msk [vmem:[%s372 + $0x28] sm:$0xff] %vm272, %v367
        %379 = vst.msk [vmem:[%s372 + $0x30] sm:$0xff] %vm272, %v368
        %380 = vst.msk [vmem:[%s372 + $0x38] sm:$0xff] %vm272, %v369
        %381 = vst.msk [vmem:[%s372 + $0x40] sm:$0xff] %vm272, %v370
        %382 = vst.msk [vmem:[%s372 + $0x48] sm:$0xff] %vm272, %v371
        %v383 = vld [vmem:[#allocation2 + $0x2] sm:$0xff]
        %v384 = vld [vmem:[#allocation2 + $0x12] sm:$0xff]
        %v385 = vld [vmem:[#allocation2 + $0x22] sm:$0xff]
        %v386 = vld [vmem:[#allocation2 + $0x32] sm:$0xff]
        %v387 = vld [vmem:[#allocation2 + $0x42] sm:$0xff]
        %v388 = vld [vmem:[#allocation2 + $0x52] sm:$0xff]
        %v389 = vld [vmem:[#allocation2 + $0x62] sm:$0xff]
        %v390 = vld [vmem:[#allocation2 + $0x72] sm:$0xff]
        %v391 = vld [vmem:[#allocation2 + $0x82] sm:$0xff]
        %v392 = vld [vmem:[#allocation2 + $0x92] sm:$0xff]
        %s393 = scalar_lea.vmem [#allocation4], 160
        %394 = vst.msk [vmem:[%s393] sm:$0xff] %vm272, %v383
        %395 = vst.msk [vmem:[%s393 + $0x8] sm:$0xff] %vm272, %v384
        %396 = vst.msk [vmem:[%s393 + $0x10] sm:$0xff] %vm272, %v385
        %397 = vst.msk [vmem:[%s393 + $0x18] sm:$0xff] %vm272, %v386
        %398 = vst.msk [vmem:[%s393 + $0x20] sm:$0xff] %vm272, %v387
        %399 = vst.msk [vmem:[%s393 + $0x28] sm:$0xff] %vm272, %v388
        %400 = vst.msk [vmem:[%s393 + $0x30] sm:$0xff] %vm272, %v389
        %401 = vst.msk [vmem:[%s393 + $0x38] sm:$0xff] %vm272, %v390
        %402 = vst.msk [vmem:[%s393 + $0x40] sm:$0xff] %vm272, %v391
        %403 = vst.msk [vmem:[%s393 + $0x48] sm:$0xff] %vm272, %v392
        %v404 = vld [vmem:[%s2] sm:$0x1]
        %v406 = vlaneseq
        %v407 = vshrl.u32 %v406, 7
        %v408 = vsub.s32 0, %v407
        %v409 = vrot.slane %v404, %v408
        %v411 = vld [vmem:[#allocation4] sm:$0xff]
        %v412 = vld [vmem:[#allocation4 + $0x8] sm:$0xff]
        %v413 = vld [vmem:[#allocation4 + $0x10] sm:$0xff]
        %v414 = vld [vmem:[#allocation4 + $0x18] sm:$0xff]
        %v415 = vld [vmem:[#allocation4 + $0x20] sm:$0xff]
        %v416 = vld [vmem:[#allocation4 + $0x28] sm:$0xff]
        %v417 = vld [vmem:[#allocation4 + $0x30] sm:$0xff]
        %v418 = vld [vmem:[#allocation4 + $0x38] sm:$0xff]
        %v419 = vld [vmem:[#allocation9] sm:$0xff]
        %v420 = vld [vmem:[#allocation9 + $0x8] sm:$0xff]
        %v421 = vld [vmem:[#allocation9 + $0x10] sm:$0xff]
        %v422 = vld [vmem:[#allocation9 + $0x18] sm:$0xff]
        %v424 = vsel %vm272, %v411, 0
        %v427 = vsel %vm272, %v412, 0
        %v430 = vsel %vm272, %v413, 0
        %v433 = vsel %vm272, %v414, 0
        %v436 = vsel %vm272, %v415, 0
        %v439 = vsel %vm272, %v416, 0
        %v442 = vsel %vm272, %v417, 0
        %v445 = vsel %vm272, %v418, 0
        %447 = vmatprep.subr.mxu0 0.0
        %448 = vmatpush1.msra.mxu0 %v419
        %449 = vmatprep.subr.mxu0 0.0
        %450 = vmatpush1.msra.mxu0 %v420
        %451 = vmatprep.subr.mxu0 0.0
        %452 = vmatpush1.msra.mxu0 %v421
        %453 = vmatprep.subr.mxu0 0.0
        %454 = vmatpush1.msra.mxu0 %v422
        %455 = vmatprep.subr.mxu0 0.0
        %456 = vmatpush1.msra.mxu0 0.0
        %457 = vmatprep.subr.mxu0 0.0
        %458 = vmatpush1.msra.mxu0 0.0
        %459 = vmatprep.subr.mxu0 0.0
        %460 = vmatpush1.msra.mxu0 0.0
        %461 = vmatprep.subr.mxu0 0.0
        %462 = vmatpush1.msra.mxu0 0.0
        %463 = vmatprep.subr.mxu0 0.0
        %464 = vmatpush1.msra.mxu0 0.0
        %465 = vmatprep.subr.mxu0 0.0
        %466 = vmatpush1.msra.mxu0 0.0
        %467 = vmatprep.subr.mxu0 0.0
        %468 = vmatpush1.msra.mxu0 0.0
        %469 = vmatprep.subr.mxu0 0.0
        %470 = vmatpush1.msra.mxu0 0.0
        %471 = vmatprep.subr.mxu0 0.0
        %472 = vmatpush1.msra.mxu0 0.0
        %473 = vmatprep.subr.mxu0 0.0
        %474 = vmatpush1.msra.mxu0 0.0
        %475 = vmatprep.subr.mxu0 0.0
        %476 = vmatpush1.msra.mxu0 0.0
        %477 = vmatprep.subr.mxu0 0.0
        %478 = vmatpush1.msra.mxu0 0.0
        %479 = vmatprep.subr.mxu0 0.0
        %480 = vmatpush1.msra.mxu0 0.0
        %481 = vmatprep.subr.mxu0 0.0
        %482 = vmatpush1.msra.mxu0 0.0
        %483 = vmatprep.subr.mxu0 0.0
        %484 = vmatpush1.msra.mxu0 0.0
        %485 = vmatprep.subr.mxu0 0.0
        %486 = vmatpush1.msra.mxu0 0.0
        %487 = vmatprep.subr.mxu0 0.0
        %488 = vmatpush1.msra.mxu0 0.0
        %489 = vmatprep.subr.mxu0 0.0
        %490 = vmatpush1.msra.mxu0 0.0
        %491 = vmatprep.subr.mxu0 0.0
        %492 = vmatpush1.msra.mxu0 0.0
        %493 = vmatprep.subr.mxu0 0.0
        %494 = vmatpush1.msra.mxu0 0.0
        %495 = vmatprep.subr.mxu0 0.0
        %496 = vmatpush1.msra.mxu0 0.0
        %497 = vmatprep.subr.mxu0 0.0
        %498 = vmatpush1.msra.mxu0 0.0
        %499 = vmatprep.subr.mxu0 0.0
        %500 = vmatpush1.msra.mxu0 0.0
        %501 = vmatprep.subr.mxu0 0.0
        %502 = vmatpush1.msra.mxu0 0.0
        %503 = vmatprep.subr.mxu0 0.0
        %504 = vmatpush1.msra.mxu0 0.0
        %505 = vmatprep.subr.mxu0 0.0
        %506 = vmatpush1.msra.mxu0 0.0
        %507 = vmatprep.subr.mxu0 0.0
        %508 = vmatpush1.msra.mxu0 0.0
        %509 = vmatprep.subr.mxu0 0.0
        %510 = vmatpush1.msra.mxu0 0.0
        %511 = vmatprep.mubr.f32.mxu0 0.0
        %512 = vmatmul.mubr.f32.gmra.mrb[0].mxu0 %v424
        %v513 = vpop.f32.mrb[0].mxu0
        %v514 = vadd.f32 0.0, %v513
        %v515 = vpop.f32.mrb[0].mxu0
        %516 = vmatprep.mubr.f32.mxu0 0.0
        %517 = vmatmul.mubr.f32.gmra.mrb[0].mxu0 %v427
        %v518 = vpop.f32.mrb[0].mxu0
        %v519 = vadd.f32 0.0, %v518
        %v520 = vpop.f32.mrb[0].mxu0
        %521 = vmatprep.mubr.f32.mxu0 0.0
        %522 = vmatmul.mubr.f32.gmra.mrb[0].mxu0 %v430
        %v523 = vpop.f32.mrb[0].mxu0
        %v524 = vadd.f32 0.0, %v523
        %v525 = vpop.f32.mrb[0].mxu0
        %526 = vmatprep.mubr.f32.mxu0 0.0
        %527 = vmatmul.mubr.f32.gmra.mrb[0].mxu0 %v433
        %v528 = vpop.f32.mrb[0].mxu0
        %v529 = vadd.f32 0.0, %v528
        %v530 = vpop.f32.mrb[0].mxu0
        %531 = vmatprep.mubr.f32.mxu0 0.0
        %532 = vmatmul.mubr.f32.gmra.mrb[0].mxu0 %v436
        %v533 = vpop.f32.mrb[0].mxu0
        %v534 = vadd.f32 0.0, %v533
        %v535 = vpop.f32.mrb[0].mxu0
        %536 = vmatprep.mubr.f32.mxu0 0.0
        %537 = vmatmul.mubr.f32.gmra.mrb[0].mxu0 %v439
        %v538 = vpop.f32.mrb[0].mxu0
        %v539 = vadd.f32 0.0, %v538
        %v540 = vpop.f32.mrb[0].mxu0
        %541 = vmatprep.mubr.f32.mxu0 0.0
        %542 = vmatmul.mubr.f32.gmra.mrb[0].mxu0 %v442
        %v543 = vpop.f32.mrb[0].mxu0
        %v544 = vadd.f32 0.0, %v543
        %v545 = vpop.f32.mrb[0].mxu0
        %546 = vmatprep.mubr.f32.mxu0 0.0
        %547 = vmatmul.mubr.f32.gmra.mrb[0].mxu0 %v445
        %v548 = vpop.f32.mrb[0].mxu0
        %v549 = vadd.f32 0.0, %v548
        %v550 = vpop.f32.mrb[0].mxu0
        %551 = vdwg.mxu0
        %v552 = vadd.f32 %v409, %v514
        %v553 = vadd.f32 %v409, %v519
        %v554 = vadd.f32 %v409, %v524
        %v555 = vadd.f32 %v409, %v529
        %v556 = vadd.f32 %v409, %v534
        %v557 = vadd.f32 %v409, %v539
        %v558 = vadd.f32 %v409, %v544
        %v559 = vadd.f32 %v409, %v549
        %v560 = vld [vmem:[%s372] sm:$0xff]
        %v561 = vld [vmem:[%s372 + $0x8] sm:$0xff]
        %v562 = vld [vmem:[%s372 + $0x10] sm:$0xff]
        %v563 = vld [vmem:[%s372 + $0x18] sm:$0xff]
        %v564 = vld [vmem:[%s372 + $0x20] sm:$0xff]
        %v565 = vld [vmem:[%s372 + $0x28] sm:$0xff]
        %v566 = vld [vmem:[%s372 + $0x30] sm:$0xff]
        %v567 = vld [vmem:[%s372 + $0x38] sm:$0xff]
        %s568 = scalar_lea.vmem [#allocation9], 32
        %v569 = vld [vmem:[%s568] sm:$0xff]
        %v570 = vld [vmem:[%s568 + $0x8] sm:$0xff]
        %v571 = vld [vmem:[%s568 + $0x10] sm:$0xff]
        %v572 = vld [vmem:[%s568 + $0x18] sm:$0xff]
        %v574 = vsel %vm272, %v560, 0
        %v577 = vsel %vm272, %v561, 0
        %v580 = vsel %vm272, %v562, 0
        %v583 = vsel %vm272, %v563, 0
        %v586 = vsel %vm272, %v564, 0
        %v589 = vsel %vm272, %v565, 0
        %v592 = vsel %vm272, %v566, 0
        %v595 = vsel %vm272, %v567, 0
        %597 = vmatprep.subr.mxu0 0.0
        %598 = vmatpush1.msra.mxu0 %v569
        %599 = vmatprep.subr.mxu0 0.0
        %600 = vmatpush1.msra.mxu0 %v570
        %601 = vmatprep.subr.mxu0 0.0
        %602 = vmatpush1.msra.mxu0 %v571
        %603 = vmatprep.subr.mxu0 0.0
        %604 = vmatpush1.msra.mxu0 %v572
        %605 = vmatprep.subr.mxu0 0.0
        %606 = vmatpush1.msra.mxu0 0.0
        %607 = vmatprep.subr.mxu0 0.0
        %608 = vmatpush1.msra.mxu0 0.0
        %609 = vmatprep.subr.mxu0 0.0
        %610 = vmatpush1.msra.mxu0 0.0
        %611 = vmatprep.subr.mxu0 0.0
        %612 = vmatpush1.msra.mxu0 0.0
        %613 = vmatprep.subr.mxu0 0.0
        %614 = vmatpush1.msra.mxu0 0.0
        %615 = vmatprep.subr.mxu0 0.0
        %616 = vmatpush1.msra.mxu0 0.0
        %617 = vmatprep.subr.mxu0 0.0
        %618 = vmatpush1.msra.mxu0 0.0
        %619 = vmatprep.subr.mxu0 0.0
        %620 = vmatpush1.msra.mxu0 0.0
        %621 = vmatprep.subr.mxu0 0.0
        %622 = vmatpush1.msra.mxu0 0.0
        %623 = vmatprep.subr.mxu0 0.0
        %624 = vmatpush1.msra.mxu0 0.0
        %625 = vmatprep.subr.mxu0 0.0
        %626 = vmatpush1.msra.mxu0 0.0
        %627 = vmatprep.subr.mxu0 0.0
        %628 = vmatpush1.msra.mxu0 0.0
        %629 = vmatprep.subr.mxu0 0.0
        %630 = vmatpush1.msra.mxu0 0.0
        %631 = vmatprep.subr.mxu0 0.0
        %632 = vmatpush1.msra.mxu0 0.0
        %633 = vmatprep.subr.mxu0 0.0
        %634 = vmatpush1.msra.mxu0 0.0
        %635 = vmatprep.subr.mxu0 0.0
        %636 = vmatpush1.msra.mxu0 0.0
        %637 = vmatprep.subr.mxu0 0.0
        %638 = vmatpush1.msra.mxu0 0.0
        %639 = vmatprep.subr.mxu0 0.0
        %640 = vmatpush1.msra.mxu0 0.0
        %641 = vmatprep.subr.mxu0 0.0
        %642 = vmatpush1.msra.mxu0 0.0
        %643 = vmatprep.subr.mxu0 0.0
        %644 = vmatpush1.msra.mxu0 0.0
        %645 = vmatprep.subr.mxu0 0.0
        %646 = vmatpush1.msra.mxu0 0.0
        %647 = vmatprep.subr.mxu0 0.0
        %648 = vmatpush1.msra.mxu0 0.0
        %649 = vmatprep.subr.mxu0 0.0
        %650 = vmatpush1.msra.mxu0 0.0
        %651 = vmatprep.subr.mxu0 0.0
        %652 = vmatpush1.msra.mxu0 0.0
        %653 = vmatprep.subr.mxu0 0.0
        %654 = vmatpush1.msra.mxu0 0.0
        %655 = vmatprep.subr.mxu0 0.0
        %656 = vmatpush1.msra.mxu0 0.0
        %657 = vmatprep.subr.mxu0 0.0
        %658 = vmatpush1.msra.mxu0 0.0
        %659 = vmatprep.subr.mxu0 0.0
        %660 = vmatpush1.msra.mxu0 0.0
        %661 = vmatprep.mubr.f32.mxu0 0.0
        %662 = vmatmul.mubr.f32.gmra.mrb[0].mxu0 %v574
        %v663 = vpop.f32.mrb[0].mxu0
        %v664 = vadd.f32 0.0, %v663
        %v665 = vpop.f32.mrb[0].mxu0
        %666 = vmatprep.mubr.f32.mxu0 0.0
        %667 = vmatmul.mubr.f32.gmra.mrb[0].mxu0 %v577
        %v668 = vpop.f32.mrb[0].mxu0
        %v669 = vadd.f32 0.0, %v668
        %v670 = vpop.f32.mrb[0].mxu0
        %671 = vmatprep.mubr.f32.mxu0 0.0
        %672 = vmatmul.mubr.f32.gmra.mrb[0].mxu0 %v580
        %v673 = vpop.f32.mrb[0].mxu0
        %v674 = vadd.f32 0.0, %v673
        %v675 = vpop.f32.mrb[0].mxu0
        %676 = vmatprep.mubr.f32.mxu0 0.0
        %677 = vmatmul.mubr.f32.gmra.mrb[0].mxu0 %v583
        %v678 = vpop.f32.mrb[0].mxu0
        %v679 = vadd.f32 0.0, %v678
        %v680 = vpop.f32.mrb[0].mxu0
        %681 = vmatprep.mubr.f32.mxu0 0.0
        %682 = vmatmul.mubr.f32.gmra.mrb[0].mxu0 %v586
        %v683 = vpop.f32.mrb[0].mxu0
        %v684 = vadd.f32 0.0, %v683
        %v685 = vpop.f32.mrb[0].mxu0
        %686 = vmatprep.mubr.f32.mxu0 0.0
        %687 = vmatmul.mubr.f32.gmra.mrb[0].mxu0 %v589
        %v688 = vpop.f32.mrb[0].mxu0
        %v689 = vadd.f32 0.0, %v688
        %v690 = vpop.f32.mrb[0].mxu0
        %691 = vmatprep.mubr.f32.mxu0 0.0
        %692 = vmatmul.mubr.f32.gmra.mrb[0].mxu0 %v592
        %v693 = vpop.f32.mrb[0].mxu0
        %v694 = vadd.f32 0.0, %v693
        %v695 = vpop.f32.mrb[0].mxu0
        %696 = vmatprep.mubr.f32.mxu0 0.0
        %697 = vmatmul.mubr.f32.gmra.mrb[0].mxu0 %v595
        %v698 = vpop.f32.mrb[0].mxu0
        %v699 = vadd.f32 0.0, %v698
        %v700 = vpop.f32.mrb[0].mxu0
        %701 = vdwg.mxu0
        %v702 = vadd.f32 %v552, %v664
        %v703 = vadd.f32 %v553, %v669
        %v704 = vadd.f32 %v554, %v674
        %v705 = vadd.f32 %v555, %v679
        %v706 = vadd.f32 %v556, %v684
        %v707 = vadd.f32 %v557, %v689
        %v708 = vadd.f32 %v558, %v694
        %v709 = vadd.f32 %v559, %v699
        %v710 = vld [vmem:[%s393] sm:$0xff]
        %v711 = vld [vmem:[%s393 + $0x8] sm:$0xff]
        %v712 = vld [vmem:[%s393 + $0x10] sm:$0xff]
        %v713 = vld [vmem:[%s393 + $0x18] sm:$0xff]
        %v714 = vld [vmem:[%s393 + $0x20] sm:$0xff]
        %v715 = vld [vmem:[%s393 + $0x28] sm:$0xff]
        %v716 = vld [vmem:[%s393 + $0x30] sm:$0xff]
        %v717 = vld [vmem:[%s393 + $0x38] sm:$0xff]
        %s718 = scalar_lea.vmem [#allocation9], 64
        %v719 = vld [vmem:[%s718] sm:$0xff]
        %v720 = vld [vmem:[%s718 + $0x8] sm:$0xff]
        %v721 = vld [vmem:[%s718 + $0x10] sm:$0xff]
        %v722 = vld [vmem:[%s718 + $0x18] sm:$0xff]
        %v724 = vsel %vm272, %v710, 0
        %v727 = vsel %vm272, %v711, 0
        %v730 = vsel %vm272, %v712, 0
        %v733 = vsel %vm272, %v713, 0
        %v736 = vsel %vm272, %v714, 0
        %v739 = vsel %vm272, %v715, 0
        %v742 = vsel %vm272, %v716, 0
        %v745 = vsel %vm272, %v717, 0
        %747 = vmatprep.subr.mxu0 0.0
        %748 = vmatpush1.msra.mxu0 %v719
        %749 = vmatprep.subr.mxu0 0.0
        %750 = vmatpush1.msra.mxu0 %v720
        %751 = vmatprep.subr.mxu0 0.0
        %752 = vmatpush1.msra.mxu0 %v721
        %753 = vmatprep.subr.mxu0 0.0
        %754 = vmatpush1.msra.mxu0 %v722
        %755 = vmatprep.subr.mxu0 0.0
        %756 = vmatpush1.msra.mxu0 0.0
        %757 = vmatprep.subr.mxu0 0.0
        %758 = vmatpush1.msra.mxu0 0.0
        %759 = vmatprep.subr.mxu0 0.0
        %760 = vmatpush1.msra.mxu0 0.0
        %761 = vmatprep.subr.mxu0 0.0
        %762 = vmatpush1.msra.mxu0 0.0
        %763 = vmatprep.subr.mxu0 0.0
        %764 = vmatpush1.msra.mxu0 0.0
        %765 = vmatprep.subr.mxu0 0.0
        %766 = vmatpush1.msra.mxu0 0.0
        %767 = vmatprep.subr.mxu0 0.0
        %768 = vmatpush1.msra.mxu0 0.0
        %769 = vmatprep.subr.mxu0 0.0
        %770 = vmatpush1.msra.mxu0 0.0
        %771 = vmatprep.subr.mxu0 0.0
        %772 = vmatpush1.msra.mxu0 0.0
        %773 = vmatprep.subr.mxu0 0.0
        %774 = vmatpush1.msra.mxu0 0.0
        %775 = vmatprep.subr.mxu0 0.0
        %776 = vmatpush1.msra.mxu0 0.0
        %777 = vmatprep.subr.mxu0 0.0
        %778 = vmatpush1.msra.mxu0 0.0
        %779 = vmatprep.subr.mxu0 0.0
        %780 = vmatpush1.msra.mxu0 0.0
        %781 = vmatprep.subr.mxu0 0.0
        %782 = vmatpush1.msra.mxu0 0.0
        %783 = vmatprep.subr.mxu0 0.0
        %784 = vmatpush1.msra.mxu0 0.0
        %785 = vmatprep.subr.mxu0 0.0
        %786 = vmatpush1.msra.mxu0 0.0
        %787 = vmatprep.subr.mxu0 0.0
        %788 = vmatpush1.msra.mxu0 0.0
        %789 = vmatprep.subr.mxu0 0.0
        %790 = vmatpush1.msra.mxu0 0.0
        %791 = vmatprep.subr.mxu0 0.0
        %792 = vmatpush1.msra.mxu0 0.0
        %793 = vmatprep.subr.mxu0 0.0
        %794 = vmatpush1.msra.mxu0 0.0
        %795 = vmatprep.subr.mxu0 0.0
        %796 = vmatpush1.msra.mxu0 0.0
        %797 = vmatprep.subr.mxu0 0.0
        %798 = vmatpush1.msra.mxu0 0.0
        %799 = vmatprep.subr.mxu0 0.0
        %800 = vmatpush1.msra.mxu0 0.0
        %801 = vmatprep.subr.mxu0 0.0
        %802 = vmatpush1.msra.mxu0 0.0
        %803 = vmatprep.subr.mxu0 0.0
        %804 = vmatpush1.msra.mxu0 0.0
        %805 = vmatprep.subr.mxu0 0.0
        %806 = vmatpush1.msra.mxu0 0.0
        %807 = vmatprep.subr.mxu0 0.0
        %808 = vmatpush1.msra.mxu0 0.0
        %809 = vmatprep.subr.mxu0 0.0
        %810 = vmatpush1.msra.mxu0 0.0
        %811 = vmatprep.mubr.f32.mxu0 0.0
        %812 = vmatmul.mubr.f32.gmra.mrb[0].mxu0 %v724
        %v813 = vpop.f32.mrb[0].mxu0
        %v814 = vadd.f32 0.0, %v813
        %v815 = vpop.f32.mrb[0].mxu0
        %816 = vmatprep.mubr.f32.mxu0 0.0
        %817 = vmatmul.mubr.f32.gmra.mrb[0].mxu0 %v727
        %v818 = vpop.f32.mrb[0].mxu0
        %v819 = vadd.f32 0.0, %v818
        %v820 = vpop.f32.mrb[0].mxu0
        %821 = vmatprep.mubr.f32.mxu0 0.0
        %822 = vmatmul.mubr.f32.gmra.mrb[0].mxu0 %v730
        %v823 = vpop.f32.mrb[0].mxu0
        %v824 = vadd.f32 0.0, %v823
        %v825 = vpop.f32.mrb[0].mxu0
        %826 = vmatprep.mubr.f32.mxu0 0.0
        %827 = vmatmul.mubr.f32.gmra.mrb[0].mxu0 %v733
        %v828 = vpop.f32.mrb[0].mxu0
        %v829 = vadd.f32 0.0, %v828
        %v830 = vpop.f32.mrb[0].mxu0
        %831 = vmatprep.mubr.f32.mxu0 0.0
        %832 = vmatmul.mubr.f32.gmra.mrb[0].mxu0 %v736
        %v833 = vpop.f32.mrb[0].mxu0
        %v834 = vadd.f32 0.0, %v833
        %v835 = vpop.f32.mrb[0].mxu0
        %836 = vmatprep.mubr.f32.mxu0 0.0
        %837 = vmatmul.mubr.f32.gmra.mrb[0].mxu0 %v739
        %v838 = vpop.f32.mrb[0].mxu0
        %v839 = vadd.f32 0.0, %v838
        %v840 = vpop.f32.mrb[0].mxu0
        %841 = vmatprep.mubr.f32.mxu0 0.0
        %842 = vmatmul.mubr.f32.gmra.mrb[0].mxu0 %v742
        %v843 = vpop.f32.mrb[0].mxu0
        %v844 = vadd.f32 0.0, %v843
        %v845 = vpop.f32.mrb[0].mxu0
        %846 = vmatprep.mubr.f32.mxu0 0.0
        %847 = vmatmul.mubr.f32.gmra.mrb[0].mxu0 %v745
        %v848 = vpop.f32.mrb[0].mxu0
        %v849 = vadd.f32 0.0, %v848
        %v850 = vpop.f32.mrb[0].mxu0
        %851 = vdwg.mxu0
        %v852 = vadd.f32 %v702, %v814
        %v853 = vadd.f32 %v703, %v819
        %v854 = vadd.f32 %v704, %v824
        %v855 = vadd.f32 %v705, %v829
        %v856 = vadd.f32 %v706, %v834
        %v857 = vadd.f32 %v707, %v839
        %v858 = vadd.f32 %v708, %v844
        %v859 = vadd.f32 %v709, %v849
        %v860 = vld [vmem:[#allocation4 + $0x8] sm:$0xff]
        %v861 = vld [vmem:[#allocation4 + $0x10] sm:$0xff]
        %v862 = vld [vmem:[#allocation4 + $0x18] sm:$0xff]
        %v863 = vld [vmem:[#allocation4 + $0x20] sm:$0xff]
        %v864 = vld [vmem:[#allocation4 + $0x28] sm:$0xff]
        %v865 = vld [vmem:[#allocation4 + $0x30] sm:$0xff]
        %v866 = vld [vmem:[#allocation4 + $0x38] sm:$0xff]
        %v867 = vld [vmem:[#allocation4 + $0x40] sm:$0xff]
        %s868 = scalar_lea.vmem [#allocation9], 96
        %v869 = vld [vmem:[%s868] sm:$0xff]
        %v870 = vld [vmem:[%s868 + $0x8] sm:$0xff]
        %v871 = vld [vmem:[%s868 + $0x10] sm:$0xff]
        %v872 = vld [vmem:[%s868 + $0x18] sm:$0xff]
        %v874 = vsel %vm272, %v860, 0
        %v877 = vsel %vm272, %v861, 0
        %v880 = vsel %vm272, %v862, 0
        %v883 = vsel %vm272, %v863, 0
        %v886 = vsel %vm272, %v864, 0
        %v889 = vsel %vm272, %v865, 0
        %v892 = vsel %vm272, %v866, 0
        %v895 = vsel %vm272, %v867, 0
        %897 = vmatprep.subr.mxu0 0.0
        %898 = vmatpush1.msra.mxu0 %v869
        %899 = vmatprep.subr.mxu0 0.0
        %900 = vmatpush1.msra.mxu0 %v870
        %901 = vmatprep.subr.mxu0 0.0
        %902 = vmatpush1.msra.mxu0 %v871
        %903 = vmatprep.subr.mxu0 0.0
        %904 = vmatpush1.msra.mxu0 %v872
        %905 = vmatprep.subr.mxu0 0.0
        %906 = vmatpush1.msra.mxu0 0.0
        %907 = vmatprep.subr.mxu0 0.0
        %908 = vmatpush1.msra.mxu0 0.0
        %909 = vmatprep.subr.mxu0 0.0
        %910 = vmatpush1.msra.mxu0 0.0
        %911 = vmatprep.subr.mxu0 0.0
        %912 = vmatpush1.msra.mxu0 0.0
        %913 = vmatprep.subr.mxu0 0.0
        %914 = vmatpush1.msra.mxu0 0.0
        %915 = vmatprep.subr.mxu0 0.0
        %916 = vmatpush1.msra.mxu0 0.0
        %917 = vmatprep.subr.mxu0 0.0
        %918 = vmatpush1.msra.mxu0 0.0
        %919 = vmatprep.subr.mxu0 0.0
        %920 = vmatpush1.msra.mxu0 0.0
        %921 = vmatprep.subr.mxu0 0.0
        %922 = vmatpush1.msra.mxu0 0.0
        %923 = vmatprep.subr.mxu0 0.0
        %924 = vmatpush1.msra.mxu0 0.0
        %925 = vmatprep.subr.mxu0 0.0
        %926 = vmatpush1.msra.mxu0 0.0
        %927 = vmatprep.subr.mxu0 0.0
        %928 = vmatpush1.msra.mxu0 0.0
        %929 = vmatprep.subr.mxu0 0.0
        %930 = vmatpush1.msra.mxu0 0.0
        %931 = vmatprep.subr.mxu0 0.0
        %932 = vmatpush1.msra.mxu0 0.0
        %933 = vmatprep.subr.mxu0 0.0
        %934 = vmatpush1.msra.mxu0 0.0
        %935 = vmatprep.subr.mxu0 0.0
        %936 = vmatpush1.msra.mxu0 0.0
        %937 = vmatprep.subr.mxu0 0.0
        %938 = vmatpush1.msra.mxu0 0.0
        %939 = vmatprep.subr.mxu0 0.0
        %940 = vmatpush1.msra.mxu0 0.0
        %941 = vmatprep.subr.mxu0 0.0
        %942 = vmatpush1.msra.mxu0 0.0
        %943 = vmatprep.subr.mxu0 0.0
        %944 = vmatpush1.msra.mxu0 0.0
        %945 = vmatprep.subr.mxu0 0.0
        %946 = vmatpush1.msra.mxu0 0.0
        %947 = vmatprep.subr.mxu0 0.0
        %948 = vmatpush1.msra.mxu0 0.0
        %949 = vmatprep.subr.mxu0 0.0
        %950 = vmatpush1.msra.mxu0 0.0
        %951 = vmatprep.subr.mxu0 0.0
        %952 = vmatpush1.msra.mxu0 0.0
        %953 = vmatprep.subr.mxu0 0.0
        %954 = vmatpush1.msra.mxu0 0.0
        %955 = vmatprep.subr.mxu0 0.0
        %956 = vmatpush1.msra.mxu0 0.0
        %957 = vmatprep.subr.mxu0 0.0
        %958 = vmatpush1.msra.mxu0 0.0
        %959 = vmatprep.subr.mxu0 0.0
        %960 = vmatpush1.msra.mxu0 0.0
        %961 = vmatprep.mubr.f32.mxu0 0.0
        %962 = vmatmul.mubr.f32.gmra.mrb[0].mxu0 %v874
        %v963 = vpop.f32.mrb[0].mxu0
        %v964 = vadd.f32 0.0, %v963
        %v965 = vpop.f32.mrb[0].mxu0
        %966 = vmatprep.mubr.f32.mxu0 0.0
        %967 = vmatmul.mubr.f32.gmra.mrb[0].mxu0 %v877
        %v968 = vpop.f32.mrb[0].mxu0
        %v969 = vadd.f32 0.0, %v968
        %v970 = vpop.f32.mrb[0].mxu0
        %971 = vmatprep.mubr.f32.mxu0 0.0
        %972 = vmatmul.mubr.f32.gmra.mrb[0].mxu0 %v880
        %v973 = vpop.f32.mrb[0].mxu0
        %v974 = vadd.f32 0.0, %v973
        %v975 = vpop.f32.mrb[0].mxu0
        %976 = vmatprep.mubr.f32.mxu0 0.0
        %977 = vmatmul.mubr.f32.gmra.mrb[0].mxu0 %v883
        %v978 = vpop.f32.mrb[0].mxu0
        %v979 = vadd.f32 0.0, %v978
        %v980 = vpop.f32.mrb[0].mxu0
        %981 = vmatprep.mubr.f32.mxu0 0.0
        %982 = vmatmul.mubr.f32.gmra.mrb[0].mxu0 %v886
        %v983 = vpop.f32.mrb[0].mxu0
        %v984 = vadd.f32 0.0, %v983
        %v985 = vpop.f32.mrb[0].mxu0
        %986 = vmatprep.mubr.f32.mxu0 0.0
        %987 = vmatmul.mubr.f32.gmra.mrb[0].mxu0 %v889
        %v988 = vpop.f32.mrb[0].mxu0
        %v989 = vadd.f32 0.0, %v988
        %v990 = vpop.f32.mrb[0].mxu0
        %991 = vmatprep.mubr.f32.mxu0 0.0
        %992 = vmatmul.mubr.f32.gmra.mrb[0].mxu0 %v892
        %v993 = vpop.f32.mrb[0].mxu0
        %v994 = vadd.f32 0.0, %v993
        %v995 = vpop.f32.mrb[0].mxu0
        %996 = vmatprep.mubr.f32.mxu0 0.0
        %997 = vmatmul.mubr.f32.gmra.mrb[0].mxu0 %v895
        %v998 = vpop.f32.mrb[0].mxu0
        %v999 = vadd.f32 0.0, %v998
        %v1000 = vpop.f32.mrb[0].mxu0
        %1001 = vdwg.mxu0
        %v1002 = vadd.f32 %v852, %v964
        %v1003 = vadd.f32 %v853, %v969
        %v1004 = vadd.f32 %v854, %v974
        %v1005 = vadd.f32 %v855, %v979
        %v1006 = vadd.f32 %v856, %v984
        %v1007 = vadd.f32 %v857, %v989
        %v1008 = vadd.f32 %v858, %v994
        %v1009 = vadd.f32 %v859, %v999
        %v1010 = vld [vmem:[%s372 + $0x8] sm:$0xff]
        %v1011 = vld [vmem:[%s372 + $0x10] sm:$0xff]
        %v1012 = vld [vmem:[%s372 + $0x18] sm:$0xff]
        %v1013 = vld [vmem:[%s372 + $0x20] sm:$0xff]
        %v1014 = vld [vmem:[%s372 + $0x28] sm:$0xff]
        %v1015 = vld [vmem:[%s372 + $0x30] sm:$0xff]
        %v1016 = vld [vmem:[%s372 + $0x38] sm:$0xff]
        %v1017 = vld [vmem:[%s372 + $0x40] sm:$0xff]
        %s1018 = scalar_lea.vmem [#allocation9], 128
        %v1019 = vld [vmem:[%s1018] sm:$0xff]
        %v1020 = vld [vmem:[%s1018 + $0x8] sm:$0xff]
        %v1021 = vld [vmem:[%s1018 + $0x10] sm:$0xff]
        %v1022 = vld [vmem:[%s1018 + $0x18] sm:$0xff]
        %v1024 = vsel %vm272, %v1010, 0
        %v1027 = vsel %vm272, %v1011, 0
        %v1030 = vsel %vm272, %v1012, 0
        %v1033 = vsel %vm272, %v1013, 0
        %v1036 = vsel %vm272, %v1014, 0
        %v1039 = vsel %vm272, %v1015, 0
        %v1042 = vsel %vm272, %v1016, 0
        %v1045 = vsel %vm272, %v1017, 0
        %1047 = vmatprep.subr.mxu0 0.0
        %1048 = vmatpush1.msra.mxu0 %v1019
        %1049 = vmatprep.subr.mxu0 0.0
        %1050 = vmatpush1.msra.mxu0 %v1020
        %1051 = vmatprep.subr.mxu0 0.0
        %1052 = vmatpush1.msra.mxu0 %v1021
        %1053 = vmatprep.subr.mxu0 0.0
        %1054 = vmatpush1.msra.mxu0 %v1022
        %1055 = vmatprep.subr.mxu0 0.0
        %1056 = vmatpush1.msra.mxu0 0.0
        %1057 = vmatprep.subr.mxu0 0.0
        %1058 = vmatpush1.msra.mxu0 0.0
        %1059 = vmatprep.subr.mxu0 0.0
        %1060 = vmatpush1.msra.mxu0 0.0
        %1061 = vmatprep.subr.mxu0 0.0
        %1062 = vmatpush1.msra.mxu0 0.0
        %1063 = vmatprep.subr.mxu0 0.0
        %1064 = vmatpush1.msra.mxu0 0.0
        %1065 = vmatprep.subr.mxu0 0.0
        %1066 = vmatpush1.msra.mxu0 0.0
        %1067 = vmatprep.subr.mxu0 0.0
        %1068 = vmatpush1.msra.mxu0 0.0
        %1069 = vmatprep.subr.mxu0 0.0
        %1070 = vmatpush1.msra.mxu0 0.0
        %1071 = vmatprep.subr.mxu0 0.0
        %1072 = vmatpush1.msra.mxu0 0.0
        %1073 = vmatprep.subr.mxu0 0.0
        %1074 = vmatpush1.msra.mxu0 0.0
        %1075 = vmatprep.subr.mxu0 0.0
        %1076 = vmatpush1.msra.mxu0 0.0
        %1077 = vmatprep.subr.mxu0 0.0
        %1078 = vmatpush1.msra.mxu0 0.0
        %1079 = vmatprep.subr.mxu0 0.0
        %1080 = vmatpush1.msra.mxu0 0.0
        %1081 = vmatprep.subr.mxu0 0.0
        %1082 = vmatpush1.msra.mxu0 0.0
        %1083 = vmatprep.subr.mxu0 0.0
        %1084 = vmatpush1.msra.mxu0 0.0
        %1085 = vmatprep.subr.mxu0 0.0
        %1086 = vmatpush1.msra.mxu0 0.0
        %1087 = vmatprep.subr.mxu0 0.0
        %1088 = vmatpush1.msra.mxu0 0.0
        %1089 = vmatprep.subr.mxu0 0.0
        %1090 = vmatpush1.msra.mxu0 0.0
        %1091 = vmatprep.subr.mxu0 0.0
        %1092 = vmatpush1.msra.mxu0 0.0
        %1093 = vmatprep.subr.mxu0 0.0
        %1094 = vmatpush1.msra.mxu0 0.0
        %1095 = vmatprep.subr.mxu0 0.0
        %1096 = vmatpush1.msra.mxu0 0.0
        %1097 = vmatprep.subr.mxu0 0.0
        %1098 = vmatpush1.msra.mxu0 0.0
        %1099 = vmatprep.subr.mxu0 0.0
        %1100 = vmatpush1.msra.mxu0 0.0
        %1101 = vmatprep.subr.mxu0 0.0
        %1102 = vmatpush1.msra.mxu0 0.0
        %1103 = vmatprep.subr.mxu0 0.0
        %1104 = vmatpush1.msra.mxu0 0.0
        %1105 = vmatprep.subr.mxu0 0.0
        %1106 = vmatpush1.msra.mxu0 0.0
        %1107 = vmatprep.subr.mxu0 0.0
        %1108 = vmatpush1.msra.mxu0 0.0
        %1109 = vmatprep.subr.mxu0 0.0
        %1110 = vmatpush1.msra.mxu0 0.0
        %1111 = vmatprep.mubr.f32.mxu0 0.0
        %1112 = vmatmul.mubr.f32.gmra.mrb[0].mxu0 %v1024
        %v1113 = vpop.f32.mrb[0].mxu0
        %v1114 = vadd.f32 0.0, %v1113
        %v1115 = vpop.f32.mrb[0].mxu0
        %1116 = vmatprep.mubr.f32.mxu0 0.0
        %1117 = vmatmul.mubr.f32.gmra.mrb[0].mxu0 %v1027
        %v1118 = vpop.f32.mrb[0].mxu0
        %v1119 = vadd.f32 0.0, %v1118
        %v1120 = vpop.f32.mrb[0].mxu0
        %1121 = vmatprep.mubr.f32.mxu0 0.0
        %1122 = vmatmul.mubr.f32.gmra.mrb[0].mxu0 %v1030
        %v1123 = vpop.f32.mrb[0].mxu0
        %v1124 = vadd.f32 0.0, %v1123
        %v1125 = vpop.f32.mrb[0].mxu0
        %1126 = vmatprep.mubr.f32.mxu0 0.0
        %1127 = vmatmul.mubr.f32.gmra.mrb[0].mxu0 %v1033
        %v1128 = vpop.f32.mrb[0].mxu0
        %v1129 = vadd.f32 0.0, %v1128
        %v1130 = vpop.f32.mrb[0].mxu0
        %1131 = vmatprep.mubr.f32.mxu0 0.0
        %1132 = vmatmul.mubr.f32.gmra.mrb[0].mxu0 %v1036
        %v1133 = vpop.f32.mrb[0].mxu0
        %v1134 = vadd.f32 0.0, %v1133
        %v1135 = vpop.f32.mrb[0].mxu0
        %1136 = vmatprep.mubr.f32.mxu0 0.0
        %1137 = vmatmul.mubr.f32.gmra.mrb[0].mxu0 %v1039
        %v1138 = vpop.f32.mrb[0].mxu0
        %v1139 = vadd.f32 0.0, %v1138
        %v1140 = vpop.f32.mrb[0].mxu0
        %1141 = vmatprep.mubr.f32.mxu0 0.0
        %1142 = vmatmul.mubr.f32.gmra.mrb[0].mxu0 %v1042
        %v1143 = vpop.f32.mrb[0].mxu0
        %v1144 = vadd.f32 0.0, %v1143
        %v1145 = vpop.f32.mrb[0].mxu0
        %1146 = vmatprep.mubr.f32.mxu0 0.0
        %1147 = vmatmul.mubr.f32.gmra.mrb[0].mxu0 %v1045
        %v1148 = vpop.f32.mrb[0].mxu0
        %v1149 = vadd.f32 0.0, %v1148
        %v1150 = vpop.f32.mrb[0].mxu0
        %1151 = vdwg.mxu0
        %v1152 = vadd.f32 %v1002, %v1114
        %v1153 = vadd.f32 %v1003, %v1119
        %v1154 = vadd.f32 %v1004, %v1124
        %v1155 = vadd.f32 %v1005, %v1129
        %v1156 = vadd.f32 %v1006, %v1134
        %v1157 = vadd.f32 %v1007, %v1139
        %v1158 = vadd.f32 %v1008, %v1144
        %v1159 = vadd.f32 %v1009, %v1149
        %v1160 = vld [vmem:[%s393 + $0x8] sm:$0xff]
        %v1161 = vld [vmem:[%s393 + $0x10] sm:$0xff]
        %v1162 = vld [vmem:[%s393 + $0x18] sm:$0xff]
        %v1163 = vld [vmem:[%s393 + $0x20] sm:$0xff]
        %v1164 = vld [vmem:[%s393 + $0x28] sm:$0xff]
        %v1165 = vld [vmem:[%s393 + $0x30] sm:$0xff]
        %v1166 = vld [vmem:[%s393 + $0x38] sm:$0xff]
        %v1167 = vld [vmem:[%s393 + $0x40] sm:$0xff]
        %s1168 = scalar_lea.vmem [#allocation9], 160
        %v1169 = vld [vmem:[%s1168] sm:$0xff]
        %v1170 = vld [vmem:[%s1168 + $0x8] sm:$0xff]
        %v1171 = vld [vmem:[%s1168 + $0x10] sm:$0xff]
        %v1172 = vld [vmem:[%s1168 + $0x18] sm:$0xff]
        %v1174 = vsel %vm272, %v1160, 0
        %v1177 = vsel %vm272, %v1161, 0
        %v1180 = vsel %vm272, %v1162, 0
        %v1183 = vsel %vm272, %v1163, 0
        %v1186 = vsel %vm272, %v1164, 0
        %v1189 = vsel %vm272, %v1165, 0
        %v1192 = vsel %vm272, %v1166, 0
        %v1195 = vsel %vm272, %v1167, 0
        %1197 = vmatprep.subr.mxu0 0.0
        %1198 = vmatpush1.msra.mxu0 %v1169
        %1199 = vmatprep.subr.mxu0 0.0
        %1200 = vmatpush1.msra.mxu0 %v1170
        %1201 = vmatprep.subr.mxu0 0.0
        %1202 = vmatpush1.msra.mxu0 %v1171
        %1203 = vmatprep.subr.mxu0 0.0
        %1204 = vmatpush1.msra.mxu0 %v1172
        %1205 = vmatprep.subr.mxu0 0.0
        %1206 = vmatpush1.msra.mxu0 0.0
        %1207 = vmatprep.subr.mxu0 0.0
        %1208 = vmatpush1.msra.mxu0 0.0
        %1209 = vmatprep.subr.mxu0 0.0
        %1210 = vmatpush1.msra.mxu0 0.0
        %1211 = vmatprep.subr.mxu0 0.0
        %1212 = vmatpush1.msra.mxu0 0.0
        %1213 = vmatprep.subr.mxu0 0.0
        %1214 = vmatpush1.msra.mxu0 0.0
        %1215 = vmatprep.subr.mxu0 0.0
        %1216 = vmatpush1.msra.mxu0 0.0
        %1217 = vmatprep.subr.mxu0 0.0
        %1218 = vmatpush1.msra.mxu0 0.0
        %1219 = vmatprep.subr.mxu0 0.0
        %1220 = vmatpush1.msra.mxu0 0.0
        %1221 = vmatprep.subr.mxu0 0.0
        %1222 = vmatpush1.msra.mxu0 0.0
        %1223 = vmatprep.subr.mxu0 0.0
        %1224 = vmatpush1.msra.mxu0 0.0
        %1225 = vmatprep.subr.mxu0 0.0
        %1226 = vmatpush1.msra.mxu0 0.0
        %1227 = vmatprep.subr.mxu0 0.0
        %1228 = vmatpush1.msra.mxu0 0.0
        %1229 = vmatprep.subr.mxu0 0.0
        %1230 = vmatpush1.msra.mxu0 0.0
        %1231 = vmatprep.subr.mxu0 0.0
        %1232 = vmatpush1.msra.mxu0 0.0
        %1233 = vmatprep.subr.mxu0 0.0
        %1234 = vmatpush1.msra.mxu0 0.0
        %1235 = vmatprep.subr.mxu0 0.0
        %1236 = vmatpush1.msra.mxu0 0.0
        %1237 = vmatprep.subr.mxu0 0.0
        %1238 = vmatpush1.msra.mxu0 0.0
        %1239 = vmatprep.subr.mxu0 0.0
        %1240 = vmatpush1.msra.mxu0 0.0
        %1241 = vmatprep.subr.mxu0 0.0
        %1242 = vmatpush1.msra.mxu0 0.0
        %1243 = vmatprep.subr.mxu0 0.0
        %1244 = vmatpush1.msra.mxu0 0.0
        %1245 = vmatprep.subr.mxu0 0.0
        %1246 = vmatpush1.msra.mxu0 0.0
        %1247 = vmatprep.subr.mxu0 0.0
        %1248 = vmatpush1.msra.mxu0 0.0
        %1249 = vmatprep.subr.mxu0 0.0
        %1250 = vmatpush1.msra.mxu0 0.0
        %1251 = vmatprep.subr.mxu0 0.0
        %1252 = vmatpush1.msra.mxu0 0.0
        %1253 = vmatprep.subr.mxu0 0.0
        %1254 = vmatpush1.msra.mxu0 0.0
        %1255 = vmatprep.subr.mxu0 0.0
        %1256 = vmatpush1.msra.mxu0 0.0
        %1257 = vmatprep.subr.mxu0 0.0
        %1258 = vmatpush1.msra.mxu0 0.0
        %1259 = vmatprep.subr.mxu0 0.0
        %1260 = vmatpush1.msra.mxu0 0.0
        %1261 = vmatprep.mubr.f32.mxu0 0.0
        %1262 = vmatmul.mubr.f32.gmra.mrb[0].mxu0 %v1174
        %v1263 = vpop.f32.mrb[0].mxu0
        %v1264 = vadd.f32 0.0, %v1263
        %v1265 = vpop.f32.mrb[0].mxu0
        %1266 = vmatprep.mubr.f32.mxu0 0.0
        %1267 = vmatmul.mubr.f32.gmra.mrb[0].mxu0 %v1177
        %v1268 = vpop.f32.mrb[0].mxu0
        %v1269 = vadd.f32 0.0, %v1268
        %v1270 = vpop.f32.mrb[0].mxu0
        %1271 = vmatprep.mubr.f32.mxu0 0.0
        %1272 = vmatmul.mubr.f32.gmra.mrb[0].mxu0 %v1180
        %v1273 = vpop.f32.mrb[0].mxu0
        %v1274 = vadd.f32 0.0, %v1273
        %v1275 = vpop.f32.mrb[0].mxu0
        %1276 = vmatprep.mubr.f32.mxu0 0.0
        %1277 = vmatmul.mubr.f32.gmra.mrb[0].mxu0 %v1183
        %v1278 = vpop.f32.mrb[0].mxu0
        %v1279 = vadd.f32 0.0, %v1278
        %v1280 = vpop.f32.mrb[0].mxu0
        %1281 = vmatprep.mubr.f32.mxu0 0.0
        %1282 = vmatmul.mubr.f32.gmra.mrb[0].mxu0 %v1186
        %v1283 = vpop.f32.mrb[0].mxu0
        %v1284 = vadd.f32 0.0, %v1283
        %v1285 = vpop.f32.mrb[0].mxu0
        %1286 = vmatprep.mubr.f32.mxu0 0.0
        %1287 = vmatmul.mubr.f32.gmra.mrb[0].mxu0 %v1189
        %v1288 = vpop.f32.mrb[0].mxu0
        %v1289 = vadd.f32 0.0, %v1288
        %v1290 = vpop.f32.mrb[0].mxu0
        %1291 = vmatprep.mubr.f32.mxu0 0.0
        %1292 = vmatmul.mubr.f32.gmra.mrb[0].mxu0 %v1192
        %v1293 = vpop.f32.mrb[0].mxu0
        %v1294 = vadd.f32 0.0, %v1293
        %v1295 = vpop.f32.mrb[0].mxu0
        %1296 = vmatprep.mubr.f32.mxu0 0.0
        %1297 = vmatmul.mubr.f32.gmra.mrb[0].mxu0 %v1195
        %v1298 = vpop.f32.mrb[0].mxu0
        %v1299 = vadd.f32 0.0, %v1298
        %v1300 = vpop.f32.mrb[0].mxu0
        %1301 = vdwg.mxu0
        %v1302 = vadd.f32 %v1152, %v1264
        %v1303 = vadd.f32 %v1153, %v1269
        %v1304 = vadd.f32 %v1154, %v1274
        %v1305 = vadd.f32 %v1155, %v1279
        %v1306 = vadd.f32 %v1156, %v1284
        %v1307 = vadd.f32 %v1157, %v1289
        %v1308 = vadd.f32 %v1158, %v1294
        %v1309 = vadd.f32 %v1159, %v1299
        %v1310 = vld [vmem:[#allocation4 + $0x10] sm:$0xff]
        %v1311 = vld [vmem:[#allocation4 + $0x18] sm:$0xff]
        %v1312 = vld [vmem:[#allocation4 + $0x20] sm:$0xff]
        %v1313 = vld [vmem:[#allocation4 + $0x28] sm:$0xff]
        %v1314 = vld [vmem:[#allocation4 + $0x30] sm:$0xff]
        %v1315 = vld [vmem:[#allocation4 + $0x38] sm:$0xff]
        %v1316 = vld [vmem:[#allocation4 + $0x40] sm:$0xff]
        %v1317 = vld [vmem:[#allocation4 + $0x48] sm:$0xff]
        %s1318 = scalar_lea.vmem [#allocation9], 192
        %v1319 = vld [vmem:[%s1318] sm:$0xff]
        %v1320 = vld [vmem:[%s1318 + $0x8] sm:$0xff]
        %v1321 = vld [vmem:[%s1318 + $0x10] sm:$0xff]
        %v1322 = vld [vmem:[%s1318 + $0x18] sm:$0xff]
        %v1324 = vsel %vm272, %v1310, 0
        %v1327 = vsel %vm272, %v1311, 0
        %v1330 = vsel %vm272, %v1312, 0
        %v1333 = vsel %vm272, %v1313, 0
        %v1336 = vsel %vm272, %v1314, 0
        %v1339 = vsel %vm272, %v1315, 0
        %v1342 = vsel %vm272, %v1316, 0
        %v1345 = vsel %vm272, %v1317, 0
        %1347 = vmatprep.subr.mxu0 0.0
        %1348 = vmatpush1.msra.mxu0 %v1319
        %1349 = vmatprep.subr.mxu0 0.0
        %1350 = vmatpush1.msra.mxu0 %v1320
        %1351 = vmatprep.subr.mxu0 0.0
        %1352 = vmatpush1.msra.mxu0 %v1321
        %1353 = vmatprep.subr.mxu0 0.0
        %1354 = vmatpush1.msra.mxu0 %v1322
        %1355 = vmatprep.subr.mxu0 0.0
        %1356 = vmatpush1.msra.mxu0 0.0
        %1357 = vmatprep.subr.mxu0 0.0
        %1358 = vmatpush1.msra.mxu0 0.0
        %1359 = vmatprep.subr.mxu0 0.0
        %1360 = vmatpush1.msra.mxu0 0.0
        %1361 = vmatprep.subr.mxu0 0.0
        %1362 = vmatpush1.msra.mxu0 0.0
        %1363 = vmatprep.subr.mxu0 0.0
        %1364 = vmatpush1.msra.mxu0 0.0
        %1365 = vmatprep.subr.mxu0 0.0
        %1366 = vmatpush1.msra.mxu0 0.0
        %1367 = vmatprep.subr.mxu0 0.0
        %1368 = vmatpush1.msra.mxu0 0.0
        %1369 = vmatprep.subr.mxu0 0.0
        %1370 = vmatpush1.msra.mxu0 0.0
        %1371 = vmatprep.subr.mxu0 0.0
        %1372 = vmatpush1.msra.mxu0 0.0
        %1373 = vmatprep.subr.mxu0 0.0
        %1374 = vmatpush1.msra.mxu0 0.0
        %1375 = vmatprep.subr.mxu0 0.0
        %1376 = vmatpush1.msra.mxu0 0.0
        %1377 = vmatprep.subr.mxu0 0.0
        %1378 = vmatpush1.msra.mxu0 0.0
        %1379 = vmatprep.subr.mxu0 0.0
        %1380 = vmatpush1.msra.mxu0 0.0
        %1381 = vmatprep.subr.mxu0 0.0
        %1382 = vmatpush1.msra.mxu0 0.0
        %1383 = vmatprep.subr.mxu0 0.0
        %1384 = vmatpush1.msra.mxu0 0.0
        %1385 = vmatprep.subr.mxu0 0.0
        %1386 = vmatpush1.msra.mxu0 0.0
        %1387 = vmatprep.subr.mxu0 0.0
        %1388 = vmatpush1.msra.mxu0 0.0
        %1389 = vmatprep.subr.mxu0 0.0
        %1390 = vmatpush1.msra.mxu0 0.0
        %1391 = vmatprep.subr.mxu0 0.0
        %1392 = vmatpush1.msra.mxu0 0.0
        %1393 = vmatprep.subr.mxu0 0.0
        %1394 = vmatpush1.msra.mxu0 0.0
        %1395 = vmatprep.subr.mxu0 0.0
        %1396 = vmatpush1.msra.mxu0 0.0
        %1397 = vmatprep.subr.mxu0 0.0
        %1398 = vmatpush1.msra.mxu0 0.0
        %1399 = vmatprep.subr.mxu0 0.0
        %1400 = vmatpush1.msra.mxu0 0.0
        %1401 = vmatprep.subr.mxu0 0.0
        %1402 = vmatpush1.msra.mxu0 0.0
        %1403 = vmatprep.subr.mxu0 0.0
        %1404 = vmatpush1.msra.mxu0 0.0
        %1405 = vmatprep.subr.mxu0 0.0
        %1406 = vmatpush1.msra.mxu0 0.0
        %1407 = vmatprep.subr.mxu0 0.0
        %1408 = vmatpush1.msra.mxu0 0.0
        %1409 = vmatprep.subr.mxu0 0.0
        %1410 = vmatpush1.msra.mxu0 0.0
        %1411 = vmatprep.mubr.f32.mxu0 0.0
        %1412 = vmatmul.mubr.f32.gmra.mrb[0].mxu0 %v1324
        %v1413 = vpop.f32.mrb[0].mxu0
        %v1414 = vadd.f32 0.0, %v1413
        %v1415 = vpop.f32.mrb[0].mxu0
        %1416 = vmatprep.mubr.f32.mxu0 0.0
        %1417 = vmatmul.mubr.f32.gmra.mrb[0].mxu0 %v1327
        %v1418 = vpop.f32.mrb[0].mxu0
        %v1419 = vadd.f32 0.0, %v1418
        %v1420 = vpop.f32.mrb[0].mxu0
        %1421 = vmatprep.mubr.f32.mxu0 0.0
        %1422 = vmatmul.mubr.f32.gmra.mrb[0].mxu0 %v1330
        %v1423 = vpop.f32.mrb[0].mxu0
        %v1424 = vadd.f32 0.0, %v1423
        %v1425 = vpop.f32.mrb[0].mxu0
        %1426 = vmatprep.mubr.f32.mxu0 0.0
        %1427 = vmatmul.mubr.f32.gmra.mrb[0].mxu0 %v1333
        %v1428 = vpop.f32.mrb[0].mxu0
        %v1429 = vadd.f32 0.0, %v1428
        %v1430 = vpop.f32.mrb[0].mxu0
        %1431 = vmatprep.mubr.f32.mxu0 0.0
        %1432 = vmatmul.mubr.f32.gmra.mrb[0].mxu0 %v1336
        %v1433 = vpop.f32.mrb[0].mxu0
        %v1434 = vadd.f32 0.0, %v1433
        %v1435 = vpop.f32.mrb[0].mxu0
        %1436 = vmatprep.mubr.f32.mxu0 0.0
        %1437 = vmatmul.mubr.f32.gmra.mrb[0].mxu0 %v1339
        %v1438 = vpop.f32.mrb[0].mxu0
        %v1439 = vadd.f32 0.0, %v1438
        %v1440 = vpop.f32.mrb[0].mxu0
        %1441 = vmatprep.mubr.f32.mxu0 0.0
        %1442 = vmatmul.mubr.f32.gmra.mrb[0].mxu0 %v1342
        %v1443 = vpop.f32.mrb[0].mxu0
        %v1444 = vadd.f32 0.0, %v1443
        %v1445 = vpop.f32.mrb[0].mxu0
        %1446 = vmatprep.mubr.f32.mxu0 0.0
        %1447 = vmatmul.mubr.f32.gmra.mrb[0].mxu0 %v1345
        %v1448 = vpop.f32.mrb[0].mxu0
        %v1449 = vadd.f32 0.0, %v1448
        %v1450 = vpop.f32.mrb[0].mxu0
        %1451 = vdwg.mxu0
        %v1452 = vadd.f32 %v1302, %v1414
        %v1453 = vadd.f32 %v1303, %v1419
        %v1454 = vadd.f32 %v1304, %v1424
        %v1455 = vadd.f32 %v1305, %v1429
        %v1456 = vadd.f32 %v1306, %v1434
        %v1457 = vadd.f32 %v1307, %v1439
        %v1458 = vadd.f32 %v1308, %v1444
        %v1459 = vadd.f32 %v1309, %v1449
        %v1460 = vld [vmem:[%s372 + $0x10] sm:$0xff]
        %v1461 = vld [vmem:[%s372 + $0x18] sm:$0xff]
        %v1462 = vld [vmem:[%s372 + $0x20] sm:$0xff]
        %v1463 = vld [vmem:[%s372 + $0x28] sm:$0xff]
        %v1464 = vld [vmem:[%s372 + $0x30] sm:$0xff]
        %v1465 = vld [vmem:[%s372 + $0x38] sm:$0xff]
        %v1466 = vld [vmem:[%s372 + $0x40] sm:$0xff]
        %v1467 = vld [vmem:[%s372 + $0x48] sm:$0xff]
        %s1468 = scalar_lea.vmem [#allocation9], 224
        %v1469 = vld [vmem:[%s1468] sm:$0xff]
        %v1470 = vld [vmem:[%s1468 + $0x8] sm:$0xff]
        %v1471 = vld [vmem:[%s1468 + $0x10] sm:$0xff]
        %v1472 = vld [vmem:[%s1468 + $0x18] sm:$0xff]
        %v1474 = vsel %vm272, %v1460, 0
        %v1477 = vsel %vm272, %v1461, 0
        %v1480 = vsel %vm272, %v1462, 0
        %v1483 = vsel %vm272, %v1463, 0
        %v1486 = vsel %vm272, %v1464, 0
        %v1489 = vsel %vm272, %v1465, 0
        %v1492 = vsel %vm272, %v1466, 0
        %v1495 = vsel %vm272, %v1467, 0
        %1497 = vmatprep.subr.mxu0 0.0
        %1498 = vmatpush1.msra.mxu0 %v1469
        %1499 = vmatprep.subr.mxu0 0.0
        %1500 = vmatpush1.msra.mxu0 %v1470
        %1501 = vmatprep.subr.mxu0 0.0
        %1502 = vmatpush1.msra.mxu0 %v1471
        %1503 = vmatprep.subr.mxu0 0.0
        %1504 = vmatpush1.msra.mxu0 %v1472
        %1505 = vmatprep.subr.mxu0 0.0
        %1506 = vmatpush1.msra.mxu0 0.0
        %1507 = vmatprep.subr.mxu0 0.0
        %1508 = vmatpush1.msra.mxu0 0.0
        %1509 = vmatprep.subr.mxu0 0.0
        %1510 = vmatpush1.msra.mxu0 0.0
        %1511 = vmatprep.subr.mxu0 0.0
        %1512 = vmatpush1.msra.mxu0 0.0
        %1513 = vmatprep.subr.mxu0 0.0
        %1514 = vmatpush1.msra.mxu0 0.0
        %1515 = vmatprep.subr.mxu0 0.0
        %1516 = vmatpush1.msra.mxu0 0.0
        %1517 = vmatprep.subr.mxu0 0.0
        %1518 = vmatpush1.msra.mxu0 0.0
        %1519 = vmatprep.subr.mxu0 0.0
        %1520 = vmatpush1.msra.mxu0 0.0
        %1521 = vmatprep.subr.mxu0 0.0
        %1522 = vmatpush1.msra.mxu0 0.0
        %1523 = vmatprep.subr.mxu0 0.0
        %1524 = vmatpush1.msra.mxu0 0.0
        %1525 = vmatprep.subr.mxu0 0.0
        %1526 = vmatpush1.msra.mxu0 0.0
        %1527 = vmatprep.subr.mxu0 0.0
        %1528 = vmatpush1.msra.mxu0 0.0
        %1529 = vmatprep.subr.mxu0 0.0
        %1530 = vmatpush1.msra.mxu0 0.0
        %1531 = vmatprep.subr.mxu0 0.0
        %1532 = vmatpush1.msra.mxu0 0.0
        %1533 = vmatprep.subr.mxu0 0.0
        %1534 = vmatpush1.msra.mxu0 0.0
        %1535 = vmatprep.subr.mxu0 0.0
        %1536 = vmatpush1.msra.mxu0 0.0
        %1537 = vmatprep.subr.mxu0 0.0
        %1538 = vmatpush1.msra.mxu0 0.0
        %1539 = vmatprep.subr.mxu0 0.0
        %1540 = vmatpush1.msra.mxu0 0.0
        %1541 = vmatprep.subr.mxu0 0.0
        %1542 = vmatpush1.msra.mxu0 0.0
        %1543 = vmatprep.subr.mxu0 0.0
        %1544 = vmatpush1.msra.mxu0 0.0
        %1545 = vmatprep.subr.mxu0 0.0
        %1546 = vmatpush1.msra.mxu0 0.0
        %1547 = vmatprep.subr.mxu0 0.0
        %1548 = vmatpush1.msra.mxu0 0.0
        %1549 = vmatprep.subr.mxu0 0.0
        %1550 = vmatpush1.msra.mxu0 0.0
        %1551 = vmatprep.subr.mxu0 0.0
        %1552 = vmatpush1.msra.mxu0 0.0
        %1553 = vmatprep.subr.mxu0 0.0
        %1554 = vmatpush1.msra.mxu0 0.0
        %1555 = vmatprep.subr.mxu0 0.0
        %1556 = vmatpush1.msra.mxu0 0.0
        %1557 = vmatprep.subr.mxu0 0.0
        %1558 = vmatpush1.msra.mxu0 0.0
        %1559 = vmatprep.subr.mxu0 0.0
        %1560 = vmatpush1.msra.mxu0 0.0
        %1561 = vmatprep.mubr.f32.mxu0 0.0
        %1562 = vmatmul.mubr.f32.gmra.mrb[0].mxu0 %v1474
        %v1563 = vpop.f32.mrb[0].mxu0
        %v1564 = vadd.f32 0.0, %v1563
        %v1565 = vpop.f32.mrb[0].mxu0
        %1566 = vmatprep.mubr.f32.mxu0 0.0
        %1567 = vmatmul.mubr.f32.gmra.mrb[0].mxu0 %v1477
        %v1568 = vpop.f32.mrb[0].mxu0
        %v1569 = vadd.f32 0.0, %v1568
        %v1570 = vpop.f32.mrb[0].mxu0
        %1571 = vmatprep.mubr.f32.mxu0 0.0
        %1572 = vmatmul.mubr.f32.gmra.mrb[0].mxu0 %v1480
        %v1573 = vpop.f32.mrb[0].mxu0
        %v1574 = vadd.f32 0.0, %v1573
        %v1575 = vpop.f32.mrb[0].mxu0
        %1576 = vmatprep.mubr.f32.mxu0 0.0
        %1577 = vmatmul.mubr.f32.gmra.mrb[0].mxu0 %v1483
        %v1578 = vpop.f32.mrb[0].mxu0
        %v1579 = vadd.f32 0.0, %v1578
        %v1580 = vpop.f32.mrb[0].mxu0
        %1581 = vmatprep.mubr.f32.mxu0 0.0
        %1582 = vmatmul.mubr.f32.gmra.mrb[0].mxu0 %v1486
        %v1583 = vpop.f32.mrb[0].mxu0
        %v1584 = vadd.f32 0.0, %v1583
        %v1585 = vpop.f32.mrb[0].mxu0
        %1586 = vmatprep.mubr.f32.mxu0 0.0
        %1587 = vmatmul.mubr.f32.gmra.mrb[0].mxu0 %v1489
        %v1588 = vpop.f32.mrb[0].mxu0
        %v1589 = vadd.f32 0.0, %v1588
        %v1590 = vpop.f32.mrb[0].mxu0
        %1591 = vmatprep.mubr.f32.mxu0 0.0
        %1592 = vmatmul.mubr.f32.gmra.mrb[0].mxu0 %v1492
        %v1593 = vpop.f32.mrb[0].mxu0
        %v1594 = vadd.f32 0.0, %v1593
        %v1595 = vpop.f32.mrb[0].mxu0
        %1596 = vmatprep.mubr.f32.mxu0 0.0
        %1597 = vmatmul.mubr.f32.gmra.mrb[0].mxu0 %v1495
        %v1598 = vpop.f32.mrb[0].mxu0
        %v1599 = vadd.f32 0.0, %v1598
        %v1600 = vpop.f32.mrb[0].mxu0
        %1601 = vdwg.mxu0
        %v1602 = vadd.f32 %v1452, %v1564
        %v1603 = vadd.f32 %v1453, %v1569
        %v1604 = vadd.f32 %v1454, %v1574
        %v1605 = vadd.f32 %v1455, %v1579
        %v1606 = vadd.f32 %v1456, %v1584
        %v1607 = vadd.f32 %v1457, %v1589
        %v1608 = vadd.f32 %v1458, %v1594
        %v1609 = vadd.f32 %v1459, %v1599
        %v1610 = vld [vmem:[%s393 + $0x10] sm:$0xff]
        %v1611 = vld [vmem:[%s393 + $0x18] sm:$0xff]
        %v1612 = vld [vmem:[%s393 + $0x20] sm:$0xff]
        %v1613 = vld [vmem:[%s393 + $0x28] sm:$0xff]
        %v1614 = vld [vmem:[%s393 + $0x30] sm:$0xff]
        %v1615 = vld [vmem:[%s393 + $0x38] sm:$0xff]
        %v1616 = vld [vmem:[%s393 + $0x40] sm:$0xff]
        %v1617 = vld [vmem:[%s393 + $0x48] sm:$0xff]
        %s1618 = scalar_lea.vmem [#allocation9], 256
        %v1619 = vld [vmem:[%s1618] sm:$0xff]
        %v1620 = vld [vmem:[%s1618 + $0x8] sm:$0xff]
        %v1621 = vld [vmem:[%s1618 + $0x10] sm:$0xff]
        %v1622 = vld [vmem:[%s1618 + $0x18] sm:$0xff]
        %v1624 = vsel %vm272, %v1610, 0
        %v1627 = vsel %vm272, %v1611, 0
        %v1630 = vsel %vm272, %v1612, 0
        %v1633 = vsel %vm272, %v1613, 0
        %v1636 = vsel %vm272, %v1614, 0
        %v1639 = vsel %vm272, %v1615, 0
        %v1642 = vsel %vm272, %v1616, 0
        %v1645 = vsel %vm272, %v1617, 0
        %1647 = vmatprep.subr.mxu0 0.0
        %1648 = vmatpush1.msra.mxu0 %v1619
        %1649 = vmatprep.subr.mxu0 0.0
        %1650 = vmatpush1.msra.mxu0 %v1620
        %1651 = vmatprep.subr.mxu0 0.0
        %1652 = vmatpush1.msra.mxu0 %v1621
        %1653 = vmatprep.subr.mxu0 0.0
        %1654 = vmatpush1.msra.mxu0 %v1622
        %1655 = vmatprep.subr.mxu0 0.0
        %1656 = vmatpush1.msra.mxu0 0.0
        %1657 = vmatprep.subr.mxu0 0.0
        %1658 = vmatpush1.msra.mxu0 0.0
        %1659 = vmatprep.subr.mxu0 0.0
        %1660 = vmatpush1.msra.mxu0 0.0
        %1661 = vmatprep.subr.mxu0 0.0
        %1662 = vmatpush1.msra.mxu0 0.0
        %1663 = vmatprep.subr.mxu0 0.0
        %1664 = vmatpush1.msra.mxu0 0.0
        %1665 = vmatprep.subr.mxu0 0.0
        %1666 = vmatpush1.msra.mxu0 0.0
        %1667 = vmatprep.subr.mxu0 0.0
        %1668 = vmatpush1.msra.mxu0 0.0
        %1669 = vmatprep.subr.mxu0 0.0
        %1670 = vmatpush1.msra.mxu0 0.0
        %1671 = vmatprep.subr.mxu0 0.0
        %1672 = vmatpush1.msra.mxu0 0.0
        %1673 = vmatprep.subr.mxu0 0.0
        %1674 = vmatpush1.msra.mxu0 0.0
        %1675 = vmatprep.subr.mxu0 0.0
        %1676 = vmatpush1.msra.mxu0 0.0
        %1677 = vmatprep.subr.mxu0 0.0
        %1678 = vmatpush1.msra.mxu0 0.0
        %1679 = vmatprep.subr.mxu0 0.0
        %1680 = vmatpush1.msra.mxu0 0.0
        %1681 = vmatprep.subr.mxu0 0.0
        %1682 = vmatpush1.msra.mxu0 0.0
        %1683 = vmatprep.subr.mxu0 0.0
        %1684 = vmatpush1.msra.mxu0 0.0
        %1685 = vmatprep.subr.mxu0 0.0
        %1686 = vmatpush1.msra.mxu0 0.0
        %1687 = vmatprep.subr.mxu0 0.0
        %1688 = vmatpush1.msra.mxu0 0.0
        %1689 = vmatprep.subr.mxu0 0.0
        %1690 = vmatpush1.msra.mxu0 0.0
        %1691 = vmatprep.subr.mxu0 0.0
        %1692 = vmatpush1.msra.mxu0 0.0
        %1693 = vmatprep.subr.mxu0 0.0
        %1694 = vmatpush1.msra.mxu0 0.0
        %1695 = vmatprep.subr.mxu0 0.0
        %1696 = vmatpush1.msra.mxu0 0.0
        %1697 = vmatprep.subr.mxu0 0.0
        %1698 = vmatpush1.msra.mxu0 0.0
        %1699 = vmatprep.subr.mxu0 0.0
        %1700 = vmatpush1.msra.mxu0 0.0
        %1701 = vmatprep.subr.mxu0 0.0
        %1702 = vmatpush1.msra.mxu0 0.0
        %1703 = vmatprep.subr.mxu0 0.0
        %1704 = vmatpush1.msra.mxu0 0.0
        %1705 = vmatprep.subr.mxu0 0.0
        %1706 = vmatpush1.msra.mxu0 0.0
        %1707 = vmatprep.subr.mxu0 0.0
        %1708 = vmatpush1.msra.mxu0 0.0
        %1709 = vmatprep.subr.mxu0 0.0
        %1710 = vmatpush1.msra.mxu0 0.0
        %1711 = vmatprep.mubr.f32.mxu0 0.0
        %1712 = vmatmul.mubr.f32.gmra.mrb[0].mxu0 %v1624
        %v1713 = vpop.f32.mrb[0].mxu0
        %v1714 = vadd.f32 0.0, %v1713
        %v1715 = vpop.f32.mrb[0].mxu0
        %1716 = vmatprep.mubr.f32.mxu0 0.0
        %1717 = vmatmul.mubr.f32.gmra.mrb[0].mxu0 %v1627
        %v1718 = vpop.f32.mrb[0].mxu0
        %v1719 = vadd.f32 0.0, %v1718
        %v1720 = vpop.f32.mrb[0].mxu0
        %1721 = vmatprep.mubr.f32.mxu0 0.0
        %1722 = vmatmul.mubr.f32.gmra.mrb[0].mxu0 %v1630
        %v1723 = vpop.f32.mrb[0].mxu0
        %v1724 = vadd.f32 0.0, %v1723
        %v1725 = vpop.f32.mrb[0].mxu0
        %1726 = vmatprep.mubr.f32.mxu0 0.0
        %1727 = vmatmul.mubr.f32.gmra.mrb[0].mxu0 %v1633
        %v1728 = vpop.f32.mrb[0].mxu0
        %v1729 = vadd.f32 0.0, %v1728
        %v1730 = vpop.f32.mrb[0].mxu0
        %1731 = vmatprep.mubr.f32.mxu0 0.0
        %1732 = vmatmul.mubr.f32.gmra.mrb[0].mxu0 %v1636
        %v1733 = vpop.f32.mrb[0].mxu0
        %v1734 = vadd.f32 0.0, %v1733
        %v1735 = vpop.f32.mrb[0].mxu0
        %1736 = vmatprep.mubr.f32.mxu0 0.0
        %1737 = vmatmul.mubr.f32.gmra.mrb[0].mxu0 %v1639
        %v1738 = vpop.f32.mrb[0].mxu0
        %v1739 = vadd.f32 0.0, %v1738
        %v1740 = vpop.f32.mrb[0].mxu0
        %1741 = vmatprep.mubr.f32.mxu0 0.0
        %1742 = vmatmul.mubr.f32.gmra.mrb[0].mxu0 %v1642
        %v1743 = vpop.f32.mrb[0].mxu0
        %v1744 = vadd.f32 0.0, %v1743
        %v1745 = vpop.f32.mrb[0].mxu0
        %1746 = vmatprep.mubr.f32.mxu0 0.0
        %1747 = vmatmul.mubr.f32.gmra.mrb[0].mxu0 %v1645
        %v1748 = vpop.f32.mrb[0].mxu0
        %v1749 = vadd.f32 0.0, %v1748
        %v1750 = vpop.f32.mrb[0].mxu0
        %1751 = vdwg.mxu0
        %v1752 = vadd.f32 %v1602, %v1714
        %v1753 = vadd.f32 %v1603, %v1719
        %v1754 = vadd.f32 %v1604, %v1724
        %v1755 = vadd.f32 %v1605, %v1729
        %v1756 = vadd.f32 %v1606, %v1734
        %v1757 = vadd.f32 %v1607, %v1739
        %v1758 = vadd.f32 %v1608, %v1744
        %v1759 = vadd.f32 %v1609, %v1749
        %v1760 = vmax.f32 %v1752, 0.0
        %v1761 = vmax.f32 %v1753, 0.0
        %v1762 = vmax.f32 %v1754, 0.0
        %v1763 = vmax.f32 %v1755, 0.0
        %v1764 = vmax.f32 %v1756, 0.0
        %v1765 = vmax.f32 %v1757, 0.0
        %v1766 = vmax.f32 %v1758, 0.0
        %v1767 = vmax.f32 %v1759, 0.0
        %s1768 = scalar_lea.vmem [#allocation3], 16
        %1769 = vst [vmem:[%s1768 + $0x1] sm:$0xff] %v1760
        %1770 = vst [vmem:[%s1768 + $0x11] sm:$0xff] %v1761
        %1771 = vst [vmem:[%s1768 + $0x21] sm:$0xff] %v1762
        %1772 = vst [vmem:[%s1768 + $0x31] sm:$0xff] %v1763
        %1773 = vst [vmem:[%s1768 + $0x41] sm:$0xff] %v1764
        %1774 = vst [vmem:[%s1768 + $0x51] sm:$0xff] %v1765
        %1775 = vst [vmem:[%s1768 + $0x61] sm:$0xff] %v1766
        %1776 = vst [vmem:[%s1768 + $0x71] sm:$0xff] %v1767
        %v1777 = vld [vmem:[#allocation3] sm:$0xff]
        %v1778 = vld [vmem:[#allocation3 + $0x10] sm:$0xff]
        %v1779 = vld [vmem:[#allocation3 + $0x20] sm:$0xff]
        %v1780 = vld [vmem:[#allocation3 + $0x30] sm:$0xff]
        %v1781 = vld [vmem:[#allocation3 + $0x40] sm:$0xff]
        %v1782 = vld [vmem:[#allocation3 + $0x50] sm:$0xff]
        %v1783 = vld [vmem:[#allocation3 + $0x60] sm:$0xff]
        %v1784 = vld [vmem:[#allocation3 + $0x70] sm:$0xff]
        %v1785 = vld [vmem:[#allocation3 + $0x80] sm:$0xff]
        %v1786 = vld [vmem:[#allocation3 + $0x90] sm:$0xff]
        %1787 = vst [vmem:[#allocation5] sm:$0xff] %v1777
        %1788 = vst [vmem:[#allocation5 + $0x8] sm:$0xff] %v1778
        %1789 = vst [vmem:[#allocation5 + $0x10] sm:$0xff] %v1779
        %1790 = vst [vmem:[#allocation5 + $0x18] sm:$0xff] %v1780
        %1791 = vst [vmem:[#allocation5 + $0x20] sm:$0xff] %v1781
        %1792 = vst [vmem:[#allocation5 + $0x28] sm:$0xff] %v1782
        %1793 = vst [vmem:[#allocation5 + $0x30] sm:$0xff] %v1783
        %1794 = vst [vmem:[#allocation5 + $0x38] sm:$0xff] %v1784
        %1795 = vst [vmem:[#allocation5 + $0x40] sm:$0xff] %v1785
        %1796 = vst [vmem:[#allocation5 + $0x48] sm:$0xff] %v1786
        %v1797 = vld [vmem:[#allocation3 + $0x1] sm:$0xff]
        %v1798 = vld [vmem:[#allocation3 + $0x11] sm:$0xff]
        %v1799 = vld [vmem:[#allocation3 + $0x21] sm:$0xff]
        %v1800 = vld [vmem:[#allocation3 + $0x31] sm:$0xff]
        %v1801 = vld [vmem:[#allocation3 + $0x41] sm:$0xff]
        %v1802 = vld [vmem:[#allocation3 + $0x51] sm:$0xff]
        %v1803 = vld [vmem:[#allocation3 + $0x61] sm:$0xff]
        %v1804 = vld [vmem:[#allocation3 + $0x71] sm:$0xff]
        %v1805 = vld [vmem:[#allocation3 + $0x81] sm:$0xff]
        %v1806 = vld [vmem:[#allocation3 + $0x91] sm:$0xff]
        %s1807 = scalar_lea.vmem [#allocation5], 80
        %1808 = vst [vmem:[%s1807] sm:$0xff] %v1797
        %1809 = vst [vmem:[%s1807 + $0x8] sm:$0xff] %v1798
        %1810 = vst [vmem:[%s1807 + $0x10] sm:$0xff] %v1799
        %1811 = vst [vmem:[%s1807 + $0x18] sm:$0xff] %v1800
        %1812 = vst [vmem:[%s1807 + $0x20] sm:$0xff] %v1801
        %1813 = vst [vmem:[%s1807 + $0x28] sm:$0xff] %v1802
        %1814 = vst [vmem:[%s1807 + $0x30] sm:$0xff] %v1803
        %1815 = vst [vmem:[%s1807 + $0x38] sm:$0xff] %v1804
        %1816 = vst [vmem:[%s1807 + $0x40] sm:$0xff] %v1805
        %1817 = vst [vmem:[%s1807 + $0x48] sm:$0xff] %v1806
        %v1818 = vld [vmem:[#allocation3 + $0x2] sm:$0xff]
        %v1819 = vld [vmem:[#allocation3 + $0x12] sm:$0xff]
        %v1820 = vld [vmem:[#allocation3 + $0x22] sm:$0xff]
        %v1821 = vld [vmem:[#allocation3 + $0x32] sm:$0xff]
        %v1822 = vld [vmem:[#allocation3 + $0x42] sm:$0xff]
        %v1823 = vld [vmem:[#allocation3 + $0x52] sm:$0xff]
        %v1824 = vld [vmem:[#allocation3 + $0x62] sm:$0xff]
        %v1825 = vld [vmem:[#allocation3 + $0x72] sm:$0xff]
        %v1826 = vld [vmem:[#allocation3 + $0x82] sm:$0xff]
        %v1827 = vld [vmem:[#allocation3 + $0x92] sm:$0xff]
        %s1828 = scalar_lea.vmem [#allocation5], 160
        %1829 = vst [vmem:[%s1828] sm:$0xff] %v1818
        %1830 = vst [vmem:[%s1828 + $0x8] sm:$0xff] %v1819
        %1831 = vst [vmem:[%s1828 + $0x10] sm:$0xff] %v1820
        %1832 = vst [vmem:[%s1828 + $0x18] sm:$0xff] %v1821
        %1833 = vst [vmem:[%s1828 + $0x20] sm:$0xff] %v1822
        %1834 = vst [vmem:[%s1828 + $0x28] sm:$0xff] %v1823
        %1835 = vst [vmem:[%s1828 + $0x30] sm:$0xff] %v1824
        %1836 = vst [vmem:[%s1828 + $0x38] sm:$0xff] %v1825
        %1837 = vst [vmem:[%s1828 + $0x40] sm:$0xff] %v1826
        %1838 = vst [vmem:[%s1828 + $0x48] sm:$0xff] %v1827
        %v1839 = vld [vmem:[%s4] sm:$0x1]
        %v1841 = vlaneseq
        %v1842 = vshrl.u32 %v1841, 7
        %v1843 = vsub.s32 0, %v1842
        %v1844 = vrot.slane %v1839, %v1843
        %v1846 = vld [vmem:[#allocation5] sm:$0xff]
        %v1847 = vld [vmem:[#allocation5 + $0x8] sm:$0xff]
        %v1848 = vld [vmem:[#allocation5 + $0x10] sm:$0xff]
        %v1849 = vld [vmem:[#allocation5 + $0x18] sm:$0xff]
        %v1850 = vld [vmem:[#allocation5 + $0x20] sm:$0xff]
        %v1851 = vld [vmem:[#allocation5 + $0x28] sm:$0xff]
        %v1852 = vld [vmem:[#allocation5 + $0x30] sm:$0xff]
        %v1853 = vld [vmem:[#allocation5 + $0x38] sm:$0xff]
        %v1854 = vld [vmem:[#allocation11] sm:$0xff]
        %v1855 = vld [vmem:[#allocation11 + $0x8] sm:$0xff]
        %v1856 = vld [vmem:[#allocation11 + $0x10] sm:$0xff]
        %v1857 = vld [vmem:[#allocation11 + $0x18] sm:$0xff]
        %v1858 = vld [vmem:[#allocation11 + $0x20] sm:$0xff]
        %v1859 = vld [vmem:[#allocation11 + $0x28] sm:$0xff]
        %v1860 = vld [vmem:[#allocation11 + $0x30] sm:$0xff]
        %v1861 = vld [vmem:[#allocation11 + $0x38] sm:$0xff]
        %v1862 = vld [vmem:[#allocation11 + $0x40] sm:$0xff]
        %v1863 = vld [vmem:[#allocation11 + $0x48] sm:$0xff]
        %v1864 = vld [vmem:[#allocation11 + $0x50] sm:$0xff]
        %v1865 = vld [vmem:[#allocation11 + $0x58] sm:$0xff]
        %v1866 = vld [vmem:[#allocation11 + $0x60] sm:$0xff]
        %v1867 = vld [vmem:[#allocation11 + $0x68] sm:$0xff]
        %v1868 = vld [vmem:[#allocation11 + $0x70] sm:$0xff]
        %v1869 = vld [vmem:[#allocation11 + $0x78] sm:$0xff]
        %1870 = vmatprep.subr.mxu0 0.0
        %1871 = vmatpush1.msra.mxu0 %v1854
        %1872 = vmatprep.subr.mxu0 0.0
        %1873 = vmatpush1.msra.mxu0 %v1855
        %1874 = vmatprep.subr.mxu0 0.0
        %1875 = vmatpush1.msra.mxu0 %v1856
        %1876 = vmatprep.subr.mxu0 0.0
        %1877 = vmatpush1.msra.mxu0 %v1857
        %1878 = vmatprep.subr.mxu0 0.0
        %1879 = vmatpush1.msra.mxu0 %v1858
        %1880 = vmatprep.subr.mxu0 0.0
        %1881 = vmatpush1.msra.mxu0 %v1859
        %1882 = vmatprep.subr.mxu0 0.0
        %1883 = vmatpush1.msra.mxu0 %v1860
        %1884 = vmatprep.subr.mxu0 0.0
        %1885 = vmatpush1.msra.mxu0 %v1861
        %1886 = vmatprep.subr.mxu0 0.0
        %1887 = vmatpush1.msra.mxu0 %v1862
        %1888 = vmatprep.subr.mxu0 0.0
        %1889 = vmatpush1.msra.mxu0 %v1863
        %1890 = vmatprep.subr.mxu0 0.0
        %1891 = vmatpush1.msra.mxu0 %v1864
        %1892 = vmatprep.subr.mxu0 0.0
        %1893 = vmatpush1.msra.mxu0 %v1865
        %1894 = vmatprep.subr.mxu0 0.0
        %1895 = vmatpush1.msra.mxu0 %v1866
        %1896 = vmatprep.subr.mxu0 0.0
        %1897 = vmatpush1.msra.mxu0 %v1867
        %1898 = vmatprep.subr.mxu0 0.0
        %1899 = vmatpush1.msra.mxu0 %v1868
        %1900 = vmatprep.subr.mxu0 0.0
        %1901 = vmatpush1.msra.mxu0 %v1869
        %1902 = vmatprep.subr.mxu0 0.0
        %1903 = vmatpush1.msra.mxu0 0.0
        %1904 = vmatprep.subr.mxu0 0.0
        %1905 = vmatpush1.msra.mxu0 0.0
        %1906 = vmatprep.subr.mxu0 0.0
        %1907 = vmatpush1.msra.mxu0 0.0
        %1908 = vmatprep.subr.mxu0 0.0
        %1909 = vmatpush1.msra.mxu0 0.0
        %1910 = vmatprep.subr.mxu0 0.0
        %1911 = vmatpush1.msra.mxu0 0.0
        %1912 = vmatprep.subr.mxu0 0.0
        %1913 = vmatpush1.msra.mxu0 0.0
        %1914 = vmatprep.subr.mxu0 0.0
        %1915 = vmatpush1.msra.mxu0 0.0
        %1916 = vmatprep.subr.mxu0 0.0
        %1917 = vmatpush1.msra.mxu0 0.0
        %1918 = vmatprep.subr.mxu0 0.0
        %1919 = vmatpush1.msra.mxu0 0.0
        %1920 = vmatprep.subr.mxu0 0.0
        %1921 = vmatpush1.msra.mxu0 0.0
        %1922 = vmatprep.subr.mxu0 0.0
        %1923 = vmatpush1.msra.mxu0 0.0
        %1924 = vmatprep.subr.mxu0 0.0
        %1925 = vmatpush1.msra.mxu0 0.0
        %1926 = vmatprep.subr.mxu0 0.0
        %1927 = vmatpush1.msra.mxu0 0.0
        %1928 = vmatprep.subr.mxu0 0.0
        %1929 = vmatpush1.msra.mxu0 0.0
        %1930 = vmatprep.subr.mxu0 0.0
        %1931 = vmatpush1.msra.mxu0 0.0
        %1932 = vmatprep.subr.mxu0 0.0
        %1933 = vmatpush1.msra.mxu0 0.0
        %1934 = vmatprep.mubr.f32.mxu0 0.0
        %1935 = vmatmul.mubr.f32.gmra.mrb[0].mxu0 %v1846
        %v1936 = vpop.f32.mrb[0].mxu0
        %v1937 = vadd.f32 0.0, %v1936
        %v1938 = vpop.f32.mrb[0].mxu0
        %1939 = vmatprep.mubr.f32.mxu0 0.0
        %1940 = vmatmul.mubr.f32.gmra.mrb[0].mxu0 %v1847
        %v1941 = vpop.f32.mrb[0].mxu0
        %v1942 = vadd.f32 0.0, %v1941
        %v1943 = vpop.f32.mrb[0].mxu0
        %1944 = vmatprep.mubr.f32.mxu0 0.0
        %1945 = vmatmul.mubr.f32.gmra.mrb[0].mxu0 %v1848
        %v1946 = vpop.f32.mrb[0].mxu0
        %v1947 = vadd.f32 0.0, %v1946
        %v1948 = vpop.f32.mrb[0].mxu0
        %1949 = vmatprep.mubr.f32.mxu0 0.0
        %1950 = vmatmul.mubr.f32.gmra.mrb[0].mxu0 %v1849
        %v1951 = vpop.f32.mrb[0].mxu0
        %v1952 = vadd.f32 0.0, %v1951
        %v1953 = vpop.f32.mrb[0].mxu0
        %1954 = vmatprep.mubr.f32.mxu0 0.0
        %1955 = vmatmul.mubr.f32.gmra.mrb[0].mxu0 %v1850
        %v1956 = vpop.f32.mrb[0].mxu0
        %v1957 = vadd.f32 0.0, %v1956
        %v1958 = vpop.f32.mrb[0].mxu0
        %1959 = vmatprep.mubr.f32.mxu0 0.0
        %1960 = vmatmul.mubr.f32.gmra.mrb[0].mxu0 %v1851
        %v1961 = vpop.f32.mrb[0].mxu0
        %v1962 = vadd.f32 0.0, %v1961
        %v1963 = vpop.f32.mrb[0].mxu0
        %1964 = vmatprep.mubr.f32.mxu0 0.0
        %1965 = vmatmul.mubr.f32.gmra.mrb[0].mxu0 %v1852
        %v1966 = vpop.f32.mrb[0].mxu0
        %v1967 = vadd.f32 0.0, %v1966
        %v1968 = vpop.f32.mrb[0].mxu0
        %1969 = vmatprep.mubr.f32.mxu0 0.0
        %1970 = vmatmul.mubr.f32.gmra.mrb[0].mxu0 %v1853
        %v1971 = vpop.f32.mrb[0].mxu0
        %v1972 = vadd.f32 0.0, %v1971
        %v1973 = vpop.f32.mrb[0].mxu0
        %1974 = vdwg.mxu0
        %v1975 = vadd.f32 %v1844, %v1937
        %v1976 = vadd.f32 %v1844, %v1942
        %v1977 = vadd.f32 %v1844, %v1947
        %v1978 = vadd.f32 %v1844, %v1952
        %v1979 = vadd.f32 %v1844, %v1957
        %v1980 = vadd.f32 %v1844, %v1962
        %v1981 = vadd.f32 %v1844, %v1967
        %v1982 = vadd.f32 %v1844, %v1972
        %v1983 = vld [vmem:[%s1807] sm:$0xff]
        %v1984 = vld [vmem:[%s1807 + $0x8] sm:$0xff]
        %v1985 = vld [vmem:[%s1807 + $0x10] sm:$0xff]
        %v1986 = vld [vmem:[%s1807 + $0x18] sm:$0xff]
        %v1987 = vld [vmem:[%s1807 + $0x20] sm:$0xff]
        %v1988 = vld [vmem:[%s1807 + $0x28] sm:$0xff]
        %v1989 = vld [vmem:[%s1807 + $0x30] sm:$0xff]
        %v1990 = vld [vmem:[%s1807 + $0x38] sm:$0xff]
        %s1991 = scalar_lea.vmem [#allocation11], 128
        %v1992 = vld [vmem:[%s1991] sm:$0xff]
        %v1993 = vld [vmem:[%s1991 + $0x8] sm:$0xff]
        %v1994 = vld [vmem:[%s1991 + $0x10] sm:$0xff]
        %v1995 = vld [vmem:[%s1991 + $0x18] sm:$0xff]
        %v1996 = vld [vmem:[%s1991 + $0x20] sm:$0xff]
        %v1997 = vld [vmem:[%s1991 + $0x28] sm:$0xff]
        %v1998 = vld [vmem:[%s1991 + $0x30] sm:$0xff]
        %v1999 = vld [vmem:[%s1991 + $0x38] sm:$0xff]
        %v2000 = vld [vmem:[%s1991 + $0x40] sm:$0xff]
        %v2001 = vld [vmem:[%s1991 + $0x48] sm:$0xff]
        %v2002 = vld [vmem:[%s1991 + $0x50] sm:$0xff]
        %v2003 = vld [vmem:[%s1991 + $0x58] sm:$0xff]
        %v2004 = vld [vmem:[%s1991 + $0x60] sm:$0xff]
        %v2005 = vld [vmem:[%s1991 + $0x68] sm:$0xff]
        %v2006 = vld [vmem:[%s1991 + $0x70] sm:$0xff]
        %v2007 = vld [vmem:[%s1991 + $0x78] sm:$0xff]
        %2008 = vmatprep.subr.mxu0 0.0
        %2009 = vmatpush1.msra.mxu0 %v1992
        %2010 = vmatprep.subr.mxu0 0.0
        %2011 = vmatpush1.msra.mxu0 %v1993
        %2012 = vmatprep.subr.mxu0 0.0
        %2013 = vmatpush1.msra.mxu0 %v1994
        %2014 = vmatprep.subr.mxu0 0.0
        %2015 = vmatpush1.msra.mxu0 %v1995
        %2016 = vmatprep.subr.mxu0 0.0
        %2017 = vmatpush1.msra.mxu0 %v1996
        %2018 = vmatprep.subr.mxu0 0.0
        %2019 = vmatpush1.msra.mxu0 %v1997
        %2020 = vmatprep.subr.mxu0 0.0
        %2021 = vmatpush1.msra.mxu0 %v1998
        %2022 = vmatprep.subr.mxu0 0.0
        %2023 = vmatpush1.msra.mxu0 %v1999
        %2024 = vmatprep.subr.mxu0 0.0
        %2025 = vmatpush1.msra.mxu0 %v2000
        %2026 = vmatprep.subr.mxu0 0.0
        %2027 = vmatpush1.msra.mxu0 %v2001
        %2028 = vmatprep.subr.mxu0 0.0
        %2029 = vmatpush1.msra.mxu0 %v2002
        %2030 = vmatprep.subr.mxu0 0.0
        %2031 = vmatpush1.msra.mxu0 %v2003
        %2032 = vmatprep.subr.mxu0 0.0
        %2033 = vmatpush1.msra.mxu0 %v2004
        %2034 = vmatprep.subr.mxu0 0.0
        %2035 = vmatpush1.msra.mxu0 %v2005
        %2036 = vmatprep.subr.mxu0 0.0
        %2037 = vmatpush1.msra.mxu0 %v2006
        %2038 = vmatprep.subr.mxu0 0.0
        %2039 = vmatpush1.msra.mxu0 %v2007
        %2040 = vmatprep.subr.mxu0 0.0
        %2041 = vmatpush1.msra.mxu0 0.0
        %2042 = vmatprep.subr.mxu0 0.0
        %2043 = vmatpush1.msra.mxu0 0.0
        %2044 = vmatprep.subr.mxu0 0.0
        %2045 = vmatpush1.msra.mxu0 0.0
        %2046 = vmatprep.subr.mxu0 0.0
        %2047 = vmatpush1.msra.mxu0 0.0
        %2048 = vmatprep.subr.mxu0 0.0
        %2049 = vmatpush1.msra.mxu0 0.0
        %2050 = vmatprep.subr.mxu0 0.0
        %2051 = vmatpush1.msra.mxu0 0.0
        %2052 = vmatprep.subr.mxu0 0.0
        %2053 = vmatpush1.msra.mxu0 0.0
        %2054 = vmatprep.subr.mxu0 0.0
        %2055 = vmatpush1.msra.mxu0 0.0
        %2056 = vmatprep.subr.mxu0 0.0
        %2057 = vmatpush1.msra.mxu0 0.0
        %2058 = vmatprep.subr.mxu0 0.0
        %2059 = vmatpush1.msra.mxu0 0.0
        %2060 = vmatprep.subr.mxu0 0.0
        %2061 = vmatpush1.msra.mxu0 0.0
        %2062 = vmatprep.subr.mxu0 0.0
        %2063 = vmatpush1.msra.mxu0 0.0
        %2064 = vmatprep.subr.mxu0 0.0
        %2065 = vmatpush1.msra.mxu0 0.0
        %2066 = vmatprep.subr.mxu0 0.0
        %2067 = vmatpush1.msra.mxu0 0.0
        %2068 = vmatprep.subr.mxu0 0.0
        %2069 = vmatpush1.msra.mxu0 0.0
        %2070 = vmatprep.subr.mxu0 0.0
        %2071 = vmatpush1.msra.mxu0 0.0
        %2072 = vmatprep.mubr.f32.mxu0 0.0
        %2073 = vmatmul.mubr.f32.gmra.mrb[0].mxu0 %v1983
        %v2074 = vpop.f32.mrb[0].mxu0
        %v2075 = vadd.f32 0.0, %v2074
        %v2076 = vpop.f32.mrb[0].mxu0
        %2077 = vmatprep.mubr.f32.mxu0 0.0
        %2078 = vmatmul.mubr.f32.gmra.mrb[0].mxu0 %v1984
        %v2079 = vpop.f32.mrb[0].mxu0
        %v2080 = vadd.f32 0.0, %v2079
        %v2081 = vpop.f32.mrb[0].mxu0
        %2082 = vmatprep.mubr.f32.mxu0 0.0
        %2083 = vmatmul.mubr.f32.gmra.mrb[0].mxu0 %v1985
        %v2084 = vpop.f32.mrb[0].mxu0
        %v2085 = vadd.f32 0.0, %v2084
        %v2086 = vpop.f32.mrb[0].mxu0
        %2087 = vmatprep.mubr.f32.mxu0 0.0
        %2088 = vmatmul.mubr.f32.gmra.mrb[0].mxu0 %v1986
        %v2089 = vpop.f32.mrb[0].mxu0
        %v2090 = vadd.f32 0.0, %v2089
        %v2091 = vpop.f32.mrb[0].mxu0
        %2092 = vmatprep.mubr.f32.mxu0 0.0
        %2093 = vmatmul.mubr.f32.gmra.mrb[0].mxu0 %v1987
        %v2094 = vpop.f32.mrb[0].mxu0
        %v2095 = vadd.f32 0.0, %v2094
        %v2096 = vpop.f32.mrb[0].mxu0
        %2097 = vmatprep.mubr.f32.mxu0 0.0
        %2098 = vmatmul.mubr.f32.gmra.mrb[0].mxu0 %v1988
        %v2099 = vpop.f32.mrb[0].mxu0
        %v2100 = vadd.f32 0.0, %v2099
        %v2101 = vpop.f32.mrb[0].mxu0
        %2102 = vmatprep.mubr.f32.mxu0 0.0
        %2103 = vmatmul.mubr.f32.gmra.mrb[0].mxu0 %v1989
        %v2104 = vpop.f32.mrb[0].mxu0
        %v2105 = vadd.f32 0.0, %v2104
        %v2106 = vpop.f32.mrb[0].mxu0
        %2107 = vmatprep.mubr.f32.mxu0 0.0
        %2108 = vmatmul.mubr.f32.gmra.mrb[0].mxu0 %v1990
        %v2109 = vpop.f32.mrb[0].mxu0
        %v2110 = vadd.f32 0.0, %v2109
        %v2111 = vpop.f32.mrb[0].mxu0
        %2112 = vdwg.mxu0
        %v2113 = vadd.f32 %v1975, %v2075
        %v2114 = vadd.f32 %v1976, %v2080
        %v2115 = vadd.f32 %v1977, %v2085
        %v2116 = vadd.f32 %v1978, %v2090
        %v2117 = vadd.f32 %v1979, %v2095
        %v2118 = vadd.f32 %v1980, %v2100
        %v2119 = vadd.f32 %v1981, %v2105
        %v2120 = vadd.f32 %v1982, %v2110
        %v2121 = vld [vmem:[%s1828] sm:$0xff]
        %v2122 = vld [vmem:[%s1828 + $0x8] sm:$0xff]
        %v2123 = vld [vmem:[%s1828 + $0x10] sm:$0xff]
        %v2124 = vld [vmem:[%s1828 + $0x18] sm:$0xff]
        %v2125 = vld [vmem:[%s1828 + $0x20] sm:$0xff]
        %v2126 = vld [vmem:[%s1828 + $0x28] sm:$0xff]
        %v2127 = vld [vmem:[%s1828 + $0x30] sm:$0xff]
        %v2128 = vld [vmem:[%s1828 + $0x38] sm:$0xff]
        %s2129 = scalar_lea.vmem [#allocation11], 256
        %v2130 = vld [vmem:[%s2129] sm:$0xff]
        %v2131 = vld [vmem:[%s2129 + $0x8] sm:$0xff]
        %v2132 = vld [vmem:[%s2129 + $0x10] sm:$0xff]
        %v2133 = vld [vmem:[%s2129 + $0x18] sm:$0xff]
        %v2134 = vld [vmem:[%s2129 + $0x20] sm:$0xff]
        %v2135 = vld [vmem:[%s2129 + $0x28] sm:$0xff]
        %v2136 = vld [vmem:[%s2129 + $0x30] sm:$0xff]
        %v2137 = vld [vmem:[%s2129 + $0x38] sm:$0xff]
        %v2138 = vld [vmem:[%s2129 + $0x40] sm:$0xff]
        %v2139 = vld [vmem:[%s2129 + $0x48] sm:$0xff]
        %v2140 = vld [vmem:[%s2129 + $0x50] sm:$0xff]
        %v2141 = vld [vmem:[%s2129 + $0x58] sm:$0xff]
        %v2142 = vld [vmem:[%s2129 + $0x60] sm:$0xff]
        %v2143 = vld [vmem:[%s2129 + $0x68] sm:$0xff]
        %v2144 = vld [vmem:[%s2129 + $0x70] sm:$0xff]
        %v2145 = vld [vmem:[%s2129 + $0x78] sm:$0xff]
        %2146 = vmatprep.subr.mxu0 0.0
        %2147 = vmatpush1.msra.mxu0 %v2130
        %2148 = vmatprep.subr.mxu0 0.0
        %2149 = vmatpush1.msra.mxu0 %v2131
        %2150 = vmatprep.subr.mxu0 0.0
        %2151 = vmatpush1.msra.mxu0 %v2132
        %2152 = vmatprep.subr.mxu0 0.0
        %2153 = vmatpush1.msra.mxu0 %v2133
        %2154 = vmatprep.subr.mxu0 0.0
        %2155 = vmatpush1.msra.mxu0 %v2134
        %2156 = vmatprep.subr.mxu0 0.0
        %2157 = vmatpush1.msra.mxu0 %v2135
        %2158 = vmatprep.subr.mxu0 0.0
        %2159 = vmatpush1.msra.mxu0 %v2136
        %2160 = vmatprep.subr.mxu0 0.0
        %2161 = vmatpush1.msra.mxu0 %v2137
        %2162 = vmatprep.subr.mxu0 0.0
        %2163 = vmatpush1.msra.mxu0 %v2138
        %2164 = vmatprep.subr.mxu0 0.0
        %2165 = vmatpush1.msra.mxu0 %v2139
        %2166 = vmatprep.subr.mxu0 0.0
        %2167 = vmatpush1.msra.mxu0 %v2140
        %2168 = vmatprep.subr.mxu0 0.0
        %2169 = vmatpush1.msra.mxu0 %v2141
        %2170 = vmatprep.subr.mxu0 0.0
        %2171 = vmatpush1.msra.mxu0 %v2142
        %2172 = vmatprep.subr.mxu0 0.0
        %2173 = vmatpush1.msra.mxu0 %v2143
        %2174 = vmatprep.subr.mxu0 0.0
        %2175 = vmatpush1.msra.mxu0 %v2144
        %2176 = vmatprep.subr.mxu0 0.0
        %2177 = vmatpush1.msra.mxu0 %v2145
        %2178 = vmatprep.subr.mxu0 0.0
        %2179 = vmatpush1.msra.mxu0 0.0
        %2180 = vmatprep.subr.mxu0 0.0
        %2181 = vmatpush1.msra.mxu0 0.0
        %2182 = vmatprep.subr.mxu0 0.0
        %2183 = vmatpush1.msra.mxu0 0.0
        %2184 = vmatprep.subr.mxu0 0.0
        %2185 = vmatpush1.msra.mxu0 0.0
        %2186 = vmatprep.subr.mxu0 0.0
        %2187 = vmatpush1.msra.mxu0 0.0
        %2188 = vmatprep.subr.mxu0 0.0
        %2189 = vmatpush1.msra.mxu0 0.0
        %2190 = vmatprep.subr.mxu0 0.0
        %2191 = vmatpush1.msra.mxu0 0.0
        %2192 = vmatprep.subr.mxu0 0.0
        %2193 = vmatpush1.msra.mxu0 0.0
        %2194 = vmatprep.subr.mxu0 0.0
        %2195 = vmatpush1.msra.mxu0 0.0
        %2196 = vmatprep.subr.mxu0 0.0
        %2197 = vmatpush1.msra.mxu0 0.0
        %2198 = vmatprep.subr.mxu0 0.0
        %2199 = vmatpush1.msra.mxu0 0.0
        %2200 = vmatprep.subr.mxu0 0.0
        %2201 = vmatpush1.msra.mxu0 0.0
        %2202 = vmatprep.subr.mxu0 0.0
        %2203 = vmatpush1.msra.mxu0 0.0
        %2204 = vmatprep.subr.mxu0 0.0
        %2205 = vmatpush1.msra.mxu0 0.0
        %2206 = vmatprep.subr.mxu0 0.0
        %2207 = vmatpush1.msra.mxu0 0.0
        %2208 = vmatprep.subr.mxu0 0.0
        %2209 = vmatpush1.msra.mxu0 0.0
        %2210 = vmatprep.mubr.f32.mxu0 0.0
        %2211 = vmatmul.mubr.f32.gmra.mrb[0].mxu0 %v2121
        %v2212 = vpop.f32.mrb[0].mxu0
        %v2213 = vadd.f32 0.0, %v2212
        %v2214 = vpop.f32.mrb[0].mxu0
        %2215 = vmatprep.mubr.f32.mxu0 0.0
        %2216 = vmatmul.mubr.f32.gmra.mrb[0].mxu0 %v2122
        %v2217 = vpop.f32.mrb[0].mxu0
        %v2218 = vadd.f32 0.0, %v2217
        %v2219 = vpop.f32.mrb[0].mxu0
        %2220 = vmatprep.mubr.f32.mxu0 0.0
        %2221 = vmatmul.mubr.f32.gmra.mrb[0].mxu0 %v2123
        %v2222 = vpop.f32.mrb[0].mxu0
        %v2223 = vadd.f32 0.0, %v2222
        %v2224 = vpop.f32.mrb[0].mxu0
        %2225 = vmatprep.mubr.f32.mxu0 0.0
        %2226 = vmatmul.mubr.f32.gmra.mrb[0].mxu0 %v2124
        %v2227 = vpop.f32.mrb[0].mxu0
        %v2228 = vadd.f32 0.0, %v2227
        %v2229 = vpop.f32.mrb[0].mxu0
        %2230 = vmatprep.mubr.f32.mxu0 0.0
        %2231 = vmatmul.mubr.f32.gmra.mrb[0].mxu0 %v2125
        %v2232 = vpop.f32.mrb[0].mxu0
        %v2233 = vadd.f32 0.0, %v2232
        %v2234 = vpop.f32.mrb[0].mxu0
        %2235 = vmatprep.mubr.f32.mxu0 0.0
        %2236 = vmatmul.mubr.f32.gmra.mrb[0].mxu0 %v2126
        %v2237 = vpop.f32.mrb[0].mxu0
        %v2238 = vadd.f32 0.0, %v2237
        %v2239 = vpop.f32.mrb[0].mxu0
        %2240 = vmatprep.mubr.f32.mxu0 0.0
        %2241 = vmatmul.mubr.f32.gmra.mrb[0].mxu0 %v2127
        %v2242 = vpop.f32.mrb[0].mxu0
        %v2243 = vadd.f32 0.0, %v2242
        %v2244 = vpop.f32.mrb[0].mxu0
        %2245 = vmatprep.mubr.f32.mxu0 0.0
        %2246 = vmatmul.mubr.f32.gmra.mrb[0].mxu0 %v2128
        %v2247 = vpop.f32.mrb[0].mxu0
        %v2248 = vadd.f32 0.0, %v2247
        %v2249 = vpop.f32.mrb[0].mxu0
        %2250 = vdwg.mxu0
        %v2251 = vadd.f32 %v2113, %v2213
        %v2252 = vadd.f32 %v2114, %v2218
        %v2253 = vadd.f32 %v2115, %v2223
        %v2254 = vadd.f32 %v2116, %v2228
        %v2255 = vadd.f32 %v2117, %v2233
        %v2256 = vadd.f32 %v2118, %v2238
        %v2257 = vadd.f32 %v2119, %v2243
        %v2258 = vadd.f32 %v2120, %v2248
        %v2259 = vld [vmem:[#allocation5 + $0x8] sm:$0xff]
        %v2260 = vld [vmem:[#allocation5 + $0x10] sm:$0xff]
        %v2261 = vld [vmem:[#allocation5 + $0x18] sm:$0xff]
        %v2262 = vld [vmem:[#allocation5 + $0x20] sm:$0xff]
        %v2263 = vld [vmem:[#allocation5 + $0x28] sm:$0xff]
        %v2264 = vld [vmem:[#allocation5 + $0x30] sm:$0xff]
        %v2265 = vld [vmem:[#allocation5 + $0x38] sm:$0xff]
        %v2266 = vld [vmem:[#allocation5 + $0x40] sm:$0xff]
        %s2267 = scalar_lea.vmem [#allocation11], 384
        %v2268 = vld [vmem:[%s2267] sm:$0xff]
        %v2269 = vld [vmem:[%s2267 + $0x8] sm:$0xff]
        %v2270 = vld [vmem:[%s2267 + $0x10] sm:$0xff]
        %v2271 = vld [vmem:[%s2267 + $0x18] sm:$0xff]
        %v2272 = vld [vmem:[%s2267 + $0x20] sm:$0xff]
        %v2273 = vld [vmem:[%s2267 + $0x28] sm:$0xff]
        %v2274 = vld [vmem:[%s2267 + $0x30] sm:$0xff]
        %v2275 = vld [vmem:[%s2267 + $0x38] sm:$0xff]
        %v2276 = vld [vmem:[%s2267 + $0x40] sm:$0xff]
        %v2277 = vld [vmem:[%s2267 + $0x48] sm:$0xff]
        %v2278 = vld [vmem:[%s2267 + $0x50] sm:$0xff]
        %v2279 = vld [vmem:[%s2267 + $0x58] sm:$0xff]
        %v2280 = vld [vmem:[%s2267 + $0x60] sm:$0xff]
        %v2281 = vld [vmem:[%s2267 + $0x68] sm:$0xff]
        %v2282 = vld [vmem:[%s2267 + $0x70] sm:$0xff]
        %v2283 = vld [vmem:[%s2267 + $0x78] sm:$0xff]
        %2284 = vmatprep.subr.mxu0 0.0
        %2285 = vmatpush1.msra.mxu0 %v2268
        %2286 = vmatprep.subr.mxu0 0.0
        %2287 = vmatpush1.msra.mxu0 %v2269
        %2288 = vmatprep.subr.mxu0 0.0
        %2289 = vmatpush1.msra.mxu0 %v2270
        %2290 = vmatprep.subr.mxu0 0.0
        %2291 = vmatpush1.msra.mxu0 %v2271
        %2292 = vmatprep.subr.mxu0 0.0
        %2293 = vmatpush1.msra.mxu0 %v2272
        %2294 = vmatprep.subr.mxu0 0.0
        %2295 = vmatpush1.msra.mxu0 %v2273
        %2296 = vmatprep.subr.mxu0 0.0
        %2297 = vmatpush1.msra.mxu0 %v2274
        %2298 = vmatprep.subr.mxu0 0.0
        %2299 = vmatpush1.msra.mxu0 %v2275
        %2300 = vmatprep.subr.mxu0 0.0
        %2301 = vmatpush1.msra.mxu0 %v2276
        %2302 = vmatprep.subr.mxu0 0.0
        %2303 = vmatpush1.msra.mxu0 %v2277
        %2304 = vmatprep.subr.mxu0 0.0
        %2305 = vmatpush1.msra.mxu0 %v2278
        %2306 = vmatprep.subr.mxu0 0.0
        %2307 = vmatpush1.msra.mxu0 %v2279
        %2308 = vmatprep.subr.mxu0 0.0
        %2309 = vmatpush1.msra.mxu0 %v2280
        %2310 = vmatprep.subr.mxu0 0.0
        %2311 = vmatpush1.msra.mxu0 %v2281
        %2312 = vmatprep.subr.mxu0 0.0
        %2313 = vmatpush1.msra.mxu0 %v2282
        %2314 = vmatprep.subr.mxu0 0.0
        %2315 = vmatpush1.msra.mxu0 %v2283
        %2316 = vmatprep.subr.mxu0 0.0
        %2317 = vmatpush1.msra.mxu0 0.0
        %2318 = vmatprep.subr.mxu0 0.0
        %2319 = vmatpush1.msra.mxu0 0.0
        %2320 = vmatprep.subr.mxu0 0.0
        %2321 = vmatpush1.msra.mxu0 0.0
        %2322 = vmatprep.subr.mxu0 0.0
        %2323 = vmatpush1.msra.mxu0 0.0
        %2324 = vmatprep.subr.mxu0 0.0
        %2325 = vmatpush1.msra.mxu0 0.0
        %2326 = vmatprep.subr.mxu0 0.0
        %2327 = vmatpush1.msra.mxu0 0.0
        %2328 = vmatprep.subr.mxu0 0.0
        %2329 = vmatpush1.msra.mxu0 0.0
        %2330 = vmatprep.subr.mxu0 0.0
        %2331 = vmatpush1.msra.mxu0 0.0
        %2332 = vmatprep.subr.mxu0 0.0
        %2333 = vmatpush1.msra.mxu0 0.0
        %2334 = vmatprep.subr.mxu0 0.0
        %2335 = vmatpush1.msra.mxu0 0.0
        %2336 = vmatprep.subr.mxu0 0.0
        %2337 = vmatpush1.msra.mxu0 0.0
        %2338 = vmatprep.subr.mxu0 0.0
        %2339 = vmatpush1.msra.mxu0 0.0
        %2340 = vmatprep.subr.mxu0 0.0
        %2341 = vmatpush1.msra.mxu0 0.0
        %2342 = vmatprep.subr.mxu0 0.0
        %2343 = vmatpush1.msra.mxu0 0.0
        %2344 = vmatprep.subr.mxu0 0.0
        %2345 = vmatpush1.msra.mxu0 0.0
        %2346 = vmatprep.subr.mxu0 0.0
        %2347 = vmatpush1.msra.mxu0 0.0
        %2348 = vmatprep.mubr.f32.mxu0 0.0
        %2349 = vmatmul.mubr.f32.gmra.mrb[0].mxu0 %v2259
        %v2350 = vpop.f32.mrb[0].mxu0
        %v2351 = vadd.f32 0.0, %v2350
        %v2352 = vpop.f32.mrb[0].mxu0
        %2353 = vmatprep.mubr.f32.mxu0 0.0
        %2354 = vmatmul.mubr.f32.gmra.mrb[0].mxu0 %v2260
        %v2355 = vpop.f32.mrb[0].mxu0
        %v2356 = vadd.f32 0.0, %v2355
        %v2357 = vpop.f32.mrb[0].mxu0
        %2358 = vmatprep.mubr.f32.mxu0 0.0
        %2359 = vmatmul.mubr.f32.gmra.mrb[0].mxu0 %v2261
        %v2360 = vpop.f32.mrb[0].mxu0
        %v2361 = vadd.f32 0.0, %v2360
        %v2362 = vpop.f32.mrb[0].mxu0
        %2363 = vmatprep.mubr.f32.mxu0 0.0
        %2364 = vmatmul.mubr.f32.gmra.mrb[0].mxu0 %v2262
        %v2365 = vpop.f32.mrb[0].mxu0
        %v2366 = vadd.f32 0.0, %v2365
        %v2367 = vpop.f32.mrb[0].mxu0
        %2368 = vmatprep.mubr.f32.mxu0 0.0
        %2369 = vmatmul.mubr.f32.gmra.mrb[0].mxu0 %v2263
        %v2370 = vpop.f32.mrb[0].mxu0
        %v2371 = vadd.f32 0.0, %v2370
        %v2372 = vpop.f32.mrb[0].mxu0
        %2373 = vmatprep.mubr.f32.mxu0 0.0
        %2374 = vmatmul.mubr.f32.gmra.mrb[0].mxu0 %v2264
        %v2375 = vpop.f32.mrb[0].mxu0
        %v2376 = vadd.f32 0.0, %v2375
        %v2377 = vpop.f32.mrb[0].mxu0
        %2378 = vmatprep.mubr.f32.mxu0 0.0
        %2379 = vmatmul.mubr.f32.gmra.mrb[0].mxu0 %v2265
        %v2380 = vpop.f32.mrb[0].mxu0
        %v2381 = vadd.f32 0.0, %v2380
        %v2382 = vpop.f32.mrb[0].mxu0
        %2383 = vmatprep.mubr.f32.mxu0 0.0
        %2384 = vmatmul.mubr.f32.gmra.mrb[0].mxu0 %v2266
        %v2385 = vpop.f32.mrb[0].mxu0
        %v2386 = vadd.f32 0.0, %v2385
        %v2387 = vpop.f32.mrb[0].mxu0
        %2388 = vdwg.mxu0
        %v2389 = vadd.f32 %v2251, %v2351
        %v2390 = vadd.f32 %v2252, %v2356
        %v2391 = vadd.f32 %v2253, %v2361
        %v2392 = vadd.f32 %v2254, %v2366
        %v2393 = vadd.f32 %v2255, %v2371
        %v2394 = vadd.f32 %v2256, %v2376
        %v2395 = vadd.f32 %v2257, %v2381
        %v2396 = vadd.f32 %v2258, %v2386
        %v2397 = vld [vmem:[%s1807 + $0x8] sm:$0xff]
        %v2398 = vld [vmem:[%s1807 + $0x10] sm:$0xff]
        %v2399 = vld [vmem:[%s1807 + $0x18] sm:$0xff]
        %v2400 = vld [vmem:[%s1807 + $0x20] sm:$0xff]
        %v2401 = vld [vmem:[%s1807 + $0x28] sm:$0xff]
        %v2402 = vld [vmem:[%s1807 + $0x30] sm:$0xff]
        %v2403 = vld [vmem:[%s1807 + $0x38] sm:$0xff]
        %v2404 = vld [vmem:[%s1807 + $0x40] sm:$0xff]
        %s2405 = scalar_lea.vmem [#allocation11], 512
        %v2406 = vld [vmem:[%s2405] sm:$0xff]
        %v2407 = vld [vmem:[%s2405 + $0x8] sm:$0xff]
        %v2408 = vld [vmem:[%s2405 + $0x10] sm:$0xff]
        %v2409 = vld [vmem:[%s2405 + $0x18] sm:$0xff]
        %v2410 = vld [vmem:[%s2405 + $0x20] sm:$0xff]
        %v2411 = vld [vmem:[%s2405 + $0x28] sm:$0xff]
        %v2412 = vld [vmem:[%s2405 + $0x30] sm:$0xff]
        %v2413 = vld [vmem:[%s2405 + $0x38] sm:$0xff]
        %v2414 = vld [vmem:[%s2405 + $0x40] sm:$0xff]
        %v2415 = vld [vmem:[%s2405 + $0x48] sm:$0xff]
        %v2416 = vld [vmem:[%s2405 + $0x50] sm:$0xff]
        %v2417 = vld [vmem:[%s2405 + $0x58] sm:$0xff]
        %v2418 = vld [vmem:[%s2405 + $0x60] sm:$0xff]
        %v2419 = vld [vmem:[%s2405 + $0x68] sm:$0xff]
        %v2420 = vld [vmem:[%s2405 + $0x70] sm:$0xff]
        %v2421 = vld [vmem:[%s2405 + $0x78] sm:$0xff]
        %2422 = vmatprep.subr.mxu0 0.0
        %2423 = vmatpush1.msra.mxu0 %v2406
        %2424 = vmatprep.subr.mxu0 0.0
        %2425 = vmatpush1.msra.mxu0 %v2407
        %2426 = vmatprep.subr.mxu0 0.0
        %2427 = vmatpush1.msra.mxu0 %v2408
        %2428 = vmatprep.subr.mxu0 0.0
        %2429 = vmatpush1.msra.mxu0 %v2409
        %2430 = vmatprep.subr.mxu0 0.0
        %2431 = vmatpush1.msra.mxu0 %v2410
        %2432 = vmatprep.subr.mxu0 0.0
        %2433 = vmatpush1.msra.mxu0 %v2411
        %2434 = vmatprep.subr.mxu0 0.0
        %2435 = vmatpush1.msra.mxu0 %v2412
        %2436 = vmatprep.subr.mxu0 0.0
        %2437 = vmatpush1.msra.mxu0 %v2413
        %2438 = vmatprep.subr.mxu0 0.0
        %2439 = vmatpush1.msra.mxu0 %v2414
        %2440 = vmatprep.subr.mxu0 0.0
        %2441 = vmatpush1.msra.mxu0 %v2415
        %2442 = vmatprep.subr.mxu0 0.0
        %2443 = vmatpush1.msra.mxu0 %v2416
        %2444 = vmatprep.subr.mxu0 0.0
        %2445 = vmatpush1.msra.mxu0 %v2417
        %2446 = vmatprep.subr.mxu0 0.0
        %2447 = vmatpush1.msra.mxu0 %v2418
        %2448 = vmatprep.subr.mxu0 0.0
        %2449 = vmatpush1.msra.mxu0 %v2419
        %2450 = vmatprep.subr.mxu0 0.0
        %2451 = vmatpush1.msra.mxu0 %v2420
        %2452 = vmatprep.subr.mxu0 0.0
        %2453 = vmatpush1.msra.mxu0 %v2421
        %2454 = vmatprep.subr.mxu0 0.0
        %2455 = vmatpush1.msra.mxu0 0.0
        %2456 = vmatprep.subr.mxu0 0.0
        %2457 = vmatpush1.msra.mxu0 0.0
        %2458 = vmatprep.subr.mxu0 0.0
        %2459 = vmatpush1.msra.mxu0 0.0
        %2460 = vmatprep.subr.mxu0 0.0
        %2461 = vmatpush1.msra.mxu0 0.0
        %2462 = vmatprep.subr.mxu0 0.0
        %2463 = vmatpush1.msra.mxu0 0.0
        %2464 = vmatprep.subr.mxu0 0.0
        %2465 = vmatpush1.msra.mxu0 0.0
        %2466 = vmatprep.subr.mxu0 0.0
        %2467 = vmatpush1.msra.mxu0 0.0
        %2468 = vmatprep.subr.mxu0 0.0
        %2469 = vmatpush1.msra.mxu0 0.0
        %2470 = vmatprep.subr.mxu0 0.0
        %2471 = vmatpush1.msra.mxu0 0.0
        %2472 = vmatprep.subr.mxu0 0.0
        %2473 = vmatpush1.msra.mxu0 0.0
        %2474 = vmatprep.subr.mxu0 0.0
        %2475 = vmatpush1.msra.mxu0 0.0
        %2476 = vmatprep.subr.mxu0 0.0
        %2477 = vmatpush1.msra.mxu0 0.0
        %2478 = vmatprep.subr.mxu0 0.0
        %2479 = vmatpush1.msra.mxu0 0.0
        %2480 = vmatprep.subr.mxu0 0.0
        %2481 = vmatpush1.msra.mxu0 0.0
        %2482 = vmatprep.subr.mxu0 0.0
        %2483 = vmatpush1.msra.mxu0 0.0
        %2484 = vmatprep.subr.mxu0 0.0
        %2485 = vmatpush1.msra.mxu0 0.0
        %2486 = vmatprep.mubr.f32.mxu0 0.0
        %2487 = vmatmul.mubr.f32.gmra.mrb[0].mxu0 %v2397
        %v2488 = vpop.f32.mrb[0].mxu0
        %v2489 = vadd.f32 0.0, %v2488
        %v2490 = vpop.f32.mrb[0].mxu0
        %2491 = vmatprep.mubr.f32.mxu0 0.0
        %2492 = vmatmul.mubr.f32.gmra.mrb[0].mxu0 %v2398
        %v2493 = vpop.f32.mrb[0].mxu0
        %v2494 = vadd.f32 0.0, %v2493
        %v2495 = vpop.f32.mrb[0].mxu0
        %2496 = vmatprep.mubr.f32.mxu0 0.0
        %2497 = vmatmul.mubr.f32.gmra.mrb[0].mxu0 %v2399
        %v2498 = vpop.f32.mrb[0].mxu0
        %v2499 = vadd.f32 0.0, %v2498
        %v2500 = vpop.f32.mrb[0].mxu0
        %2501 = vmatprep.mubr.f32.mxu0 0.0
        %2502 = vmatmul.mubr.f32.gmra.mrb[0].mxu0 %v2400
        %v2503 = vpop.f32.mrb[0].mxu0
        %v2504 = vadd.f32 0.0, %v2503
        %v2505 = vpop.f32.mrb[0].mxu0
        %2506 = vmatprep.mubr.f32.mxu0 0.0
        %2507 = vmatmul.mubr.f32.gmra.mrb[0].mxu0 %v2401
        %v2508 = vpop.f32.mrb[0].mxu0
        %v2509 = vadd.f32 0.0, %v2508
        %v2510 = vpop.f32.mrb[0].mxu0
        %2511 = vmatprep.mubr.f32.mxu0 0.0
        %2512 = vmatmul.mubr.f32.gmra.mrb[0].mxu0 %v2402
        %v2513 = vpop.f32.mrb[0].mxu0
        %v2514 = vadd.f32 0.0, %v2513
        %v2515 = vpop.f32.mrb[0].mxu0
        %2516 = vmatprep.mubr.f32.mxu0 0.0
        %2517 = vmatmul.mubr.f32.gmra.mrb[0].mxu0 %v2403
        %v2518 = vpop.f32.mrb[0].mxu0
        %v2519 = vadd.f32 0.0, %v2518
        %v2520 = vpop.f32.mrb[0].mxu0
        %2521 = vmatprep.mubr.f32.mxu0 0.0
        %2522 = vmatmul.mubr.f32.gmra.mrb[0].mxu0 %v2404
        %v2523 = vpop.f32.mrb[0].mxu0
        %v2524 = vadd.f32 0.0, %v2523
        %v2525 = vpop.f32.mrb[0].mxu0
        %2526 = vdwg.mxu0
        %v2527 = vadd.f32 %v2389, %v2489
        %v2528 = vadd.f32 %v2390, %v2494
        %v2529 = vadd.f32 %v2391, %v2499
        %v2530 = vadd.f32 %v2392, %v2504
        %v2531 = vadd.f32 %v2393, %v2509
        %v2532 = vadd.f32 %v2394, %v2514
        %v2533 = vadd.f32 %v2395, %v2519
        %v2534 = vadd.f32 %v2396, %v2524
        %v2535 = vld [vmem:[%s1828 + $0x8] sm:$0xff]
        %v2536 = vld [vmem:[%s1828 + $0x10] sm:$0xff]
        %v2537 = vld [vmem:[%s1828 + $0x18] sm:$0xff]
        %v2538 = vld [vmem:[%s1828 + $0x20] sm:$0xff]
        %v2539 = vld [vmem:[%s1828 + $0x28] sm:$0xff]
        %v2540 = vld [vmem:[%s1828 + $0x30] sm:$0xff]
        %v2541 = vld [vmem:[%s1828 + $0x38] sm:$0xff]
        %v2542 = vld [vmem:[%s1828 + $0x40] sm:$0xff]
        %s2543 = scalar_lea.vmem [#allocation11], 640
        %v2544 = vld [vmem:[%s2543] sm:$0xff]
        %v2545 = vld [vmem:[%s2543 + $0x8] sm:$0xff]
        %v2546 = vld [vmem:[%s2543 + $0x10] sm:$0xff]
        %v2547 = vld [vmem:[%s2543 + $0x18] sm:$0xff]
        %v2548 = vld [vmem:[%s2543 + $0x20] sm:$0xff]
        %v2549 = vld [vmem:[%s2543 + $0x28] sm:$0xff]
        %v2550 = vld [vmem:[%s2543 + $0x30] sm:$0xff]
        %v2551 = vld [vmem:[%s2543 + $0x38] sm:$0xff]
        %v2552 = vld [vmem:[%s2543 + $0x40] sm:$0xff]
        %v2553 = vld [vmem:[%s2543 + $0x48] sm:$0xff]
        %v2554 = vld [vmem:[%s2543 + $0x50] sm:$0xff]
        %v2555 = vld [vmem:[%s2543 + $0x58] sm:$0xff]
        %v2556 = vld [vmem:[%s2543 + $0x60] sm:$0xff]
        %v2557 = vld [vmem:[%s2543 + $0x68] sm:$0xff]
        %v2558 = vld [vmem:[%s2543 + $0x70] sm:$0xff]
        %v2559 = vld [vmem:[%s2543 + $0x78] sm:$0xff]
        %2560 = vmatprep.subr.mxu0 0.0
        %2561 = vmatpush1.msra.mxu0 %v2544
        %2562 = vmatprep.subr.mxu0 0.0
        %2563 = vmatpush1.msra.mxu0 %v2545
        %2564 = vmatprep.subr.mxu0 0.0
        %2565 = vmatpush1.msra.mxu0 %v2546
        %2566 = vmatprep.subr.mxu0 0.0
        %2567 = vmatpush1.msra.mxu0 %v2547
        %2568 = vmatprep.subr.mxu0 0.0
        %2569 = vmatpush1.msra.mxu0 %v2548
        %2570 = vmatprep.subr.mxu0 0.0
        %2571 = vmatpush1.msra.mxu0 %v2549
        %2572 = vmatprep.subr.mxu0 0.0
        %2573 = vmatpush1.msra.mxu0 %v2550
        %2574 = vmatprep.subr.mxu0 0.0
        %2575 = vmatpush1.msra.mxu0 %v2551
        %2576 = vmatprep.subr.mxu0 0.0
        %2577 = vmatpush1.msra.mxu0 %v2552
        %2578 = vmatprep.subr.mxu0 0.0
        %2579 = vmatpush1.msra.mxu0 %v2553
        %2580 = vmatprep.subr.mxu0 0.0
        %2581 = vmatpush1.msra.mxu0 %v2554
        %2582 = vmatprep.subr.mxu0 0.0
        %2583 = vmatpush1.msra.mxu0 %v2555
        %2584 = vmatprep.subr.mxu0 0.0
        %2585 = vmatpush1.msra.mxu0 %v2556
        %2586 = vmatprep.subr.mxu0 0.0
        %2587 = vmatpush1.msra.mxu0 %v2557
        %2588 = vmatprep.subr.mxu0 0.0
        %2589 = vmatpush1.msra.mxu0 %v2558
        %2590 = vmatprep.subr.mxu0 0.0
        %2591 = vmatpush1.msra.mxu0 %v2559
        %2592 = vmatprep.subr.mxu0 0.0
        %2593 = vmatpush1.msra.mxu0 0.0
        %2594 = vmatprep.subr.mxu0 0.0
        %2595 = vmatpush1.msra.mxu0 0.0
        %2596 = vmatprep.subr.mxu0 0.0
        %2597 = vmatpush1.msra.mxu0 0.0
        %2598 = vmatprep.subr.mxu0 0.0
        %2599 = vmatpush1.msra.mxu0 0.0
        %2600 = vmatprep.subr.mxu0 0.0
        %2601 = vmatpush1.msra.mxu0 0.0
        %2602 = vmatprep.subr.mxu0 0.0
        %2603 = vmatpush1.msra.mxu0 0.0
        %2604 = vmatprep.subr.mxu0 0.0
        %2605 = vmatpush1.msra.mxu0 0.0
        %2606 = vmatprep.subr.mxu0 0.0
        %2607 = vmatpush1.msra.mxu0 0.0
        %2608 = vmatprep.subr.mxu0 0.0
        %2609 = vmatpush1.msra.mxu0 0.0
        %2610 = vmatprep.subr.mxu0 0.0
        %2611 = vmatpush1.msra.mxu0 0.0
        %2612 = vmatprep.subr.mxu0 0.0
        %2613 = vmatpush1.msra.mxu0 0.0
        %2614 = vmatprep.subr.mxu0 0.0
        %2615 = vmatpush1.msra.mxu0 0.0
        %2616 = vmatprep.subr.mxu0 0.0
        %2617 = vmatpush1.msra.mxu0 0.0
        %2618 = vmatprep.subr.mxu0 0.0
        %2619 = vmatpush1.msra.mxu0 0.0
        %2620 = vmatprep.subr.mxu0 0.0
        %2621 = vmatpush1.msra.mxu0 0.0
        %2622 = vmatprep.subr.mxu0 0.0
        %2623 = vmatpush1.msra.mxu0 0.0
        %2624 = vmatprep.mubr.f32.mxu0 0.0
        %2625 = vmatmul.mubr.f32.gmra.mrb[0].mxu0 %v2535
        %v2626 = vpop.f32.mrb[0].mxu0
        %v2627 = vadd.f32 0.0, %v2626
        %v2628 = vpop.f32.mrb[0].mxu0
        %2629 = vmatprep.mubr.f32.mxu0 0.0
        %2630 = vmatmul.mubr.f32.gmra.mrb[0].mxu0 %v2536
        %v2631 = vpop.f32.mrb[0].mxu0
        %v2632 = vadd.f32 0.0, %v2631
        %v2633 = vpop.f32.mrb[0].mxu0
        %2634 = vmatprep.mubr.f32.mxu0 0.0
        %2635 = vmatmul.mubr.f32.gmra.mrb[0].mxu0 %v2537
        %v2636 = vpop.f32.mrb[0].mxu0
        %v2637 = vadd.f32 0.0, %v2636
        %v2638 = vpop.f32.mrb[0].mxu0
        %2639 = vmatprep.mubr.f32.mxu0 0.0
        %2640 = vmatmul.mubr.f32.gmra.mrb[0].mxu0 %v2538
        %v2641 = vpop.f32.mrb[0].mxu0
        %v2642 = vadd.f32 0.0, %v2641
        %v2643 = vpop.f32.mrb[0].mxu0
        %2644 = vmatprep.mubr.f32.mxu0 0.0
        %2645 = vmatmul.mubr.f32.gmra.mrb[0].mxu0 %v2539
        %v2646 = vpop.f32.mrb[0].mxu0
        %v2647 = vadd.f32 0.0, %v2646
        %v2648 = vpop.f32.mrb[0].mxu0
        %2649 = vmatprep.mubr.f32.mxu0 0.0
        %2650 = vmatmul.mubr.f32.gmra.mrb[0].mxu0 %v2540
        %v2651 = vpop.f32.mrb[0].mxu0
        %v2652 = vadd.f32 0.0, %v2651
        %v2653 = vpop.f32.mrb[0].mxu0
        %2654 = vmatprep.mubr.f32.mxu0 0.0
        %2655 = vmatmul.mubr.f32.gmra.mrb[0].mxu0 %v2541
        %v2656 = vpop.f32.mrb[0].mxu0
        %v2657 = vadd.f32 0.0, %v2656
        %v2658 = vpop.f32.mrb[0].mxu0
        %2659 = vmatprep.mubr.f32.mxu0 0.0
        %2660 = vmatmul.mubr.f32.gmra.mrb[0].mxu0 %v2542
        %v2661 = vpop.f32.mrb[0].mxu0
        %v2662 = vadd.f32 0.0, %v2661
        %v2663 = vpop.f32.mrb[0].mxu0
        %2664 = vdwg.mxu0
        %v2665 = vadd.f32 %v2527, %v2627
        %v2666 = vadd.f32 %v2528, %v2632
        %v2667 = vadd.f32 %v2529, %v2637
        %v2668 = vadd.f32 %v2530, %v2642
        %v2669 = vadd.f32 %v2531, %v2647
        %v2670 = vadd.f32 %v2532, %v2652
        %v2671 = vadd.f32 %v2533, %v2657
        %v2672 = vadd.f32 %v2534, %v2662
        %v2673 = vld [vmem:[#allocation5 + $0x10] sm:$0xff]
        %v2674 = vld [vmem:[#allocation5 + $0x18] sm:$0xff]
        %v2675 = vld [vmem:[#allocation5 + $0x20] sm:$0xff]
        %v2676 = vld [vmem:[#allocation5 + $0x28] sm:$0xff]
        %v2677 = vld [vmem:[#allocation5 + $0x30] sm:$0xff]
        %v2678 = vld [vmem:[#allocation5 + $0x38] sm:$0xff]
        %v2679 = vld [vmem:[#allocation5 + $0x40] sm:$0xff]
        %v2680 = vld [vmem:[#allocation5 + $0x48] sm:$0xff]
        %s2681 = scalar_lea.vmem [#allocation11], 768
        %v2682 = vld [vmem:[%s2681] sm:$0xff]
        %v2683 = vld [vmem:[%s2681 + $0x8] sm:$0xff]
        %v2684 = vld [vmem:[%s2681 + $0x10] sm:$0xff]
        %v2685 = vld [vmem:[%s2681 + $0x18] sm:$0xff]
        %v2686 = vld [vmem:[%s2681 + $0x20] sm:$0xff]
        %v2687 = vld [vmem:[%s2681 + $0x28] sm:$0xff]
        %v2688 = vld [vmem:[%s2681 + $0x30] sm:$0xff]
        %v2689 = vld [vmem:[%s2681 + $0x38] sm:$0xff]
        %v2690 = vld [vmem:[%s2681 + $0x40] sm:$0xff]
        %v2691 = vld [vmem:[%s2681 + $0x48] sm:$0xff]
        %v2692 = vld [vmem:[%s2681 + $0x50] sm:$0xff]
        %v2693 = vld [vmem:[%s2681 + $0x58] sm:$0xff]
        %v2694 = vld [vmem:[%s2681 + $0x60] sm:$0xff]
        %v2695 = vld [vmem:[%s2681 + $0x68] sm:$0xff]
        %v2696 = vld [vmem:[%s2681 + $0x70] sm:$0xff]
        %v2697 = vld [vmem:[%s2681 + $0x78] sm:$0xff]
        %2698 = vmatprep.subr.mxu0 0.0
        %2699 = vmatpush1.msra.mxu0 %v2682
        %2700 = vmatprep.subr.mxu0 0.0
        %2701 = vmatpush1.msra.mxu0 %v2683
        %2702 = vmatprep.subr.mxu0 0.0
        %2703 = vmatpush1.msra.mxu0 %v2684
        %2704 = vmatprep.subr.mxu0 0.0
        %2705 = vmatpush1.msra.mxu0 %v2685
        %2706 = vmatprep.subr.mxu0 0.0
        %2707 = vmatpush1.msra.mxu0 %v2686
        %2708 = vmatprep.subr.mxu0 0.0
        %2709 = vmatpush1.msra.mxu0 %v2687
        %2710 = vmatprep.subr.mxu0 0.0
        %2711 = vmatpush1.msra.mxu0 %v2688
        %2712 = vmatprep.subr.mxu0 0.0
        %2713 = vmatpush1.msra.mxu0 %v2689
        %2714 = vmatprep.subr.mxu0 0.0
        %2715 = vmatpush1.msra.mxu0 %v2690
        %2716 = vmatprep.subr.mxu0 0.0
        %2717 = vmatpush1.msra.mxu0 %v2691
        %2718 = vmatprep.subr.mxu0 0.0
        %2719 = vmatpush1.msra.mxu0 %v2692
        %2720 = vmatprep.subr.mxu0 0.0
        %2721 = vmatpush1.msra.mxu0 %v2693
        %2722 = vmatprep.subr.mxu0 0.0
        %2723 = vmatpush1.msra.mxu0 %v2694
        %2724 = vmatprep.subr.mxu0 0.0
        %2725 = vmatpush1.msra.mxu0 %v2695
        %2726 = vmatprep.subr.mxu0 0.0
        %2727 = vmatpush1.msra.mxu0 %v2696
        %2728 = vmatprep.subr.mxu0 0.0
        %2729 = vmatpush1.msra.mxu0 %v2697
        %2730 = vmatprep.subr.mxu0 0.0
        %2731 = vmatpush1.msra.mxu0 0.0
        %2732 = vmatprep.subr.mxu0 0.0
        %2733 = vmatpush1.msra.mxu0 0.0
        %2734 = vmatprep.subr.mxu0 0.0
        %2735 = vmatpush1.msra.mxu0 0.0
        %2736 = vmatprep.subr.mxu0 0.0
        %2737 = vmatpush1.msra.mxu0 0.0
        %2738 = vmatprep.subr.mxu0 0.0
        %2739 = vmatpush1.msra.mxu0 0.0
        %2740 = vmatprep.subr.mxu0 0.0
        %2741 = vmatpush1.msra.mxu0 0.0
        %2742 = vmatprep.subr.mxu0 0.0
        %2743 = vmatpush1.msra.mxu0 0.0
        %2744 = vmatprep.subr.mxu0 0.0
        %2745 = vmatpush1.msra.mxu0 0.0
        %2746 = vmatprep.subr.mxu0 0.0
        %2747 = vmatpush1.msra.mxu0 0.0
        %2748 = vmatprep.subr.mxu0 0.0
        %2749 = vmatpush1.msra.mxu0 0.0
        %2750 = vmatprep.subr.mxu0 0.0
        %2751 = vmatpush1.msra.mxu0 0.0
        %2752 = vmatprep.subr.mxu0 0.0
        %2753 = vmatpush1.msra.mxu0 0.0
        %2754 = vmatprep.subr.mxu0 0.0
        %2755 = vmatpush1.msra.mxu0 0.0
        %2756 = vmatprep.subr.mxu0 0.0
        %2757 = vmatpush1.msra.mxu0 0.0
        %2758 = vmatprep.subr.mxu0 0.0
        %2759 = vmatpush1.msra.mxu0 0.0
        %2760 = vmatprep.subr.mxu0 0.0
        %2761 = vmatpush1.msra.mxu0 0.0
        %2762 = vmatprep.mubr.f32.mxu0 0.0
        %2763 = vmatmul.mubr.f32.gmra.mrb[0].mxu0 %v2673
        %v2764 = vpop.f32.mrb[0].mxu0
        %v2765 = vadd.f32 0.0, %v2764
        %v2766 = vpop.f32.mrb[0].mxu0
        %2767 = vmatprep.mubr.f32.mxu0 0.0
        %2768 = vmatmul.mubr.f32.gmra.mrb[0].mxu0 %v2674
        %v2769 = vpop.f32.mrb[0].mxu0
        %v2770 = vadd.f32 0.0, %v2769
        %v2771 = vpop.f32.mrb[0].mxu0
        %2772 = vmatprep.mubr.f32.mxu0 0.0
        %2773 = vmatmul.mubr.f32.gmra.mrb[0].mxu0 %v2675
        %v2774 = vpop.f32.mrb[0].mxu0
        %v2775 = vadd.f32 0.0, %v2774
        %v2776 = vpop.f32.mrb[0].mxu0
        %2777 = vmatprep.mubr.f32.mxu0 0.0
        %2778 = vmatmul.mubr.f32.gmra.mrb[0].mxu0 %v2676
        %v2779 = vpop.f32.mrb[0].mxu0
        %v2780 = vadd.f32 0.0, %v2779
        %v2781 = vpop.f32.mrb[0].mxu0
        %2782 = vmatprep.mubr.f32.mxu0 0.0
        %2783 = vmatmul.mubr.f32.gmra.mrb[0].mxu0 %v2677
        %v2784 = vpop.f32.mrb[0].mxu0
        %v2785 = vadd.f32 0.0, %v2784
        %v2786 = vpop.f32.mrb[0].mxu0
        %2787 = vmatprep.mubr.f32.mxu0 0.0
        %2788 = vmatmul.mubr.f32.gmra.mrb[0].mxu0 %v2678
        %v2789 = vpop.f32.mrb[0].mxu0
        %v2790 = vadd.f32 0.0, %v2789
        %v2791 = vpop.f32.mrb[0].mxu0
        %2792 = vmatprep.mubr.f32.mxu0 0.0
        %2793 = vmatmul.mubr.f32.gmra.mrb[0].mxu0 %v2679
        %v2794 = vpop.f32.mrb[0].mxu0
        %v2795 = vadd.f32 0.0, %v2794
        %v2796 = vpop.f32.mrb[0].mxu0
        %2797 = vmatprep.mubr.f32.mxu0 0.0
        %2798 = vmatmul.mubr.f32.gmra.mrb[0].mxu0 %v2680
        %v2799 = vpop.f32.mrb[0].mxu0
        %v2800 = vadd.f32 0.0, %v2799
        %v2801 = vpop.f32.mrb[0].mxu0
        %2802 = vdwg.mxu0
        %v2803 = vadd.f32 %v2665, %v2765
        %v2804 = vadd.f32 %v2666, %v2770
        %v2805 = vadd.f32 %v2667, %v2775
        %v2806 = vadd.f32 %v2668, %v2780
        %v2807 = vadd.f32 %v2669, %v2785
        %v2808 = vadd.f32 %v2670, %v2790
        %v2809 = vadd.f32 %v2671, %v2795
        %v2810 = vadd.f32 %v2672, %v2800
        %v2811 = vld [vmem:[%s1807 + $0x10] sm:$0xff]
        %v2812 = vld [vmem:[%s1807 + $0x18] sm:$0xff]
        %v2813 = vld [vmem:[%s1807 + $0x20] sm:$0xff]
        %v2814 = vld [vmem:[%s1807 + $0x28] sm:$0xff]
        %v2815 = vld [vmem:[%s1807 + $0x30] sm:$0xff]
        %v2816 = vld [vmem:[%s1807 + $0x38] sm:$0xff]
        %v2817 = vld [vmem:[%s1807 + $0x40] sm:$0xff]
        %v2818 = vld [vmem:[%s1807 + $0x48] sm:$0xff]
        %s2819 = scalar_lea.vmem [#allocation11], 896
        %v2820 = vld [vmem:[%s2819] sm:$0xff]
        %v2821 = vld [vmem:[%s2819 + $0x8] sm:$0xff]
        %v2822 = vld [vmem:[%s2819 + $0x10] sm:$0xff]
        %v2823 = vld [vmem:[%s2819 + $0x18] sm:$0xff]
        %v2824 = vld [vmem:[%s2819 + $0x20] sm:$0xff]
        %v2825 = vld [vmem:[%s2819 + $0x28] sm:$0xff]
        %v2826 = vld [vmem:[%s2819 + $0x30] sm:$0xff]
        %v2827 = vld [vmem:[%s2819 + $0x38] sm:$0xff]
        %v2828 = vld [vmem:[%s2819 + $0x40] sm:$0xff]
        %v2829 = vld [vmem:[%s2819 + $0x48] sm:$0xff]
        %v2830 = vld [vmem:[%s2819 + $0x50] sm:$0xff]
        %v2831 = vld [vmem:[%s2819 + $0x58] sm:$0xff]
        %v2832 = vld [vmem:[%s2819 + $0x60] sm:$0xff]
        %v2833 = vld [vmem:[%s2819 + $0x68] sm:$0xff]
        %v2834 = vld [vmem:[%s2819 + $0x70] sm:$0xff]
        %v2835 = vld [vmem:[%s2819 + $0x78] sm:$0xff]
        %2836 = vmatprep.subr.mxu0 0.0
        %2837 = vmatpush1.msra.mxu0 %v2820
        %2838 = vmatprep.subr.mxu0 0.0
        %2839 = vmatpush1.msra.mxu0 %v2821
        %2840 = vmatprep.subr.mxu0 0.0
        %2841 = vmatpush1.msra.mxu0 %v2822
        %2842 = vmatprep.subr.mxu0 0.0
        %2843 = vmatpush1.msra.mxu0 %v2823
        %2844 = vmatprep.subr.mxu0 0.0
        %2845 = vmatpush1.msra.mxu0 %v2824
        %2846 = vmatprep.subr.mxu0 0.0
        %2847 = vmatpush1.msra.mxu0 %v2825
        %2848 = vmatprep.subr.mxu0 0.0
        %2849 = vmatpush1.msra.mxu0 %v2826
        %2850 = vmatprep.subr.mxu0 0.0
        %2851 = vmatpush1.msra.mxu0 %v2827
        %2852 = vmatprep.subr.mxu0 0.0
        %2853 = vmatpush1.msra.mxu0 %v2828
        %2854 = vmatprep.subr.mxu0 0.0
        %2855 = vmatpush1.msra.mxu0 %v2829
        %2856 = vmatprep.subr.mxu0 0.0
        %2857 = vmatpush1.msra.mxu0 %v2830
        %2858 = vmatprep.subr.mxu0 0.0
        %2859 = vmatpush1.msra.mxu0 %v2831
        %2860 = vmatprep.subr.mxu0 0.0
        %2861 = vmatpush1.msra.mxu0 %v2832
        %2862 = vmatprep.subr.mxu0 0.0
        %2863 = vmatpush1.msra.mxu0 %v2833
        %2864 = vmatprep.subr.mxu0 0.0
        %2865 = vmatpush1.msra.mxu0 %v2834
        %2866 = vmatprep.subr.mxu0 0.0
        %2867 = vmatpush1.msra.mxu0 %v2835
        %2868 = vmatprep.subr.mxu0 0.0
        %2869 = vmatpush1.msra.mxu0 0.0
        %2870 = vmatprep.subr.mxu0 0.0
        %2871 = vmatpush1.msra.mxu0 0.0
        %2872 = vmatprep.subr.mxu0 0.0
        %2873 = vmatpush1.msra.mxu0 0.0
        %2874 = vmatprep.subr.mxu0 0.0
        %2875 = vmatpush1.msra.mxu0 0.0
        %2876 = vmatprep.subr.mxu0 0.0
        %2877 = vmatpush1.msra.mxu0 0.0
        %2878 = vmatprep.subr.mxu0 0.0
        %2879 = vmatpush1.msra.mxu0 0.0
        %2880 = vmatprep.subr.mxu0 0.0
        %2881 = vmatpush1.msra.mxu0 0.0
        %2882 = vmatprep.subr.mxu0 0.0
        %2883 = vmatpush1.msra.mxu0 0.0
        %2884 = vmatprep.subr.mxu0 0.0
        %2885 = vmatpush1.msra.mxu0 0.0
        %2886 = vmatprep.subr.mxu0 0.0
        %2887 = vmatpush1.msra.mxu0 0.0
        %2888 = vmatprep.subr.mxu0 0.0
        %2889 = vmatpush1.msra.mxu0 0.0
        %2890 = vmatprep.subr.mxu0 0.0
        %2891 = vmatpush1.msra.mxu0 0.0
        %2892 = vmatprep.subr.mxu0 0.0
        %2893 = vmatpush1.msra.mxu0 0.0
        %2894 = vmatprep.subr.mxu0 0.0
        %2895 = vmatpush1.msra.mxu0 0.0
        %2896 = vmatprep.subr.mxu0 0.0
        %2897 = vmatpush1.msra.mxu0 0.0
        %2898 = vmatprep.subr.mxu0 0.0
        %2899 = vmatpush1.msra.mxu0 0.0
        %2900 = vmatprep.mubr.f32.mxu0 0.0
        %2901 = vmatmul.mubr.f32.gmra.mrb[0].mxu0 %v2811
        %v2902 = vpop.f32.mrb[0].mxu0
        %v2903 = vadd.f32 0.0, %v2902
        %v2904 = vpop.f32.mrb[0].mxu0
        %2905 = vmatprep.mubr.f32.mxu0 0.0
        %2906 = vmatmul.mubr.f32.gmra.mrb[0].mxu0 %v2812
        %v2907 = vpop.f32.mrb[0].mxu0
        %v2908 = vadd.f32 0.0, %v2907
        %v2909 = vpop.f32.mrb[0].mxu0
        %2910 = vmatprep.mubr.f32.mxu0 0.0
        %2911 = vmatmul.mubr.f32.gmra.mrb[0].mxu0 %v2813
        %v2912 = vpop.f32.mrb[0].mxu0
        %v2913 = vadd.f32 0.0, %v2912
        %v2914 = vpop.f32.mrb[0].mxu0
        %2915 = vmatprep.mubr.f32.mxu0 0.0
        %2916 = vmatmul.mubr.f32.gmra.mrb[0].mxu0 %v2814
        %v2917 = vpop.f32.mrb[0].mxu0
        %v2918 = vadd.f32 0.0, %v2917
        %v2919 = vpop.f32.mrb[0].mxu0
        %2920 = vmatprep.mubr.f32.mxu0 0.0
        %2921 = vmatmul.mubr.f32.gmra.mrb[0].mxu0 %v2815
        %v2922 = vpop.f32.mrb[0].mxu0
        %v2923 = vadd.f32 0.0, %v2922
        %v2924 = vpop.f32.mrb[0].mxu0
        %2925 = vmatprep.mubr.f32.mxu0 0.0
        %2926 = vmatmul.mubr.f32.gmra.mrb[0].mxu0 %v2816
        %v2927 = vpop.f32.mrb[0].mxu0
        %v2928 = vadd.f32 0.0, %v2927
        %v2929 = vpop.f32.mrb[0].mxu0
        %2930 = vmatprep.mubr.f32.mxu0 0.0
        %2931 = vmatmul.mubr.f32.gmra.mrb[0].mxu0 %v2817
        %v2932 = vpop.f32.mrb[0].mxu0
        %v2933 = vadd.f32 0.0, %v2932
        %v2934 = vpop.f32.mrb[0].mxu0
        %2935 = vmatprep.mubr.f32.mxu0 0.0
        %2936 = vmatmul.mubr.f32.gmra.mrb[0].mxu0 %v2818
        %v2937 = vpop.f32.mrb[0].mxu0
        %v2938 = vadd.f32 0.0, %v2937
        %v2939 = vpop.f32.mrb[0].mxu0
        %2940 = vdwg.mxu0
        %v2941 = vadd.f32 %v2803, %v2903
        %v2942 = vadd.f32 %v2804, %v2908
        %v2943 = vadd.f32 %v2805, %v2913
        %v2944 = vadd.f32 %v2806, %v2918
        %v2945 = vadd.f32 %v2807, %v2923
        %v2946 = vadd.f32 %v2808, %v2928
        %v2947 = vadd.f32 %v2809, %v2933
        %v2948 = vadd.f32 %v2810, %v2938
        %v2949 = vld [vmem:[%s1828 + $0x10] sm:$0xff]
        %v2950 = vld [vmem:[%s1828 + $0x18] sm:$0xff]
        %v2951 = vld [vmem:[%s1828 + $0x20] sm:$0xff]
        %v2952 = vld [vmem:[%s1828 + $0x28] sm:$0xff]
        %v2953 = vld [vmem:[%s1828 + $0x30] sm:$0xff]
        %v2954 = vld [vmem:[%s1828 + $0x38] sm:$0xff]
        %v2955 = vld [vmem:[%s1828 + $0x40] sm:$0xff]
        %v2956 = vld [vmem:[%s1828 + $0x48] sm:$0xff]
        %s2957 = scalar_lea.vmem [#allocation11], 1024
        %v2958 = vld [vmem:[%s2957] sm:$0xff]
        %v2959 = vld [vmem:[%s2957 + $0x8] sm:$0xff]
        %v2960 = vld [vmem:[%s2957 + $0x10] sm:$0xff]
        %v2961 = vld [vmem:[%s2957 + $0x18] sm:$0xff]
        %v2962 = vld [vmem:[%s2957 + $0x20] sm:$0xff]
        %v2963 = vld [vmem:[%s2957 + $0x28] sm:$0xff]
        %v2964 = vld [vmem:[%s2957 + $0x30] sm:$0xff]
        %v2965 = vld [vmem:[%s2957 + $0x38] sm:$0xff]
        %v2966 = vld [vmem:[%s2957 + $0x40] sm:$0xff]
        %v2967 = vld [vmem:[%s2957 + $0x48] sm:$0xff]
        %v2968 = vld [vmem:[%s2957 + $0x50] sm:$0xff]
        %v2969 = vld [vmem:[%s2957 + $0x58] sm:$0xff]
        %v2970 = vld [vmem:[%s2957 + $0x60] sm:$0xff]
        %v2971 = vld [vmem:[%s2957 + $0x68] sm:$0xff]
        %v2972 = vld [vmem:[%s2957 + $0x70] sm:$0xff]
        %v2973 = vld [vmem:[%s2957 + $0x78] sm:$0xff]
        %2974 = vmatprep.subr.mxu0 0.0
        %2975 = vmatpush1.msra.mxu0 %v2958
        %2976 = vmatprep.subr.mxu0 0.0
        %2977 = vmatpush1.msra.mxu0 %v2959
        %2978 = vmatprep.subr.mxu0 0.0
        %2979 = vmatpush1.msra.mxu0 %v2960
        %2980 = vmatprep.subr.mxu0 0.0
        %2981 = vmatpush1.msra.mxu0 %v2961
        %2982 = vmatprep.subr.mxu0 0.0
        %2983 = vmatpush1.msra.mxu0 %v2962
        %2984 = vmatprep.subr.mxu0 0.0
        %2985 = vmatpush1.msra.mxu0 %v2963
        %2986 = vmatprep.subr.mxu0 0.0
        %2987 = vmatpush1.msra.mxu0 %v2964
        %2988 = vmatprep.subr.mxu0 0.0
        %2989 = vmatpush1.msra.mxu0 %v2965
        %2990 = vmatprep.subr.mxu0 0.0
        %2991 = vmatpush1.msra.mxu0 %v2966
        %2992 = vmatprep.subr.mxu0 0.0
        %2993 = vmatpush1.msra.mxu0 %v2967
        %2994 = vmatprep.subr.mxu0 0.0
        %2995 = vmatpush1.msra.mxu0 %v2968
        %2996 = vmatprep.subr.mxu0 0.0
        %2997 = vmatpush1.msra.mxu0 %v2969
        %2998 = vmatprep.subr.mxu0 0.0
        %2999 = vmatpush1.msra.mxu0 %v2970
        %3000 = vmatprep.subr.mxu0 0.0
        %3001 = vmatpush1.msra.mxu0 %v2971
        %3002 = vmatprep.subr.mxu0 0.0
        %3003 = vmatpush1.msra.mxu0 %v2972
        %3004 = vmatprep.subr.mxu0 0.0
        %3005 = vmatpush1.msra.mxu0 %v2973
        %3006 = vmatprep.subr.mxu0 0.0
        %3007 = vmatpush1.msra.mxu0 0.0
        %3008 = vmatprep.subr.mxu0 0.0
        %3009 = vmatpush1.msra.mxu0 0.0
        %3010 = vmatprep.subr.mxu0 0.0
        %3011 = vmatpush1.msra.mxu0 0.0
        %3012 = vmatprep.subr.mxu0 0.0
        %3013 = vmatpush1.msra.mxu0 0.0
        %3014 = vmatprep.subr.mxu0 0.0
        %3015 = vmatpush1.msra.mxu0 0.0
        %3016 = vmatprep.subr.mxu0 0.0
        %3017 = vmatpush1.msra.mxu0 0.0
        %3018 = vmatprep.subr.mxu0 0.0
        %3019 = vmatpush1.msra.mxu0 0.0
        %3020 = vmatprep.subr.mxu0 0.0
        %3021 = vmatpush1.msra.mxu0 0.0
        %3022 = vmatprep.subr.mxu0 0.0
        %3023 = vmatpush1.msra.mxu0 0.0
        %3024 = vmatprep.subr.mxu0 0.0
        %3025 = vmatpush1.msra.mxu0 0.0
        %3026 = vmatprep.subr.mxu0 0.0
        %3027 = vmatpush1.msra.mxu0 0.0
        %3028 = vmatprep.subr.mxu0 0.0
        %3029 = vmatpush1.msra.mxu0 0.0
        %3030 = vmatprep.subr.mxu0 0.0
        %3031 = vmatpush1.msra.mxu0 0.0
        %3032 = vmatprep.subr.mxu0 0.0
        %3033 = vmatpush1.msra.mxu0 0.0
        %3034 = vmatprep.subr.mxu0 0.0
        %3035 = vmatpush1.msra.mxu0 0.0
        %3036 = vmatprep.subr.mxu0 0.0
        %3037 = vmatpush1.msra.mxu0 0.0
        %3038 = vmatprep.mubr.f32.mxu0 0.0
        %3039 = vmatmul.mubr.f32.gmra.mrb[0].mxu0 %v2949
        %v3040 = vpop.f32.mrb[0].mxu0
        %v3041 = vadd.f32 0.0, %v3040
        %v3042 = vpop.f32.mrb[0].mxu0
        %3043 = vmatprep.mubr.f32.mxu0 0.0
        %3044 = vmatmul.mubr.f32.gmra.mrb[0].mxu0 %v2950
        %v3045 = vpop.f32.mrb[0].mxu0
        %v3046 = vadd.f32 0.0, %v3045
        %v3047 = vpop.f32.mrb[0].mxu0
        %3048 = vmatprep.mubr.f32.mxu0 0.0
        %3049 = vmatmul.mubr.f32.gmra.mrb[0].mxu0 %v2951
        %v3050 = vpop.f32.mrb[0].mxu0
        %v3051 = vadd.f32 0.0, %v3050
        %v3052 = vpop.f32.mrb[0].mxu0
        %3053 = vmatprep.mubr.f32.mxu0 0.0
        %3054 = vmatmul.mubr.f32.gmra.mrb[0].mxu0 %v2952
        %v3055 = vpop.f32.mrb[0].mxu0
        %v3056 = vadd.f32 0.0, %v3055
        %v3057 = vpop.f32.mrb[0].mxu0
        %3058 = vmatprep.mubr.f32.mxu0 0.0
        %3059 = vmatmul.mubr.f32.gmra.mrb[0].mxu0 %v2953
        %v3060 = vpop.f32.mrb[0].mxu0
        %v3061 = vadd.f32 0.0, %v3060
        %v3062 = vpop.f32.mrb[0].mxu0
        %3063 = vmatprep.mubr.f32.mxu0 0.0
        %3064 = vmatmul.mubr.f32.gmra.mrb[0].mxu0 %v2954
        %v3065 = vpop.f32.mrb[0].mxu0
        %v3066 = vadd.f32 0.0, %v3065
        %v3067 = vpop.f32.mrb[0].mxu0
        %3068 = vmatprep.mubr.f32.mxu0 0.0
        %3069 = vmatmul.mubr.f32.gmra.mrb[0].mxu0 %v2955
        %v3070 = vpop.f32.mrb[0].mxu0
        %v3071 = vadd.f32 0.0, %v3070
        %v3072 = vpop.f32.mrb[0].mxu0
        %3073 = vmatprep.mubr.f32.mxu0 0.0
        %3074 = vmatmul.mubr.f32.gmra.mrb[0].mxu0 %v2956
        %v3075 = vpop.f32.mrb[0].mxu0
        %v3076 = vadd.f32 0.0, %v3075
        %v3077 = vpop.f32.mrb[0].mxu0
        %3078 = vdwg.mxu0
        %v3079 = vadd.f32 %v2941, %v3041
        %v3080 = vadd.f32 %v2942, %v3046
        %v3081 = vadd.f32 %v2943, %v3051
        %v3082 = vadd.f32 %v2944, %v3056
        %v3083 = vadd.f32 %v2945, %v3061
        %v3084 = vadd.f32 %v2946, %v3066
        %v3085 = vadd.f32 %v2947, %v3071
        %v3086 = vadd.f32 %v2948, %v3076
        %v3087 = vmax.f32 %v3079, 0.0
        %v3088 = vmax.f32 %v3080, 0.0
        %v3089 = vmax.f32 %v3081, 0.0
        %v3090 = vmax.f32 %v3082, 0.0
        %v3091 = vmax.f32 %v3083, 0.0
        %v3092 = vmax.f32 %v3084, 0.0
        %v3093 = vmax.f32 %v3085, 0.0
        %v3094 = vmax.f32 %v3086, 0.0
        %3095 = vst [vmem:[%s271] sm:$0xff] %v3087
        %3096 = vst [vmem:[%s271 + $0x8] sm:$0xff] %v3088
        %3097 = vst [vmem:[%s271 + $0x10] sm:$0xff] %v3089
        %3098 = vst [vmem:[%s271 + $0x18] sm:$0xff] %v3090
        %3099 = vst [vmem:[%s271 + $0x20] sm:$0xff] %v3091
        %3100 = vst [vmem:[%s271 + $0x28] sm:$0xff] %v3092
        %3101 = vst [vmem:[%s271 + $0x30] sm:$0xff] %v3093
        %3102 = vst [vmem:[%s271 + $0x38] sm:$0xff] %v3094
        %s3103 = sand.u32 %s141, 1
        %s3104 = scalar_lea.sflag [#allocation8], %s3103
        %s3105 = sand.u32 %s141, 1
        %s3106 = smul.addr %s3105, 64
        %s3107 = scalar_lea.vmem [#allocation12], %s3106
        // Predicated region
        $region53: #{tpu_custom_call.1} parent=39 // pred_check
          %p3108 = pneg %p151
        $region54: #{tpu_custom_call.1} parent=39 // pred_check_branch
          %3110 = sbr.rel (%p3108) target = $region56
        $region55: #{tpu_custom_call.1} parent=39 // pred_region
          %s3112 = ssub.s32 1024, 1024
          %3113 = vsyncadd %s3104, %s3112
          %s3114 = smul.addr %s23, 8
          %s3115 = smul.addr %s3114, 128
          %s3116 = scalar_lea.hbm %s5, %s3115
          %s3117 = sshll.u32 %s3107, 4
          %s3118 = int_to_ptr.vmem [resolvable:$true] %s3117
          %3123 = dma.vmem_to_hbm [thread:$0]  %s3118, 1024, %s3116, %s3104, 128, 128, 8
        $region56: #{tpu_custom_call.1} parent=39 // pred_fallthru
          _
      $region40: #{tpu_custom_call.1} parent=5 // pred_fallthru
        _
      %p3124 = scmp.le.s32.totalorder 2, %s18
      // Predicated region
      $region57: #{tpu_custom_call.1} parent=5 // pred_check
        %p3125 = pneg %p3124
      $region58: #{tpu_custom_call.1} parent=5 // pred_check_branch
        %3127 = sbr.rel (%p3125) target = $region60
      $region59: #{tpu_custom_call.1} parent=5 // pred_region
        %s3128 = ssub.s32 %s18, 2
        // Predicated region
        $region61: #{tpu_custom_call.1} parent=59 // pred_check
          %p3129 = pneg %p157
        $region62: #{tpu_custom_call.1} parent=59 // pred_check_branch
          %3131 = sbr.rel (%p3129) target = $region64
        $region63: #{tpu_custom_call.1} parent=59 // pred_region
          %s3132 = sand.u32 %s142, 1
          %s3133 = scalar_lea.sflag [#allocation8], %s3132
          %s3134 = sand.u32 %s142, 1
          %s3135 = smul.addr %s3134, 64
          %s3136 = scalar_lea.vmem [#allocation12], %s3135
          %3137 = dma.done %s3133, 1024
        $region64: #{tpu_custom_call.1} parent=59 // pred_fallthru
          _
      $region60: #{tpu_custom_call.1} parent=5 // pred_fallthru
        _
    $region6: #{tpu_custom_call.1} parent=1 // loop_footer
      %s22 = sadd.s32 1, %s18
    $region7: #{tpu_custom_call.1} parent=1 // loop_footer_branch
      %17 = sbr.rel target = $region3
    $region8: #{tpu_custom_call.1} parent=1 // loop_exit
      _
    %3138 = vsyncpa [#allocation7], 1
    %s3139 = scalar_lea.sflag [#allocation7], 1
    %3140 = vsyncpa %s3139, 1
    %3141 = vsyncpa [#allocation10], 1
    %3142 = vsyncpa [#allocation8], 1
    %s3143 = scalar_lea.sflag [#allocation8], 1
    %3144 = vsyncpa %s3143, 1

</llo_original>
